<compile_context>
chip_gen: v6e
topology: v6e:2x2x1
jax: 0.10.0
libtpu: 0.0.40
codegen_flags: <defaults>
</compile_context>

<pallas_src>
import functools
import math

import jax
import jax.numpy as jnp
from jax.experimental import pallas as pl
from jax.experimental.pallas import tpu as pltpu

_VMEM_LIMIT = 32 * 1024 * 1024


# ----------------------------------------------------------------------------
# Pallas kernel: stride-1 "same" conv, channels-last, in-VMEM tap accumulation
# (bias + optional residual + optional ReLU fused, bf16 output)
# ----------------------------------------------------------------------------

def _conv_body(x_ref, w_ref, b_ref, res_ref, o_ref, *, K, H, W, relu):
    x = x_ref[0]                                   # (H+2p, W+2p, Cin) bf16
    Cin = x.shape[-1]
    O = o_ref.shape[-1]
    acc = jnp.zeros((H * W, O), jnp.float32)
    t = 0
    for di in range(K):
        for dj in range(K):
            win = x[di:di + H, dj:dj + W, :].reshape(H * W, Cin)
            acc = acc + jnp.dot(win, w_ref[t], preferred_element_type=jnp.float32)
            t += 1
    acc = acc + b_ref[...]
    if res_ref is not None:
        acc = acc + res_ref[0].reshape(H * W, O).astype(jnp.float32)
    if relu:
        acc = jnp.maximum(acc, 0.0)
    o_ref[0] = acc.reshape(H, W, O).astype(o_ref.dtype)


def _conv_kernel(x_ref, w_ref, b_ref, o_ref, *, K, H, W, relu):
    _conv_body(x_ref, w_ref, b_ref, None, o_ref, K=K, H=H, W=W, relu=relu)


def _conv_res_kernel(x_ref, w_ref, b_ref, res_ref, o_ref, *, K, H, W, relu):
    _conv_body(x_ref, w_ref, b_ref, res_ref, o_ref, K=K, H=H, W=W, relu=relu)


def conv2d_nhwc(x, w, bias, ksize, padding, relu=False, residual=None):
    """x:(N,H,W,Cin) bf16, w:(K*K,Cin,O) bf16, bias:(1,O) f32 -> (N,H,W,O) bf16."""
    N, H, W, Cin = x.shape
    O = w.shape[-1]
    if padding > 0:
        xp = jnp.pad(x, ((0, 0), (padding, padding), (padding, padding), (0, 0)))
    else:
        xp = x
    Hp, Wp = H + 2 * padding, W + 2 * padding

    in_specs = [
        pl.BlockSpec((1, Hp, Wp, Cin), lambda i: (i, 0, 0, 0)),
        pl.BlockSpec((ksize * ksize, Cin, O), lambda i: (0, 0, 0)),
        pl.BlockSpec((1, O), lambda i: (0, 0)),
    ]
    args = [xp, w, bias]
    if residual is None:
        kernel = functools.partial(_conv_kernel, K=ksize, H=H, W=W, relu=relu)
    else:
        in_specs.append(pl.BlockSpec((1, H, W, O), lambda i: (i, 0, 0, 0)))
        args.append(residual)
        kernel = functools.partial(_conv_res_kernel, K=ksize, H=H, W=W, relu=relu)

    return pl.pallas_call(
        kernel,
        out_shape=jax.ShapeDtypeStruct((N, H, W, O), jnp.bfloat16),
        grid=(N,),
        in_specs=in_specs,
        out_specs=pl.BlockSpec((1, H, W, O), lambda i: (i, 0, 0, 0)),
        compiler_params=pltpu.CompilerParams(
            dimension_semantics=("parallel",), vmem_limit_bytes=_VMEM_LIMIT),
    )(*args)


# ----------------------------------------------------------------------------
# Pallas kernel: MaxPool2d(3, stride=1, pad=1), separable, channels-last, bf16
# ----------------------------------------------------------------------------

def _maxpool3_kernel(x_ref, o_ref, *, H, W):
    x = x_ref[0]                                   # (H+2, W+2, C)
    m = jnp.maximum(jnp.maximum(x[:, 0:W, :], x[:, 1:W + 1, :]), x[:, 2:W + 2, :])
    o = jnp.maximum(jnp.maximum(m[0:H], m[1:H + 1]), m[2:H + 2])
    o_ref[0] = o


def maxpool3x3_s1_p1(x):
    N, H, W, C = x.shape
    xp = jnp.pad(x, ((0, 0), (1, 1), (1, 1), (0, 0)), constant_values=-jnp.inf)
    return pl.pallas_call(
        functools.partial(_maxpool3_kernel, H=H, W=W),
        out_shape=jax.ShapeDtypeStruct((N, H, W, C), x.dtype),
        grid=(N,),
        in_specs=[pl.BlockSpec((1, H + 2, W + 2, C), lambda i: (i, 0, 0, 0))],
        out_specs=pl.BlockSpec((1, H, W, C), lambda i: (i, 0, 0, 0)),
        compiler_params=pltpu.CompilerParams(
            dimension_semantics=("parallel",), vmem_limit_bytes=_VMEM_LIMIT),
    )(xp)


# ----------------------------------------------------------------------------
# Pallas kernel: fused AttnDecoderRNN time loop (weights resident, hidden in
# scratch, one grid step per decoder timestep, bf16 MXU operands)
# ----------------------------------------------------------------------------

def _decoder_kernel(emb_ref, enc_ref, mask_ref, w_emb_ref, w_hid_ref,
                    b_attn_ref, w_comb2_ref, b_comb_ref,
                    w_ih_ref, b_ih_ref, b_hh_ref, w_out_ref, b_out_ref,
                    logits_ref, attnw_ref, hid_ref, *, H, L_pad):
    @pl.when(pl.program_id(0) == 0)
    def _():
        hid_ref[...] = jnp.zeros_like(hid_ref)

    emb = emb_ref[0]                               # (bs_pad, H) bf16
    hid = hid_ref[...]                             # (bs_pad, H) f32
    hid16 = hid.astype(jnp.bfloat16)
    bs_pad = hid.shape[0]

    # merged matmuls: emb @ [W_attn_e | W_comb_e], hid @ [W_attn_h | W_hh]
    emb_proj = jnp.dot(emb, w_emb_ref[...], preferred_element_type=jnp.float32)
    hid_proj = jnp.dot(hid16, w_hid_ref[...], preferred_element_type=jnp.float32)

    # attn = softmax(Linear(cat(embedded, hidden)))  (padded cols masked by -1e30 bias)
    a_logit = emb_proj[:, :L_pad] + hid_proj[:, :L_pad] + b_attn_ref[...]
    a_logit = a_logit - jnp.max(a_logit, axis=1, keepdims=True)
    e = jnp.exp(a_logit)
    inv = pl.reciprocal(jnp.sum(e, axis=1, keepdims=True), approx=True)
    attnw = e * inv
    attnw_ref[0] = attnw

    # attn_applied[b] = attnw[b] @ enc[b]  as ONE 2-D block-diagonal MXU matmul;
    # the 0/1 block-diagonal mask is precomputed outside the loop (resident).
    a_big = mask_ref[...] * jnp.concatenate([attnw] * bs_pad, axis=1)
    attn_applied = jnp.dot(a_big.astype(jnp.bfloat16), enc_ref[...],
                           preferred_element_type=jnp.float32)

    # attn_combine(cat(embedded, attn_applied)) -> ReLU
    x = (emb_proj[:, L_pad:]
         + jnp.dot(attn_applied.astype(jnp.bfloat16), w_comb2_ref[...],
                   preferred_element_type=jnp.float32)
         + b_comb_ref[...])
    x = jnp.maximum(x, 0.0)

    # GRU cell (PyTorch gate order: r, z, n), gates in f32
    gi = jnp.dot(x.astype(jnp.bfloat16), w_ih_ref[...],
                 preferred_element_type=jnp.float32) + b_ih_ref[...]
    gh = hid_proj[:, L_pad:] + b_hh_ref[...]
    r = jax.nn.sigmoid(gi[:, :H] + gh[:, :H])
    z = jax.nn.sigmoid(gi[:, H:2 * H] + gh[:, H:2 * H])
    n = jnp.tanh(gi[:, 2 * H:] + r * gh[:, 2 * H:])
    newh = (1.0 - z) * n + z * hid
    hid_ref[...] = newh

    # output Linear (columns padded to a lane multiple; sliced outside)
    logits_ref[0] = (jnp.dot(newh.astype(jnp.bfloat16), w_out_ref[...],
                             preferred_element_type=jnp.float32) + b_out_ref[...])


def decoder_forward(encode_nhwc, text, dp):
    """AttnDecoderRNN.forward, deterministic teacher-forcing branch, one pallas_call."""
    # TODO(synk): python `random.random()` teacher-forcing choice made deterministic
    #             (teacher-forcing branch); dropout on the embedding omitted (eval).
    b, h, w, c = encode_nhwc.shape
    H = c
    L = h * w
    assert L == dp["max_length"]
    L_pad, O_pad, O = dp["L_pad"], dp["O_pad"], dp["output_size"]
    steps = text.shape[1] - 1
    bs_pad = max(8, pl.cdiv(b, 8) * 8)

    enc_seq = encode_nhwc.reshape(b, L, H).astype(jnp.bfloat16)
    enc_flat = jnp.pad(enc_seq, ((0, bs_pad - b), (0, L_pad - L), (0, 0)))
    enc_flat = enc_flat.reshape(bs_pad * L_pad, H)

    inputs = text[:, :steps].T                                  # (steps, b)
    embs = jnp.take(dp["embedding"], inputs, axis=0)            # (steps, b, H)
    embs = jnp.pad(embs, ((0, 0), (0, bs_pad - b), (0, 0))).astype(jnp.bfloat16)

    # block-diagonal 0/1 mask (resident, constant across timesteps)
    col = jax.lax.broadcasted_iota(jnp.int32, (bs_pad, bs_pad * L_pad), 1)
    row = jax.lax.broadcasted_iota(jnp.int32, (bs_pad, bs_pad * L_pad), 0)
    blk_mask = ((col // L_pad) == row).astype(jnp.float32)

    kernel = functools.partial(_decoder_kernel, H=H, L_pad=L_pad)
    logits_all, attnw_all = pl.pallas_call(
        kernel,
        out_shape=(
            jax.ShapeDtypeStruct((steps, bs_pad, O_pad), jnp.float32),
            jax.ShapeDtypeStruct((steps, bs_pad, L_pad), jnp.float32),
        ),
        grid=(steps,),
        in_specs=[
            pl.BlockSpec((1, bs_pad, H), lambda t: (t, 0, 0)),
            pl.BlockSpec((bs_pad * L_pad, H), lambda t: (0, 0)),
            pl.BlockSpec((bs_pad, bs_pad * L_pad), lambda t: (0, 0)),
            pl.BlockSpec((H, L_pad + H), lambda t: (0, 0)),
            pl.BlockSpec((H, L_pad + 3 * H), lambda t: (0, 0)),
            pl.BlockSpec((1, L_pad), lambda t: (0, 0)),
            pl.BlockSpec((H, H), lambda t: (0, 0)),
            pl.BlockSpec((1, H), lambda t: (0, 0)),
            pl.BlockSpec((H, 3 * H), lambda t: (0, 0)),
            pl.BlockSpec((1, 3 * H), lambda t: (0, 0)),
            pl.BlockSpec((1, 3 * H), lambda t: (0, 0)),
            pl.BlockSpec((H, O_pad), lambda t: (0, 0)),
            pl.BlockSpec((1, O_pad), lambda t: (0, 0)),
        ],
        out_specs=(
            pl.BlockSpec((1, bs_pad, O_pad), lambda t: (t, 0, 0)),
            pl.BlockSpec((1, bs_pad, L_pad), lambda t: (t, 0, 0)),
        ),
        scratch_shapes=[pltpu.VMEM((bs_pad, H), jnp.float32)],
        compiler_params=pltpu.CompilerParams(
            dimension_semantics=("arbitrary",), vmem_limit_bytes=_VMEM_LIMIT),
    )(embs, enc_flat, blk_mask,
      dp["w_emb"], dp["w_hid"], dp["b_attn"], dp["w_comb2"], dp["b_comb"],
      dp["w_ih_t"], dp["b_ih"], dp["b_hh"], dp["w_out_t"], dp["b_out"])

    logits = logits_all[:, :b, :O]
    attnw = attnw_all[:, :b, :L]
    targets = text[:, 1:].T                                     # (steps, b)
    loss = sequence_ce_loss(logits, targets)
    return loss, attnw


def sequence_ce_loss(logits, targets):
    """Sum over time of per-step CrossEntropyLoss(ignore_index=0)."""
    lse = jax.nn.logsumexp(logits, axis=-1)
    tgt = jnp.take_along_axis(logits, targets[..., None], axis=-1)[..., 0]
    per = lse - tgt
    mask = (targets != 0).astype(jnp.float32)
    per_step = jnp.sum(per * mask, axis=1) / jnp.maximum(jnp.sum(mask, axis=1), 1.0)
    return jnp.sum(per_step)


# ----------------------------------------------------------------------------
# Encoder glue (channels-last, channel counts padded to >=128, all bf16)
# ----------------------------------------------------------------------------

def basic_block_nhwc(x, p):
    out = conv2d_nhwc(x, p["w1"], p["b1"], 3, 1, relu=True)       # relu(bn1(conv1(x)))
    if "wsc" in p:
        sc = conv2d_nhwc(x, p["wsc"], p["bsc"], 1, 0, relu=False)
    else:
        sc = x
    # bn2(conv2(.)) + shortcut, ReLU — residual add fused into the conv kernel
    return conv2d_nhwc(out, p["w2"], p["b2"], 3, 1, relu=True, residual=sc)


def encoder_forward(x_nhwc, ep):
    y = conv2d_nhwc(x_nhwc, ep["conv0_w"], ep["conv0_b"], 7, 3, relu=True)
    for layer in ep["layers"]:
        if layer == "M":
            y = maxpool3x3_s1_p1(y)
        else:
            y = basic_block_nhwc(y, layer)
    return y


# ----------------------------------------------------------------------------
# new_encode construction (python-structured, static spans)
# ----------------------------------------------------------------------------

def build_new_encode_nhwc(encode_nhwc, attnw_all, text_length, word_idx):
    b, h, w, c = encode_nhwc.shape
    enc32 = encode_nhwc.astype(jnp.float32)
    pieces = []
    for i, _length in enumerate(text_length):
        for (h_idx, t_idx) in word_idx[i]:
            alpha = jnp.sum(attnw_all[h_idx:t_idx + 1, i, :], axis=0)
            amin = jnp.min(alpha)
            amax = jnp.max(alpha)
            aw = (alpha - amin) / jnp.maximum(amax - amin, 1e-6)  # eps guard
            pieces.append(enc32[i] * aw.reshape(h, w, 1))
    new = jnp.stack(pieces, axis=0)
    return jnp.concatenate([enc32, new], axis=0)


# ----------------------------------------------------------------------------
# HWLine_Module forward
# ----------------------------------------------------------------------------

def hwline_forward(image, text_radical, length_radical, word_idx, glyphs, params):
    img_nhwc = jnp.transpose(image, (0, 2, 3, 1)).astype(jnp.bfloat16)
    gly_nhwc = jnp.transpose(glyphs, (0, 2, 3, 1)).astype(jnp.bfloat16)
    B = img_nhwc.shape[0]
    # one encoder pass over image + glyph batches (doubled M, halves call overheads)
    enc_all = encoder_forward(jnp.concatenate([img_nhwc, gly_nhwc], axis=0),
                              params["encoder"])
    encode = enc_all[:B]
    glyph_encode_nhwc = enc_all[B:]
    loss, attnw_all = decoder_forward(encode, text_radical, params["decoder"])
    new_encode_nhwc = build_new_encode_nhwc(encode, attnw_all, length_radical, word_idx)
    new_encode = jnp.transpose(new_encode_nhwc, (0, 3, 1, 2)).astype(jnp.float32)
    glyph_encode = jnp.transpose(glyph_encode_nhwc, (0, 3, 1, 2)).astype(jnp.float32)
    # TODO(synk): `Discriminator` is not defined in the reference source; the
    #             `pred = content_disriminator(new_encode, glyphs)` call cannot
    #             be translated.  Returning its inputs instead.
    return loss, new_encode, glyph_encode


# ----------------------------------------------------------------------------
# Deterministic parameter initialization (per-tap layout, BN folded, pre-padded)
# ----------------------------------------------------------------------------

_BN_SCALE = 1.0 / math.sqrt(1.0 + 1e-5)   # eval BN with fresh running stats


def _pad_c(c):
    return max(128, pl.cdiv(c, 128) * 128)


def _conv_w(key, cin_real, cin_pad, cout_real, cout_pad, ksize, scale=1.0):
    fan_in = cin_real * ksize * ksize
    w = jax.random.normal(key, (ksize * ksize, cin_real, cout_real), jnp.float32)
    w = w * (scale / math.sqrt(fan_in))
    wp = jnp.zeros((ksize * ksize, cin_pad, cout_pad), jnp.float32)
    wp = wp.at[:, :cin_real, :cout_real].set(w)
    return wp.astype(jnp.bfloat16)


def init_encoder_params(key):
    keys = iter(jax.random.split(key, 64))
    ep = {
        "conv0_w": _conv_w(next(keys), 4, 4, 32, _pad_c(32), 7),
        "conv0_b": jnp.zeros((1, _pad_c(32)), jnp.float32),
    }
    # cnn_cfg = [(2,64), 'M', (4,128), 'M', (4,256)], BasicBlocks with folded BN
    plan = [(32, 64), (64, 64), "M",
            (64, 128), (128, 128), (128, 128), (128, 128), "M",
            (128, 256), (256, 256), (256, 256), (256, 256)]
    layers = []
    for item in plan:
        if item == "M":
            layers.append("M")
            continue
        cin, cout = item
        cin_p, cout_p = _pad_c(cin), _pad_c(cout)
        blk = {
            "w1": _conv_w(next(keys), cin, cin_p, cout, cout_p, 3, _BN_SCALE),
            "b1": jnp.zeros((1, cout_p), jnp.float32),
            "w2": _conv_w(next(keys), cout, cout_p, cout, cout_p, 3, _BN_SCALE),
            "b2": jnp.zeros((1, cout_p), jnp.float32),
        }
        if cin != cout:
            blk["wsc"] = _conv_w(next(keys), cin, cin_p, cout, cout_p, 1, _BN_SCALE)
            blk["bsc"] = jnp.zeros((1, cout_p), jnp.float32)
        layers.append(blk)
    ep["layers"] = layers
    return ep


def init_decoder_params(key, hidden_size, output_size, max_length):
    H, O, L = hidden_size, output_size, max_length
    L_pad = max(128, pl.cdiv(L, 128) * 128)
    O_pad = max(128, pl.cdiv(O, 128) * 128)
    keys = iter(jax.random.split(key, 16))

    def lin(k, fan_in, shape):
        return jax.random.normal(k, shape, jnp.float32) * (1.0 / math.sqrt(fan_in))

    # weights stored pre-transposed (in_features, out_features), lane-padded, bf16,
    # and merged so matmuls sharing a LHS run as one wider MXU call.
    w_attn = lin(next(keys), 2 * H, (2 * H, L))                 # (2H, L)
    wa_pad = jnp.zeros((2 * H, L_pad), jnp.float32).at[:, :L].set(w_attn)
    w_comb = lin(next(keys), 2 * H, (2 * H, H))                 # (2H, H)
    w_hh = lin(next(keys), H, (H, 3 * H))
    w_ih = lin(next(keys), H, (H, 3 * H))
    w_out = lin(next(keys), H, (H, O))
    w_out_pad = jnp.zeros((H, O_pad), jnp.float32).at[:, :O].set(w_out)

    w_emb = jnp.concatenate([wa_pad[:H], w_comb[:H]], axis=1)    # (H, L_pad + H)
    w_hid = jnp.concatenate([wa_pad[H:], w_hh], axis=1)          # (H, L_pad + 3H)
    b_attn = jnp.full((1, L_pad), -1e30, jnp.float32).at[:, :L].set(0.0)

    return {
        "embedding": lin(next(keys), H, (O, H)),
        "w_emb": w_emb.astype(jnp.bfloat16),
        "w_hid": w_hid.astype(jnp.bfloat16),
        "b_attn": b_attn,
        "w_comb2": w_comb[H:].astype(jnp.bfloat16),
        "b_comb": jnp.zeros((1, H), jnp.float32),
        "w_ih_t": w_ih.astype(jnp.bfloat16),
        "b_ih": jnp.zeros((1, 3 * H), jnp.float32),
        "b_hh": jnp.zeros((1, 3 * H), jnp.float32),
        "w_out_t": w_out_pad.astype(jnp.bfloat16),
        "b_out": jnp.zeros((1, O_pad), jnp.float32),
        "output_size": O, "max_length": L, "L_pad": L_pad, "O_pad": O_pad,
    }


# ----------------------------------------------------------------------------
# Main
# ----------------------------------------------------------------------------

if __name__ == "__main__":
    B, C_in, Hs, Ws = 2, 4, 8, 8          # small spatial size
    hidden_size = 256                     # must equal encoder output channels
    output_size = 40                      # radical vocab size (synthetic)
    max_length = Hs * Ws                  # bmm requires max_length == h*w of encode
    seq_len = 5

    root = jax.random.PRNGKey(0)
    k_enc, k_dec, k_img, k_gly, k_txt = jax.random.split(root, 5)

    params = {
        "encoder": init_encoder_params(k_enc),
        "decoder": init_decoder_params(k_dec, hidden_size, output_size, max_length),
    }

    image = jax.random.normal(k_img, (B, C_in, Hs, Ws), jnp.float32)
    glyphs = jax.random.normal(k_gly, (B, C_in, Hs, Ws), jnp.float32)
    text_radical = jax.random.randint(k_txt, (B, seq_len), 1, output_size).astype(jnp.int32)
    length_radical = [seq_len - 1, seq_len - 1]           # decoder steps per sample
    word_idx = [[(0, 1), (2, 3)], [(0, 3)]]               # (h_idx, t_idx) spans

    loss, new_encode, glyph_encode = hwline_forward(
        image, text_radical, length_radical, word_idx, glyphs, params)
    jax.block_until_ready((loss, new_encode, glyph_encode))

    assert new_encode.shape == (B + 3, hidden_size, Hs, Ws)
    assert glyph_encode.shape == (B, hidden_size, Hs, Ws)
    print("KERNEL_OK")
</pallas_src>

<mosaic_0001>
module attributes {stable_mosaic.version = 11 : i64} {
  func.func @_conv_kernel(%arg0: i32, %arg1: memref<1x14x14x4xbf16, #tpu.memory_space<vmem>>, %arg2: memref<49x4x128xbf16, #tpu.memory_space<vmem>>, %arg3: memref<1x128xf32, #tpu.memory_space<vmem>>, %arg4: memref<1x8x8x128xbf16, #tpu.memory_space<vmem>>) attributes {dimension_semantics = [#tpu.dimension_semantics<parallel>], iteration_bounds = array<i64: 4>, scalar_prefetch = 0 : i64, scratch_operands = 0 : i64, tpu.core_type = #tpu.core_type<tc>, window_params = [{transform_indices = @transform_0, window_bounds = array<i64: 1, 14, 14, 4>}, {pipeline_mode = #tpu.pipeline_mode<synchronous>, transform_indices = @transform_1, window_bounds = array<i64: 49, 4, 128>}, {pipeline_mode = #tpu.pipeline_mode<synchronous>, transform_indices = @transform_2, window_bounds = array<i64: 1, 128>}, {transform_indices = @transform_3, window_bounds = array<i64: 1, 8, 8, 128>}]} {
    %c0 = arith.constant 0 : index
    %c0_0 = arith.constant 0 : index
    %c0_1 = arith.constant 0 : index
    %c0_2 = arith.constant 0 : index
    %0 = vector.load %arg1[%c0, %c0_0, %c0_1, %c0_2] : memref<1x14x14x4xbf16, #tpu.memory_space<vmem>>, vector<1x14x14x4xbf16>
    %1 = vector.shape_cast %0 : vector<1x14x14x4xbf16> to vector<14x14x4xbf16>
    %cst = arith.constant 0.000000e+00 : f32
    %2 = vector.broadcast %cst : f32 to vector<64x128xf32>
    %3 = vector.extract_strided_slice %1 {offsets = [0, 0, 0], sizes = [8, 8, 4], strides = [1, 1, 1]} : vector<14x14x4xbf16> to vector<8x8x4xbf16>
    %4 = vector.shape_cast %3 : vector<8x8x4xbf16> to vector<64x4xbf16>
    %c0_3 = arith.constant 0 : index
    %c0_4 = arith.constant 0 : index
    %c0_5 = arith.constant 0 : index
    %5 = vector.load %arg2[%c0_3, %c0_4, %c0_5] : memref<49x4x128xbf16, #tpu.memory_space<vmem>>, vector<1x4x128xbf16>
    %6 = vector.shape_cast %5 : vector<1x4x128xbf16> to vector<4x128xbf16>
    %cst_6 = arith.constant dense<0.000000e+00> : vector<64x128xf32>
    %7 = tpu.matmul %4, %6, %cst_6 {dimension_numbers = #tpu.dot_dimension_numbers<[1], [0], [0], [1], [0, 0, 1, 1], [], []>} : vector<64x4xbf16>, vector<4x128xbf16>, vector<64x128xf32> -> vector<64x128xf32>
    %8 = arith.addf %2, %7 : vector<64x128xf32>
    %9 = vector.extract_strided_slice %1 {offsets = [0, 1, 0], sizes = [8, 8, 4], strides = [1, 1, 1]} : vector<14x14x4xbf16> to vector<8x8x4xbf16>
    %10 = vector.shape_cast %9 : vector<8x8x4xbf16> to vector<64x4xbf16>
    %c1 = arith.constant 1 : index
    %c0_7 = arith.constant 0 : index
    %c0_8 = arith.constant 0 : index
    %11 = vector.load %arg2[%c1, %c0_7, %c0_8] : memref<49x4x128xbf16, #tpu.memory_space<vmem>>, vector<1x4x128xbf16>
    %12 = vector.shape_cast %11 : vector<1x4x128xbf16> to vector<4x128xbf16>
    %cst_9 = arith.constant dense<0.000000e+00> : vector<64x128xf32>
    %13 = tpu.matmul %10, %12, %cst_9 {dimension_numbers = #tpu.dot_dimension_numbers<[1], [0], [0], [1], [0, 0, 1, 1], [], []>} : vector<64x4xbf16>, vector<4x128xbf16>, vector<64x128xf32> -> vector<64x128xf32>
    %14 = arith.addf %8, %13 : vector<64x128xf32>
    %15 = vector.extract_strided_slice %1 {offsets = [0, 2, 0], sizes = [8, 8, 4], strides = [1, 1, 1]} : vector<14x14x4xbf16> to vector<8x8x4xbf16>
    %16 = vector.shape_cast %15 : vector<8x8x4xbf16> to vector<64x4xbf16>
    %c2 = arith.constant 2 : index
    %c0_10 = arith.constant 0 : index
    %c0_11 = arith.constant 0 : index
    %17 = vector.load %arg2[%c2, %c0_10, %c0_11] : memref<49x4x128xbf16, #tpu.memory_space<vmem>>, vector<1x4x128xbf16>
    %18 = vector.shape_cast %17 : vector<1x4x128xbf16> to vector<4x128xbf16>
    %cst_12 = arith.constant dense<0.000000e+00> : vector<64x128xf32>
    %19 = tpu.matmul %16, %18, %cst_12 {dimension_numbers = #tpu.dot_dimension_numbers<[1], [0], [0], [1], [0, 0, 1, 1], [], []>} : vector<64x4xbf16>, vector<4x128xbf16>, vector<64x128xf32> -> vector<64x128xf32>
    %20 = arith.addf %14, %19 : vector<64x128xf32>
    %21 = vector.extract_strided_slice %1 {offsets = [0, 3, 0], sizes = [8, 8, 4], strides = [1, 1, 1]} : vector<14x14x4xbf16> to vector<8x8x4xbf16>
    %22 = vector.shape_cast %21 : vector<8x8x4xbf16> to vector<64x4xbf16>
    %c3 = arith.constant 3 : index
    %c0_13 = arith.constant 0 : index
    %c0_14 = arith.constant 0 : index
    %23 = vector.load %arg2[%c3, %c0_13, %c0_14] : memref<49x4x128xbf16, #tpu.memory_space<vmem>>, vector<1x4x128xbf16>
    %24 = vector.shape_cast %23 : vector<1x4x128xbf16> to vector<4x128xbf16>
    %cst_15 = arith.constant dense<0.000000e+00> : vector<64x128xf32>
    %25 = tpu.matmul %22, %24, %cst_15 {dimension_numbers = #tpu.dot_dimension_numbers<[1], [0], [0], [1], [0, 0, 1, 1], [], []>} : vector<64x4xbf16>, vector<4x128xbf16>, vector<64x128xf32> -> vector<64x128xf32>
    %26 = arith.addf %20, %25 : vector<64x128xf32>
    %27 = vector.extract_strided_slice %1 {offsets = [0, 4, 0], sizes = [8, 8, 4], strides = [1, 1, 1]} : vector<14x14x4xbf16> to vector<8x8x4xbf16>
    %28 = vector.shape_cast %27 : vector<8x8x4xbf16> to vector<64x4xbf16>
    %c4 = arith.constant 4 : index
    %c0_16 = arith.constant 0 : index
    %c0_17 = arith.constant 0 : index
    %29 = vector.load %arg2[%c4, %c0_16, %c0_17] : memref<49x4x128xbf16, #tpu.memory_space<vmem>>, vector<1x4x128xbf16>
    %30 = vector.shape_cast %29 : vector<1x4x128xbf16> to vector<4x128xbf16>
    %cst_18 = arith.constant dense<0.000000e+00> : vector<64x128xf32>
    %31 = tpu.matmul %28, %30, %cst_18 {dimension_numbers = #tpu.dot_dimension_numbers<[1], [0], [0], [1], [0, 0, 1, 1], [], []>} : vector<64x4xbf16>, vector<4x128xbf16>, vector<64x128xf32> -> vector<64x128xf32>
    %32 = arith.addf %26, %31 : vector<64x128xf32>
    %33 = vector.extract_strided_slice %1 {offsets = [0, 5, 0], sizes = [8, 8, 4], strides = [1, 1, 1]} : vector<14x14x4xbf16> to vector<8x8x4xbf16>
    %34 = vector.shape_cast %33 : vector<8x8x4xbf16> to vector<64x4xbf16>
    %c5 = arith.constant 5 : index
    %c0_19 = arith.constant 0 : index
    %c0_20 = arith.constant 0 : index
    %35 = vector.load %arg2[%c5, %c0_19, %c0_20] : memref<49x4x128xbf16, #tpu.memory_space<vmem>>, vector<1x4x128xbf16>
    %36 = vector.shape_cast %35 : vector<1x4x128xbf16> to vector<4x128xbf16>
    %cst_21 = arith.constant dense<0.000000e+00> : vector<64x128xf32>
    %37 = tpu.matmul %34, %36, %cst_21 {dimension_numbers = #tpu.dot_dimension_numbers<[1], [0], [0], [1], [0, 0, 1, 1], [], []>} : vector<64x4xbf16>, vector<4x128xbf16>, vector<64x128xf32> -> vector<64x128xf32>
    %38 = arith.addf %32, %37 : vector<64x128xf32>
    %39 = vector.extract_strided_slice %1 {offsets = [0, 6, 0], sizes = [8, 8, 4], strides = [1, 1, 1]} : vector<14x14x4xbf16> to vector<8x8x4xbf16>
    %40 = vector.shape_cast %39 : vector<8x8x4xbf16> to vector<64x4xbf16>
    %c6 = arith.constant 6 : index
    %c0_22 = arith.constant 0 : index
    %c0_23 = arith.constant 0 : index
    %41 = vector.load %arg2[%c6, %c0_22, %c0_23] : memref<49x4x128xbf16, #tpu.memory_space<vmem>>, vector<1x4x128xbf16>
    %42 = vector.shape_cast %41 : vector<1x4x128xbf16> to vector<4x128xbf16>
    %cst_24 = arith.constant dense<0.000000e+00> : vector<64x128xf32>
    %43 = tpu.matmul %40, %42, %cst_24 {dimension_numbers = #tpu.dot_dimension_numbers<[1], [0], [0], [1], [0, 0, 1, 1], [], []>} : vector<64x4xbf16>, vector<4x128xbf16>, vector<64x128xf32> -> vector<64x128xf32>
    %44 = arith.addf %38, %43 : vector<64x128xf32>
    %45 = vector.extract_strided_slice %1 {offsets = [1, 0, 0], sizes = [8, 8, 4], strides = [1, 1, 1]} : vector<14x14x4xbf16> to vector<8x8x4xbf16>
    %46 = vector.shape_cast %45 : vector<8x8x4xbf16> to vector<64x4xbf16>
    %c7 = arith.constant 7 : index
    %c0_25 = arith.constant 0 : index
    %c0_26 = arith.constant 0 : index
    %47 = vector.load %arg2[%c7, %c0_25, %c0_26] : memref<49x4x128xbf16, #tpu.memory_space<vmem>>, vector<1x4x128xbf16>
    %48 = vector.shape_cast %47 : vector<1x4x128xbf16> to vector<4x128xbf16>
    %cst_27 = arith.constant dense<0.000000e+00> : vector<64x128xf32>
    %49 = tpu.matmul %46, %48, %cst_27 {dimension_numbers = #tpu.dot_dimension_numbers<[1], [0], [0], [1], [0, 0, 1, 1], [], []>} : vector<64x4xbf16>, vector<4x128xbf16>, vector<64x128xf32> -> vector<64x128xf32>
    %50 = arith.addf %44, %49 : vector<64x128xf32>
    %51 = vector.extract_strided_slice %1 {offsets = [1, 1, 0], sizes = [8, 8, 4], strides = [1, 1, 1]} : vector<14x14x4xbf16> to vector<8x8x4xbf16>
    %52 = vector.shape_cast %51 : vector<8x8x4xbf16> to vector<64x4xbf16>
    %c8 = arith.constant 8 : index
    %c0_28 = arith.constant 0 : index
    %c0_29 = arith.constant 0 : index
    %53 = vector.load %arg2[%c8, %c0_28, %c0_29] : memref<49x4x128xbf16, #tpu.memory_space<vmem>>, vector<1x4x128xbf16>
    %54 = vector.shape_cast %53 : vector<1x4x128xbf16> to vector<4x128xbf16>
    %cst_30 = arith.constant dense<0.000000e+00> : vector<64x128xf32>
    %55 = tpu.matmul %52, %54, %cst_30 {dimension_numbers = #tpu.dot_dimension_numbers<[1], [0], [0], [1], [0, 0, 1, 1], [], []>} : vector<64x4xbf16>, vector<4x128xbf16>, vector<64x128xf32> -> vector<64x128xf32>
    %56 = arith.addf %50, %55 : vector<64x128xf32>
    %57 = vector.extract_strided_slice %1 {offsets = [1, 2, 0], sizes = [8, 8, 4], strides = [1, 1, 1]} : vector<14x14x4xbf16> to vector<8x8x4xbf16>
    %58 = vector.shape_cast %57 : vector<8x8x4xbf16> to vector<64x4xbf16>
    %c9 = arith.constant 9 : index
    %c0_31 = arith.constant 0 : index
    %c0_32 = arith.constant 0 : index
    %59 = vector.load %arg2[%c9, %c0_31, %c0_32] : memref<49x4x128xbf16, #tpu.memory_space<vmem>>, vector<1x4x128xbf16>
    %60 = vector.shape_cast %59 : vector<1x4x128xbf16> to vector<4x128xbf16>
    %cst_33 = arith.constant dense<0.000000e+00> : vector<64x128xf32>
    %61 = tpu.matmul %58, %60, %cst_33 {dimension_numbers = #tpu.dot_dimension_numbers<[1], [0], [0], [1], [0, 0, 1, 1], [], []>} : vector<64x4xbf16>, vector<4x128xbf16>, vector<64x128xf32> -> vector<64x128xf32>
    %62 = arith.addf %56, %61 : vector<64x128xf32>
    %63 = vector.extract_strided_slice %1 {offsets = [1, 3, 0], sizes = [8, 8, 4], strides = [1, 1, 1]} : vector<14x14x4xbf16> to vector<8x8x4xbf16>
    %64 = vector.shape_cast %63 : vector<8x8x4xbf16> to vector<64x4xbf16>
    %c10 = arith.constant 10 : index
    %c0_34 = arith.constant 0 : index
    %c0_35 = arith.constant 0 : index
    %65 = vector.load %arg2[%c10, %c0_34, %c0_35] : memref<49x4x128xbf16, #tpu.memory_space<vmem>>, vector<1x4x128xbf16>
    %66 = vector.shape_cast %65 : vector<1x4x128xbf16> to vector<4x128xbf16>
    %cst_36 = arith.constant dense<0.000000e+00> : vector<64x128xf32>
    %67 = tpu.matmul %64, %66, %cst_36 {dimension_numbers = #tpu.dot_dimension_numbers<[1], [0], [0], [1], [0, 0, 1, 1], [], []>} : vector<64x4xbf16>, vector<4x128xbf16>, vector<64x128xf32> -> vector<64x128xf32>
    %68 = arith.addf %62, %67 : vector<64x128xf32>
    %69 = vector.extract_strided_slice %1 {offsets = [1, 4, 0], sizes = [8, 8, 4], strides = [1, 1, 1]} : vector<14x14x4xbf16> to vector<8x8x4xbf16>
    %70 = vector.shape_cast %69 : vector<8x8x4xbf16> to vector<64x4xbf16>
    %c11 = arith.constant 11 : index
    %c0_37 = arith.constant 0 : index
    %c0_38 = arith.constant 0 : index
    %71 = vector.load %arg2[%c11, %c0_37, %c0_38] : memref<49x4x128xbf16, #tpu.memory_space<vmem>>, vector<1x4x128xbf16>
    %72 = vector.shape_cast %71 : vector<1x4x128xbf16> to vector<4x128xbf16>
    %cst_39 = arith.constant dense<0.000000e+00> : vector<64x128xf32>
    %73 = tpu.matmul %70, %72, %cst_39 {dimension_numbers = #tpu.dot_dimension_numbers<[1], [0], [0], [1], [0, 0, 1, 1], [], []>} : vector<64x4xbf16>, vector<4x128xbf16>, vector<64x128xf32> -> vector<64x128xf32>
    %74 = arith.addf %68, %73 : vector<64x128xf32>
    %75 = vector.extract_strided_slice %1 {offsets = [1, 5, 0], sizes = [8, 8, 4], strides = [1, 1, 1]} : vector<14x14x4xbf16> to vector<8x8x4xbf16>
    %76 = vector.shape_cast %75 : vector<8x8x4xbf16> to vector<64x4xbf16>
    %c12 = arith.constant 12 : index
    %c0_40 = arith.constant 0 : index
    %c0_41 = arith.constant 0 : index
    %77 = vector.load %arg2[%c12, %c0_40, %c0_41] : memref<49x4x128xbf16, #tpu.memory_space<vmem>>, vector<1x4x128xbf16>
    %78 = vector.shape_cast %77 : vector<1x4x128xbf16> to vector<4x128xbf16>
    %cst_42 = arith.constant dense<0.000000e+00> : vector<64x128xf32>
    %79 = tpu.matmul %76, %78, %cst_42 {dimension_numbers = #tpu.dot_dimension_numbers<[1], [0], [0], [1], [0, 0, 1, 1], [], []>} : vector<64x4xbf16>, vector<4x128xbf16>, vector<64x128xf32> -> vector<64x128xf32>
    %80 = arith.addf %74, %79 : vector<64x128xf32>
    %81 = vector.extract_strided_slice %1 {offsets = [1, 6, 0], sizes = [8, 8, 4], strides = [1, 1, 1]} : vector<14x14x4xbf16> to vector<8x8x4xbf16>
    %82 = vector.shape_cast %81 : vector<8x8x4xbf16> to vector<64x4xbf16>
    %c13 = arith.constant 13 : index
    %c0_43 = arith.constant 0 : index
    %c0_44 = arith.constant 0 : index
    %83 = vector.load %arg2[%c13, %c0_43, %c0_44] : memref<49x4x128xbf16, #tpu.memory_space<vmem>>, vector<1x4x128xbf16>
    %84 = vector.shape_cast %83 : vector<1x4x128xbf16> to vector<4x128xbf16>
    %cst_45 = arith.constant dense<0.000000e+00> : vector<64x128xf32>
    %85 = tpu.matmul %82, %84, %cst_45 {dimension_numbers = #tpu.dot_dimension_numbers<[1], [0], [0], [1], [0, 0, 1, 1], [], []>} : vector<64x4xbf16>, vector<4x128xbf16>, vector<64x128xf32> -> vector<64x128xf32>
    %86 = arith.addf %80, %85 : vector<64x128xf32>
    %87 = vector.extract_strided_slice %1 {offsets = [2, 0, 0], sizes = [8, 8, 4], strides = [1, 1, 1]} : vector<14x14x4xbf16> to vector<8x8x4xbf16>
    %88 = vector.shape_cast %87 : vector<8x8x4xbf16> to vector<64x4xbf16>
    %c14 = arith.constant 14 : index
    %c0_46 = arith.constant 0 : index
    %c0_47 = arith.constant 0 : index
    %89 = vector.load %arg2[%c14, %c0_46, %c0_47] : memref<49x4x128xbf16, #tpu.memory_space<vmem>>, vector<1x4x128xbf16>
    %90 = vector.shape_cast %89 : vector<1x4x128xbf16> to vector<4x128xbf16>
    %cst_48 = arith.constant dense<0.000000e+00> : vector<64x128xf32>
    %91 = tpu.matmul %88, %90, %cst_48 {dimension_numbers = #tpu.dot_dimension_numbers<[1], [0], [0], [1], [0, 0, 1, 1], [], []>} : vector<64x4xbf16>, vector<4x128xbf16>, vector<64x128xf32> -> vector<64x128xf32>
    %92 = arith.addf %86, %91 : vector<64x128xf32>
    %93 = vector.extract_strided_slice %1 {offsets = [2, 1, 0], sizes = [8, 8, 4], strides = [1, 1, 1]} : vector<14x14x4xbf16> to vector<8x8x4xbf16>
    %94 = vector.shape_cast %93 : vector<8x8x4xbf16> to vector<64x4xbf16>
    %c15 = arith.constant 15 : index
    %c0_49 = arith.constant 0 : index
    %c0_50 = arith.constant 0 : index
    %95 = vector.load %arg2[%c15, %c0_49, %c0_50] : memref<49x4x128xbf16, #tpu.memory_space<vmem>>, vector<1x4x128xbf16>
    %96 = vector.shape_cast %95 : vector<1x4x128xbf16> to vector<4x128xbf16>
    %cst_51 = arith.constant dense<0.000000e+00> : vector<64x128xf32>
    %97 = tpu.matmul %94, %96, %cst_51 {dimension_numbers = #tpu.dot_dimension_numbers<[1], [0], [0], [1], [0, 0, 1, 1], [], []>} : vector<64x4xbf16>, vector<4x128xbf16>, vector<64x128xf32> -> vector<64x128xf32>
    %98 = arith.addf %92, %97 : vector<64x128xf32>
    %99 = vector.extract_strided_slice %1 {offsets = [2, 2, 0], sizes = [8, 8, 4], strides = [1, 1, 1]} : vector<14x14x4xbf16> to vector<8x8x4xbf16>
    %100 = vector.shape_cast %99 : vector<8x8x4xbf16> to vector<64x4xbf16>
    %c16 = arith.constant 16 : index
    %c0_52 = arith.constant 0 : index
    %c0_53 = arith.constant 0 : index
    %101 = vector.load %arg2[%c16, %c0_52, %c0_53] : memref<49x4x128xbf16, #tpu.memory_space<vmem>>, vector<1x4x128xbf16>
    %102 = vector.shape_cast %101 : vector<1x4x128xbf16> to vector<4x128xbf16>
    %cst_54 = arith.constant dense<0.000000e+00> : vector<64x128xf32>
    %103 = tpu.matmul %100, %102, %cst_54 {dimension_numbers = #tpu.dot_dimension_numbers<[1], [0], [0], [1], [0, 0, 1, 1], [], []>} : vector<64x4xbf16>, vector<4x128xbf16>, vector<64x128xf32> -> vector<64x128xf32>
    %104 = arith.addf %98, %103 : vector<64x128xf32>
    %105 = vector.extract_strided_slice %1 {offsets = [2, 3, 0], sizes = [8, 8, 4], strides = [1, 1, 1]} : vector<14x14x4xbf16> to vector<8x8x4xbf16>
    %106 = vector.shape_cast %105 : vector<8x8x4xbf16> to vector<64x4xbf16>
    %c17 = arith.constant 17 : index
    %c0_55 = arith.constant 0 : index
    %c0_56 = arith.constant 0 : index
    %107 = vector.load %arg2[%c17, %c0_55, %c0_56] : memref<49x4x128xbf16, #tpu.memory_space<vmem>>, vector<1x4x128xbf16>
    %108 = vector.shape_cast %107 : vector<1x4x128xbf16> to vector<4x128xbf16>
    %cst_57 = arith.constant dense<0.000000e+00> : vector<64x128xf32>
    %109 = tpu.matmul %106, %108, %cst_57 {dimension_numbers = #tpu.dot_dimension_numbers<[1], [0], [0], [1], [0, 0, 1, 1], [], []>} : vector<64x4xbf16>, vector<4x128xbf16>, vector<64x128xf32> -> vector<64x128xf32>
    %110 = arith.addf %104, %109 : vector<64x128xf32>
    %111 = vector.extract_strided_slice %1 {offsets = [2, 4, 0], sizes = [8, 8, 4], strides = [1, 1, 1]} : vector<14x14x4xbf16> to vector<8x8x4xbf16>
    %112 = vector.shape_cast %111 : vector<8x8x4xbf16> to vector<64x4xbf16>
    %c18 = arith.constant 18 : index
    %c0_58 = arith.constant 0 : index
    %c0_59 = arith.constant 0 : index
    %113 = vector.load %arg2[%c18, %c0_58, %c0_59] : memref<49x4x128xbf16, #tpu.memory_space<vmem>>, vector<1x4x128xbf16>
    %114 = vector.shape_cast %113 : vector<1x4x128xbf16> to vector<4x128xbf16>
    %cst_60 = arith.constant dense<0.000000e+00> : vector<64x128xf32>
    %115 = tpu.matmul %112, %114, %cst_60 {dimension_numbers = #tpu.dot_dimension_numbers<[1], [0], [0], [1], [0, 0, 1, 1], [], []>} : vector<64x4xbf16>, vector<4x128xbf16>, vector<64x128xf32> -> vector<64x128xf32>
    %116 = arith.addf %110, %115 : vector<64x128xf32>
    %117 = vector.extract_strided_slice %1 {offsets = [2, 5, 0], sizes = [8, 8, 4], strides = [1, 1, 1]} : vector<14x14x4xbf16> to vector<8x8x4xbf16>
    %118 = vector.shape_cast %117 : vector<8x8x4xbf16> to vector<64x4xbf16>
    %c19 = arith.constant 19 : index
    %c0_61 = arith.constant 0 : index
    %c0_62 = arith.constant 0 : index
    %119 = vector.load %arg2[%c19, %c0_61, %c0_62] : memref<49x4x128xbf16, #tpu.memory_space<vmem>>, vector<1x4x128xbf16>
    %120 = vector.shape_cast %119 : vector<1x4x128xbf16> to vector<4x128xbf16>
    %cst_63 = arith.constant dense<0.000000e+00> : vector<64x128xf32>
    %121 = tpu.matmul %118, %120, %cst_63 {dimension_numbers = #tpu.dot_dimension_numbers<[1], [0], [0], [1], [0, 0, 1, 1], [], []>} : vector<64x4xbf16>, vector<4x128xbf16>, vector<64x128xf32> -> vector<64x128xf32>
    %122 = arith.addf %116, %121 : vector<64x128xf32>
    %123 = vector.extract_strided_slice %1 {offsets = [2, 6, 0], sizes = [8, 8, 4], strides = [1, 1, 1]} : vector<14x14x4xbf16> to vector<8x8x4xbf16>
    %124 = vector.shape_cast %123 : vector<8x8x4xbf16> to vector<64x4xbf16>
    %c20 = arith.constant 20 : index
    %c0_64 = arith.constant 0 : index
    %c0_65 = arith.constant 0 : index
    %125 = vector.load %arg2[%c20, %c0_64, %c0_65] : memref<49x4x128xbf16, #tpu.memory_space<vmem>>, vector<1x4x128xbf16>
    %126 = vector.shape_cast %125 : vector<1x4x128xbf16> to vector<4x128xbf16>
    %cst_66 = arith.constant dense<0.000000e+00> : vector<64x128xf32>
    %127 = tpu.matmul %124, %126, %cst_66 {dimension_numbers = #tpu.dot_dimension_numbers<[1], [0], [0], [1], [0, 0, 1, 1], [], []>} : vector<64x4xbf16>, vector<4x128xbf16>, vector<64x128xf32> -> vector<64x128xf32>
    %128 = arith.addf %122, %127 : vector<64x128xf32>
    %129 = vector.extract_strided_slice %1 {offsets = [3, 0, 0], sizes = [8, 8, 4], strides = [1, 1, 1]} : vector<14x14x4xbf16> to vector<8x8x4xbf16>
    %130 = vector.shape_cast %129 : vector<8x8x4xbf16> to vector<64x4xbf16>
    %c21 = arith.constant 21 : index
    %c0_67 = arith.constant 0 : index
    %c0_68 = arith.constant 0 : index
    %131 = vector.load %arg2[%c21, %c0_67, %c0_68] : memref<49x4x128xbf16, #tpu.memory_space<vmem>>, vector<1x4x128xbf16>
    %132 = vector.shape_cast %131 : vector<1x4x128xbf16> to vector<4x128xbf16>
    %cst_69 = arith.constant dense<0.000000e+00> : vector<64x128xf32>
    %133 = tpu.matmul %130, %132, %cst_69 {dimension_numbers = #tpu.dot_dimension_numbers<[1], [0], [0], [1], [0, 0, 1, 1], [], []>} : vector<64x4xbf16>, vector<4x128xbf16>, vector<64x128xf32> -> vector<64x128xf32>
    %134 = arith.addf %128, %133 : vector<64x128xf32>
    %135 = vector.extract_strided_slice %1 {offsets = [3, 1, 0], sizes = [8, 8, 4], strides = [1, 1, 1]} : vector<14x14x4xbf16> to vector<8x8x4xbf16>
    %136 = vector.shape_cast %135 : vector<8x8x4xbf16> to vector<64x4xbf16>
    %c22 = arith.constant 22 : index
    %c0_70 = arith.constant 0 : index
    %c0_71 = arith.constant 0 : index
    %137 = vector.load %arg2[%c22, %c0_70, %c0_71] : memref<49x4x128xbf16, #tpu.memory_space<vmem>>, vector<1x4x128xbf16>
    %138 = vector.shape_cast %137 : vector<1x4x128xbf16> to vector<4x128xbf16>
    %cst_72 = arith.constant dense<0.000000e+00> : vector<64x128xf32>
    %139 = tpu.matmul %136, %138, %cst_72 {dimension_numbers = #tpu.dot_dimension_numbers<[1], [0], [0], [1], [0, 0, 1, 1], [], []>} : vector<64x4xbf16>, vector<4x128xbf16>, vector<64x128xf32> -> vector<64x128xf32>
    %140 = arith.addf %134, %139 : vector<64x128xf32>
    %141 = vector.extract_strided_slice %1 {offsets = [3, 2, 0], sizes = [8, 8, 4], strides = [1, 1, 1]} : vector<14x14x4xbf16> to vector<8x8x4xbf16>
    %142 = vector.shape_cast %141 : vector<8x8x4xbf16> to vector<64x4xbf16>
    %c23 = arith.constant 23 : index
    %c0_73 = arith.constant 0 : index
    %c0_74 = arith.constant 0 : index
    %143 = vector.load %arg2[%c23, %c0_73, %c0_74] : memref<49x4x128xbf16, #tpu.memory_space<vmem>>, vector<1x4x128xbf16>
    %144 = vector.shape_cast %143 : vector<1x4x128xbf16> to vector<4x128xbf16>
    %cst_75 = arith.constant dense<0.000000e+00> : vector<64x128xf32>
    %145 = tpu.matmul %142, %144, %cst_75 {dimension_numbers = #tpu.dot_dimension_numbers<[1], [0], [0], [1], [0, 0, 1, 1], [], []>} : vector<64x4xbf16>, vector<4x128xbf16>, vector<64x128xf32> -> vector<64x128xf32>
    %146 = arith.addf %140, %145 : vector<64x128xf32>
    %147 = vector.extract_strided_slice %1 {offsets = [3, 3, 0], sizes = [8, 8, 4], strides = [1, 1, 1]} : vector<14x14x4xbf16> to vector<8x8x4xbf16>
    %148 = vector.shape_cast %147 : vector<8x8x4xbf16> to vector<64x4xbf16>
    %c24 = arith.constant 24 : index
    %c0_76 = arith.constant 0 : index
    %c0_77 = arith.constant 0 : index
    %149 = vector.load %arg2[%c24, %c0_76, %c0_77] : memref<49x4x128xbf16, #tpu.memory_space<vmem>>, vector<1x4x128xbf16>
    %150 = vector.shape_cast %149 : vector<1x4x128xbf16> to vector<4x128xbf16>
    %cst_78 = arith.constant dense<0.000000e+00> : vector<64x128xf32>
    %151 = tpu.matmul %148, %150, %cst_78 {dimension_numbers = #tpu.dot_dimension_numbers<[1], [0], [0], [1], [0, 0, 1, 1], [], []>} : vector<64x4xbf16>, vector<4x128xbf16>, vector<64x128xf32> -> vector<64x128xf32>
    %152 = arith.addf %146, %151 : vector<64x128xf32>
    %153 = vector.extract_strided_slice %1 {offsets = [3, 4, 0], sizes = [8, 8, 4], strides = [1, 1, 1]} : vector<14x14x4xbf16> to vector<8x8x4xbf16>
    %154 = vector.shape_cast %153 : vector<8x8x4xbf16> to vector<64x4xbf16>
    %c25 = arith.constant 25 : index
    %c0_79 = arith.constant 0 : index
    %c0_80 = arith.constant 0 : index
    %155 = vector.load %arg2[%c25, %c0_79, %c0_80] : memref<49x4x128xbf16, #tpu.memory_space<vmem>>, vector<1x4x128xbf16>
    %156 = vector.shape_cast %155 : vector<1x4x128xbf16> to vector<4x128xbf16>
    %cst_81 = arith.constant dense<0.000000e+00> : vector<64x128xf32>
    %157 = tpu.matmul %154, %156, %cst_81 {dimension_numbers = #tpu.dot_dimension_numbers<[1], [0], [0], [1], [0, 0, 1, 1], [], []>} : vector<64x4xbf16>, vector<4x128xbf16>, vector<64x128xf32> -> vector<64x128xf32>
    %158 = arith.addf %152, %157 : vector<64x128xf32>
    %159 = vector.extract_strided_slice %1 {offsets = [3, 5, 0], sizes = [8, 8, 4], strides = [1, 1, 1]} : vector<14x14x4xbf16> to vector<8x8x4xbf16>
    %160 = vector.shape_cast %159 : vector<8x8x4xbf16> to vector<64x4xbf16>
    %c26 = arith.constant 26 : index
    %c0_82 = arith.constant 0 : index
    %c0_83 = arith.constant 0 : index
    %161 = vector.load %arg2[%c26, %c0_82, %c0_83] : memref<49x4x128xbf16, #tpu.memory_space<vmem>>, vector<1x4x128xbf16>
    %162 = vector.shape_cast %161 : vector<1x4x128xbf16> to vector<4x128xbf16>
    %cst_84 = arith.constant dense<0.000000e+00> : vector<64x128xf32>
    %163 = tpu.matmul %160, %162, %cst_84 {dimension_numbers = #tpu.dot_dimension_numbers<[1], [0], [0], [1], [0, 0, 1, 1], [], []>} : vector<64x4xbf16>, vector<4x128xbf16>, vector<64x128xf32> -> vector<64x128xf32>
    %164 = arith.addf %158, %163 : vector<64x128xf32>
    %165 = vector.extract_strided_slice %1 {offsets = [3, 6, 0], sizes = [8, 8, 4], strides = [1, 1, 1]} : vector<14x14x4xbf16> to vector<8x8x4xbf16>
    %166 = vector.shape_cast %165 : vector<8x8x4xbf16> to vector<64x4xbf16>
    %c27 = arith.constant 27 : index
    %c0_85 = arith.constant 0 : index
    %c0_86 = arith.constant 0 : index
    %167 = vector.load %arg2[%c27, %c0_85, %c0_86] : memref<49x4x128xbf16, #tpu.memory_space<vmem>>, vector<1x4x128xbf16>
    %168 = vector.shape_cast %167 : vector<1x4x128xbf16> to vector<4x128xbf16>
    %cst_87 = arith.constant dense<0.000000e+00> : vector<64x128xf32>
    %169 = tpu.matmul %166, %168, %cst_87 {dimension_numbers = #tpu.dot_dimension_numbers<[1], [0], [0], [1], [0, 0, 1, 1], [], []>} : vector<64x4xbf16>, vector<4x128xbf16>, vector<64x128xf32> -> vector<64x128xf32>
    %170 = arith.addf %164, %169 : vector<64x128xf32>
    %171 = vector.extract_strided_slice %1 {offsets = [4, 0, 0], sizes = [8, 8, 4], strides = [1, 1, 1]} : vector<14x14x4xbf16> to vector<8x8x4xbf16>
    %172 = vector.shape_cast %171 : vector<8x8x4xbf16> to vector<64x4xbf16>
    %c28 = arith.constant 28 : index
    %c0_88 = arith.constant 0 : index
    %c0_89 = arith.constant 0 : index
    %173 = vector.load %arg2[%c28, %c0_88, %c0_89] : memref<49x4x128xbf16, #tpu.memory_space<vmem>>, vector<1x4x128xbf16>
    %174 = vector.shape_cast %173 : vector<1x4x128xbf16> to vector<4x128xbf16>
    %cst_90 = arith.constant dense<0.000000e+00> : vector<64x128xf32>
    %175 = tpu.matmul %172, %174, %cst_90 {dimension_numbers = #tpu.dot_dimension_numbers<[1], [0], [0], [1], [0, 0, 1, 1], [], []>} : vector<64x4xbf16>, vector<4x128xbf16>, vector<64x128xf32> -> vector<64x128xf32>
    %176 = arith.addf %170, %175 : vector<64x128xf32>
    %177 = vector.extract_strided_slice %1 {offsets = [4, 1, 0], sizes = [8, 8, 4], strides = [1, 1, 1]} : vector<14x14x4xbf16> to vector<8x8x4xbf16>
    %178 = vector.shape_cast %177 : vector<8x8x4xbf16> to vector<64x4xbf16>
    %c29 = arith.constant 29 : index
    %c0_91 = arith.constant 0 : index
    %c0_92 = arith.constant 0 : index
    %179 = vector.load %arg2[%c29, %c0_91, %c0_92] : memref<49x4x128xbf16, #tpu.memory_space<vmem>>, vector<1x4x128xbf16>
    %180 = vector.shape_cast %179 : vector<1x4x128xbf16> to vector<4x128xbf16>
    %cst_93 = arith.constant dense<0.000000e+00> : vector<64x128xf32>
    %181 = tpu.matmul %178, %180, %cst_93 {dimension_numbers = #tpu.dot_dimension_numbers<[1], [0], [0], [1], [0, 0, 1, 1], [], []>} : vector<64x4xbf16>, vector<4x128xbf16>, vector<64x128xf32> -> vector<64x128xf32>
    %182 = arith.addf %176, %181 : vector<64x128xf32>
    %183 = vector.extract_strided_slice %1 {offsets = [4, 2, 0], sizes = [8, 8, 4], strides = [1, 1, 1]} : vector<14x14x4xbf16> to vector<8x8x4xbf16>
    %184 = vector.shape_cast %183 : vector<8x8x4xbf16> to vector<64x4xbf16>
    %c30 = arith.constant 30 : index
    %c0_94 = arith.constant 0 : index
    %c0_95 = arith.constant 0 : index
    %185 = vector.load %arg2[%c30, %c0_94, %c0_95] : memref<49x4x128xbf16, #tpu.memory_space<vmem>>, vector<1x4x128xbf16>
    %186 = vector.shape_cast %185 : vector<1x4x128xbf16> to vector<4x128xbf16>
    %cst_96 = arith.constant dense<0.000000e+00> : vector<64x128xf32>
    %187 = tpu.matmul %184, %186, %cst_96 {dimension_numbers = #tpu.dot_dimension_numbers<[1], [0], [0], [1], [0, 0, 1, 1], [], []>} : vector<64x4xbf16>, vector<4x128xbf16>, vector<64x128xf32> -> vector<64x128xf32>
    %188 = arith.addf %182, %187 : vector<64x128xf32>
    %189 = vector.extract_strided_slice %1 {offsets = [4, 3, 0], sizes = [8, 8, 4], strides = [1, 1, 1]} : vector<14x14x4xbf16> to vector<8x8x4xbf16>
    %190 = vector.shape_cast %189 : vector<8x8x4xbf16> to vector<64x4xbf16>
    %c31 = arith.constant 31 : index
    %c0_97 = arith.constant 0 : index
    %c0_98 = arith.constant 0 : index
    %191 = vector.load %arg2[%c31, %c0_97, %c0_98] : memref<49x4x128xbf16, #tpu.memory_space<vmem>>, vector<1x4x128xbf16>
    %192 = vector.shape_cast %191 : vector<1x4x128xbf16> to vector<4x128xbf16>
    %cst_99 = arith.constant dense<0.000000e+00> : vector<64x128xf32>
    %193 = tpu.matmul %190, %192, %cst_99 {dimension_numbers = #tpu.dot_dimension_numbers<[1], [0], [0], [1], [0, 0, 1, 1], [], []>} : vector<64x4xbf16>, vector<4x128xbf16>, vector<64x128xf32> -> vector<64x128xf32>
    %194 = arith.addf %188, %193 : vector<64x128xf32>
    %195 = vector.extract_strided_slice %1 {offsets = [4, 4, 0], sizes = [8, 8, 4], strides = [1, 1, 1]} : vector<14x14x4xbf16> to vector<8x8x4xbf16>
    %196 = vector.shape_cast %195 : vector<8x8x4xbf16> to vector<64x4xbf16>
    %c32 = arith.constant 32 : index
    %c0_100 = arith.constant 0 : index
    %c0_101 = arith.constant 0 : index
    %197 = vector.load %arg2[%c32, %c0_100, %c0_101] : memref<49x4x128xbf16, #tpu.memory_space<vmem>>, vector<1x4x128xbf16>
    %198 = vector.shape_cast %197 : vector<1x4x128xbf16> to vector<4x128xbf16>
    %cst_102 = arith.constant dense<0.000000e+00> : vector<64x128xf32>
    %199 = tpu.matmul %196, %198, %cst_102 {dimension_numbers = #tpu.dot_dimension_numbers<[1], [0], [0], [1], [0, 0, 1, 1], [], []>} : vector<64x4xbf16>, vector<4x128xbf16>, vector<64x128xf32> -> vector<64x128xf32>
    %200 = arith.addf %194, %199 : vector<64x128xf32>
    %201 = vector.extract_strided_slice %1 {offsets = [4, 5, 0], sizes = [8, 8, 4], strides = [1, 1, 1]} : vector<14x14x4xbf16> to vector<8x8x4xbf16>
    %202 = vector.shape_cast %201 : vector<8x8x4xbf16> to vector<64x4xbf16>
    %c33 = arith.constant 33 : index
    %c0_103 = arith.constant 0 : index
    %c0_104 = arith.constant 0 : index
    %203 = vector.load %arg2[%c33, %c0_103, %c0_104] : memref<49x4x128xbf16, #tpu.memory_space<vmem>>, vector<1x4x128xbf16>
    %204 = vector.shape_cast %203 : vector<1x4x128xbf16> to vector<4x128xbf16>
    %cst_105 = arith.constant dense<0.000000e+00> : vector<64x128xf32>
    %205 = tpu.matmul %202, %204, %cst_105 {dimension_numbers = #tpu.dot_dimension_numbers<[1], [0], [0], [1], [0, 0, 1, 1], [], []>} : vector<64x4xbf16>, vector<4x128xbf16>, vector<64x128xf32> -> vector<64x128xf32>
    %206 = arith.addf %200, %205 : vector<64x128xf32>
    %207 = vector.extract_strided_slice %1 {offsets = [4, 6, 0], sizes = [8, 8, 4], strides = [1, 1, 1]} : vector<14x14x4xbf16> to vector<8x8x4xbf16>
    %208 = vector.shape_cast %207 : vector<8x8x4xbf16> to vector<64x4xbf16>
    %c34 = arith.constant 34 : index
    %c0_106 = arith.constant 0 : index
    %c0_107 = arith.constant 0 : index
    %209 = vector.load %arg2[%c34, %c0_106, %c0_107] : memref<49x4x128xbf16, #tpu.memory_space<vmem>>, vector<1x4x128xbf16>
    %210 = vector.shape_cast %209 : vector<1x4x128xbf16> to vector<4x128xbf16>
    %cst_108 = arith.constant dense<0.000000e+00> : vector<64x128xf32>
    %211 = tpu.matmul %208, %210, %cst_108 {dimension_numbers = #tpu.dot_dimension_numbers<[1], [0], [0], [1], [0, 0, 1, 1], [], []>} : vector<64x4xbf16>, vector<4x128xbf16>, vector<64x128xf32> -> vector<64x128xf32>
    %212 = arith.addf %206, %211 : vector<64x128xf32>
    %213 = vector.extract_strided_slice %1 {offsets = [5, 0, 0], sizes = [8, 8, 4], strides = [1, 1, 1]} : vector<14x14x4xbf16> to vector<8x8x4xbf16>
    %214 = vector.shape_cast %213 : vector<8x8x4xbf16> to vector<64x4xbf16>
    %c35 = arith.constant 35 : index
    %c0_109 = arith.constant 0 : index
    %c0_110 = arith.constant 0 : index
    %215 = vector.load %arg2[%c35, %c0_109, %c0_110] : memref<49x4x128xbf16, #tpu.memory_space<vmem>>, vector<1x4x128xbf16>
    %216 = vector.shape_cast %215 : vector<1x4x128xbf16> to vector<4x128xbf16>
    %cst_111 = arith.constant dense<0.000000e+00> : vector<64x128xf32>
    %217 = tpu.matmul %214, %216, %cst_111 {dimension_numbers = #tpu.dot_dimension_numbers<[1], [0], [0], [1], [0, 0, 1, 1], [], []>} : vector<64x4xbf16>, vector<4x128xbf16>, vector<64x128xf32> -> vector<64x128xf32>
    %218 = arith.addf %212, %217 : vector<64x128xf32>
    %219 = vector.extract_strided_slice %1 {offsets = [5, 1, 0], sizes = [8, 8, 4], strides = [1, 1, 1]} : vector<14x14x4xbf16> to vector<8x8x4xbf16>
    %220 = vector.shape_cast %219 : vector<8x8x4xbf16> to vector<64x4xbf16>
    %c36 = arith.constant 36 : index
    %c0_112 = arith.constant 0 : index
    %c0_113 = arith.constant 0 : index
    %221 = vector.load %arg2[%c36, %c0_112, %c0_113] : memref<49x4x128xbf16, #tpu.memory_space<vmem>>, vector<1x4x128xbf16>
    %222 = vector.shape_cast %221 : vector<1x4x128xbf16> to vector<4x128xbf16>
    %cst_114 = arith.constant dense<0.000000e+00> : vector<64x128xf32>
    %223 = tpu.matmul %220, %222, %cst_114 {dimension_numbers = #tpu.dot_dimension_numbers<[1], [0], [0], [1], [0, 0, 1, 1], [], []>} : vector<64x4xbf16>, vector<4x128xbf16>, vector<64x128xf32> -> vector<64x128xf32>
    %224 = arith.addf %218, %223 : vector<64x128xf32>
    %225 = vector.extract_strided_slice %1 {offsets = [5, 2, 0], sizes = [8, 8, 4], strides = [1, 1, 1]} : vector<14x14x4xbf16> to vector<8x8x4xbf16>
    %226 = vector.shape_cast %225 : vector<8x8x4xbf16> to vector<64x4xbf16>
    %c37 = arith.constant 37 : index
    %c0_115 = arith.constant 0 : index
    %c0_116 = arith.constant 0 : index
    %227 = vector.load %arg2[%c37, %c0_115, %c0_116] : memref<49x4x128xbf16, #tpu.memory_space<vmem>>, vector<1x4x128xbf16>
    %228 = vector.shape_cast %227 : vector<1x4x128xbf16> to vector<4x128xbf16>
    %cst_117 = arith.constant dense<0.000000e+00> : vector<64x128xf32>
    %229 = tpu.matmul %226, %228, %cst_117 {dimension_numbers = #tpu.dot_dimension_numbers<[1], [0], [0], [1], [0, 0, 1, 1], [], []>} : vector<64x4xbf16>, vector<4x128xbf16>, vector<64x128xf32> -> vector<64x128xf32>
    %230 = arith.addf %224, %229 : vector<64x128xf32>
    %231 = vector.extract_strided_slice %1 {offsets = [5, 3, 0], sizes = [8, 8, 4], strides = [1, 1, 1]} : vector<14x14x4xbf16> to vector<8x8x4xbf16>
    %232 = vector.shape_cast %231 : vector<8x8x4xbf16> to vector<64x4xbf16>
    %c38 = arith.constant 38 : index
    %c0_118 = arith.constant 0 : index
    %c0_119 = arith.constant 0 : index
    %233 = vector.load %arg2[%c38, %c0_118, %c0_119] : memref<49x4x128xbf16, #tpu.memory_space<vmem>>, vector<1x4x128xbf16>
    %234 = vector.shape_cast %233 : vector<1x4x128xbf16> to vector<4x128xbf16>
    %cst_120 = arith.constant dense<0.000000e+00> : vector<64x128xf32>
    %235 = tpu.matmul %232, %234, %cst_120 {dimension_numbers = #tpu.dot_dimension_numbers<[1], [0], [0], [1], [0, 0, 1, 1], [], []>} : vector<64x4xbf16>, vector<4x128xbf16>, vector<64x128xf32> -> vector<64x128xf32>
    %236 = arith.addf %230, %235 : vector<64x128xf32>
    %237 = vector.extract_strided_slice %1 {offsets = [5, 4, 0], sizes = [8, 8, 4], strides = [1, 1, 1]} : vector<14x14x4xbf16> to vector<8x8x4xbf16>
    %238 = vector.shape_cast %237 : vector<8x8x4xbf16> to vector<64x4xbf16>
    %c39 = arith.constant 39 : index
    %c0_121 = arith.constant 0 : index
    %c0_122 = arith.constant 0 : index
    %239 = vector.load %arg2[%c39, %c0_121, %c0_122] : memref<49x4x128xbf16, #tpu.memory_space<vmem>>, vector<1x4x128xbf16>
    %240 = vector.shape_cast %239 : vector<1x4x128xbf16> to vector<4x128xbf16>
    %cst_123 = arith.constant dense<0.000000e+00> : vector<64x128xf32>
    %241 = tpu.matmul %238, %240, %cst_123 {dimension_numbers = #tpu.dot_dimension_numbers<[1], [0], [0], [1], [0, 0, 1, 1], [], []>} : vector<64x4xbf16>, vector<4x128xbf16>, vector<64x128xf32> -> vector<64x128xf32>
    %242 = arith.addf %236, %241 : vector<64x128xf32>
    %243 = vector.extract_strided_slice %1 {offsets = [5, 5, 0], sizes = [8, 8, 4], strides = [1, 1, 1]} : vector<14x14x4xbf16> to vector<8x8x4xbf16>
    %244 = vector.shape_cast %243 : vector<8x8x4xbf16> to vector<64x4xbf16>
    %c40 = arith.constant 40 : index
    %c0_124 = arith.constant 0 : index
    %c0_125 = arith.constant 0 : index
    %245 = vector.load %arg2[%c40, %c0_124, %c0_125] : memref<49x4x128xbf16, #tpu.memory_space<vmem>>, vector<1x4x128xbf16>
    %246 = vector.shape_cast %245 : vector<1x4x128xbf16> to vector<4x128xbf16>
    %cst_126 = arith.constant dense<0.000000e+00> : vector<64x128xf32>
    %247 = tpu.matmul %244, %246, %cst_126 {dimension_numbers = #tpu.dot_dimension_numbers<[1], [0], [0], [1], [0, 0, 1, 1], [], []>} : vector<64x4xbf16>, vector<4x128xbf16>, vector<64x128xf32> -> vector<64x128xf32>
    %248 = arith.addf %242, %247 : vector<64x128xf32>
    %249 = vector.extract_strided_slice %1 {offsets = [5, 6, 0], sizes = [8, 8, 4], strides = [1, 1, 1]} : vector<14x14x4xbf16> to vector<8x8x4xbf16>
    %250 = vector.shape_cast %249 : vector<8x8x4xbf16> to vector<64x4xbf16>
    %c41 = arith.constant 41 : index
    %c0_127 = arith.constant 0 : index
    %c0_128 = arith.constant 0 : index
    %251 = vector.load %arg2[%c41, %c0_127, %c0_128] : memref<49x4x128xbf16, #tpu.memory_space<vmem>>, vector<1x4x128xbf16>
    %252 = vector.shape_cast %251 : vector<1x4x128xbf16> to vector<4x128xbf16>
    %cst_129 = arith.constant dense<0.000000e+00> : vector<64x128xf32>
    %253 = tpu.matmul %250, %252, %cst_129 {dimension_numbers = #tpu.dot_dimension_numbers<[1], [0], [0], [1], [0, 0, 1, 1], [], []>} : vector<64x4xbf16>, vector<4x128xbf16>, vector<64x128xf32> -> vector<64x128xf32>
    %254 = arith.addf %248, %253 : vector<64x128xf32>
    %255 = vector.extract_strided_slice %1 {offsets = [6, 0, 0], sizes = [8, 8, 4], strides = [1, 1, 1]} : vector<14x14x4xbf16> to vector<8x8x4xbf16>
    %256 = vector.shape_cast %255 : vector<8x8x4xbf16> to vector<64x4xbf16>
    %c42 = arith.constant 42 : index
    %c0_130 = arith.constant 0 : index
    %c0_131 = arith.constant 0 : index
    %257 = vector.load %arg2[%c42, %c0_130, %c0_131] : memref<49x4x128xbf16, #tpu.memory_space<vmem>>, vector<1x4x128xbf16>
    %258 = vector.shape_cast %257 : vector<1x4x128xbf16> to vector<4x128xbf16>
    %cst_132 = arith.constant dense<0.000000e+00> : vector<64x128xf32>
    %259 = tpu.matmul %256, %258, %cst_132 {dimension_numbers = #tpu.dot_dimension_numbers<[1], [0], [0], [1], [0, 0, 1, 1], [], []>} : vector<64x4xbf16>, vector<4x128xbf16>, vector<64x128xf32> -> vector<64x128xf32>
    %260 = arith.addf %254, %259 : vector<64x128xf32>
    %261 = vector.extract_strided_slice %1 {offsets = [6, 1, 0], sizes = [8, 8, 4], strides = [1, 1, 1]} : vector<14x14x4xbf16> to vector<8x8x4xbf16>
    %262 = vector.shape_cast %261 : vector<8x8x4xbf16> to vector<64x4xbf16>
    %c43 = arith.constant 43 : index
    %c0_133 = arith.constant 0 : index
    %c0_134 = arith.constant 0 : index
    %263 = vector.load %arg2[%c43, %c0_133, %c0_134] : memref<49x4x128xbf16, #tpu.memory_space<vmem>>, vector<1x4x128xbf16>
    %264 = vector.shape_cast %263 : vector<1x4x128xbf16> to vector<4x128xbf16>
    %cst_135 = arith.constant dense<0.000000e+00> : vector<64x128xf32>
    %265 = tpu.matmul %262, %264, %cst_135 {dimension_numbers = #tpu.dot_dimension_numbers<[1], [0], [0], [1], [0, 0, 1, 1], [], []>} : vector<64x4xbf16>, vector<4x128xbf16>, vector<64x128xf32> -> vector<64x128xf32>
    %266 = arith.addf %260, %265 : vector<64x128xf32>
    %267 = vector.extract_strided_slice %1 {offsets = [6, 2, 0], sizes = [8, 8, 4], strides = [1, 1, 1]} : vector<14x14x4xbf16> to vector<8x8x4xbf16>
    %268 = vector.shape_cast %267 : vector<8x8x4xbf16> to vector<64x4xbf16>
    %c44 = arith.constant 44 : index
    %c0_136 = arith.constant 0 : index
    %c0_137 = arith.constant 0 : index
    %269 = vector.load %arg2[%c44, %c0_136, %c0_137] : memref<49x4x128xbf16, #tpu.memory_space<vmem>>, vector<1x4x128xbf16>
    %270 = vector.shape_cast %269 : vector<1x4x128xbf16> to vector<4x128xbf16>
    %cst_138 = arith.constant dense<0.000000e+00> : vector<64x128xf32>
    %271 = tpu.matmul %268, %270, %cst_138 {dimension_numbers = #tpu.dot_dimension_numbers<[1], [0], [0], [1], [0, 0, 1, 1], [], []>} : vector<64x4xbf16>, vector<4x128xbf16>, vector<64x128xf32> -> vector<64x128xf32>
    %272 = arith.addf %266, %271 : vector<64x128xf32>
    %273 = vector.extract_strided_slice %1 {offsets = [6, 3, 0], sizes = [8, 8, 4], strides = [1, 1, 1]} : vector<14x14x4xbf16> to vector<8x8x4xbf16>
    %274 = vector.shape_cast %273 : vector<8x8x4xbf16> to vector<64x4xbf16>
    %c45 = arith.constant 45 : index
    %c0_139 = arith.constant 0 : index
    %c0_140 = arith.constant 0 : index
    %275 = vector.load %arg2[%c45, %c0_139, %c0_140] : memref<49x4x128xbf16, #tpu.memory_space<vmem>>, vector<1x4x128xbf16>
    %276 = vector.shape_cast %275 : vector<1x4x128xbf16> to vector<4x128xbf16>
    %cst_141 = arith.constant dense<0.000000e+00> : vector<64x128xf32>
    %277 = tpu.matmul %274, %276, %cst_141 {dimension_numbers = #tpu.dot_dimension_numbers<[1], [0], [0], [1], [0, 0, 1, 1], [], []>} : vector<64x4xbf16>, vector<4x128xbf16>, vector<64x128xf32> -> vector<64x128xf32>
    %278 = arith.addf %272, %277 : vector<64x128xf32>
    %279 = vector.extract_strided_slice %1 {offsets = [6, 4, 0], sizes = [8, 8, 4], strides = [1, 1, 1]} : vector<14x14x4xbf16> to vector<8x8x4xbf16>
    %280 = vector.shape_cast %279 : vector<8x8x4xbf16> to vector<64x4xbf16>
    %c46 = arith.constant 46 : index
    %c0_142 = arith.constant 0 : index
    %c0_143 = arith.constant 0 : index
    %281 = vector.load %arg2[%c46, %c0_142, %c0_143] : memref<49x4x128xbf16, #tpu.memory_space<vmem>>, vector<1x4x128xbf16>
    %282 = vector.shape_cast %281 : vector<1x4x128xbf16> to vector<4x128xbf16>
    %cst_144 = arith.constant dense<0.000000e+00> : vector<64x128xf32>
    %283 = tpu.matmul %280, %282, %cst_144 {dimension_numbers = #tpu.dot_dimension_numbers<[1], [0], [0], [1], [0, 0, 1, 1], [], []>} : vector<64x4xbf16>, vector<4x128xbf16>, vector<64x128xf32> -> vector<64x128xf32>
    %284 = arith.addf %278, %283 : vector<64x128xf32>
    %285 = vector.extract_strided_slice %1 {offsets = [6, 5, 0], sizes = [8, 8, 4], strides = [1, 1, 1]} : vector<14x14x4xbf16> to vector<8x8x4xbf16>
    %286 = vector.shape_cast %285 : vector<8x8x4xbf16> to vector<64x4xbf16>
    %c47 = arith.constant 47 : index
    %c0_145 = arith.constant 0 : index
    %c0_146 = arith.constant 0 : index
    %287 = vector.load %arg2[%c47, %c0_145, %c0_146] : memref<49x4x128xbf16, #tpu.memory_space<vmem>>, vector<1x4x128xbf16>
    %288 = vector.shape_cast %287 : vector<1x4x128xbf16> to vector<4x128xbf16>
    %cst_147 = arith.constant dense<0.000000e+00> : vector<64x128xf32>
    %289 = tpu.matmul %286, %288, %cst_147 {dimension_numbers = #tpu.dot_dimension_numbers<[1], [0], [0], [1], [0, 0, 1, 1], [], []>} : vector<64x4xbf16>, vector<4x128xbf16>, vector<64x128xf32> -> vector<64x128xf32>
    %290 = arith.addf %284, %289 : vector<64x128xf32>
    %291 = vector.extract_strided_slice %1 {offsets = [6, 6, 0], sizes = [8, 8, 4], strides = [1, 1, 1]} : vector<14x14x4xbf16> to vector<8x8x4xbf16>
    %292 = vector.shape_cast %291 : vector<8x8x4xbf16> to vector<64x4xbf16>
    %c48 = arith.constant 48 : index
    %c0_148 = arith.constant 0 : index
    %c0_149 = arith.constant 0 : index
    %293 = vector.load %arg2[%c48, %c0_148, %c0_149] : memref<49x4x128xbf16, #tpu.memory_space<vmem>>, vector<1x4x128xbf16>
    %294 = vector.shape_cast %293 : vector<1x4x128xbf16> to vector<4x128xbf16>
    %cst_150 = arith.constant dense<0.000000e+00> : vector<64x128xf32>
    %295 = tpu.matmul %292, %294, %cst_150 {dimension_numbers = #tpu.dot_dimension_numbers<[1], [0], [0], [1], [0, 0, 1, 1], [], []>} : vector<64x4xbf16>, vector<4x128xbf16>, vector<64x128xf32> -> vector<64x128xf32>
    %296 = arith.addf %290, %295 : vector<64x128xf32>
    %c0_151 = arith.constant 0 : index
    %c0_152 = arith.constant 0 : index
    %297 = vector.load %arg3[%c0_151, %c0_152] : memref<1x128xf32, #tpu.memory_space<vmem>>, vector<1x128xf32>
    %298 = vector.broadcast %297 : vector<1x128xf32> to vector<64x128xf32>
    %299 = arith.addf %296, %298 : vector<64x128xf32>
    %cst_153 = arith.constant 0.000000e+00 : f32
    %300 = vector.broadcast %cst_153 : f32 to vector<64x128xf32>
    %301 = arith.maximumf %299, %300 : vector<64x128xf32>
    %302 = vector.shape_cast %301 : vector<64x128xf32> to vector<8x8x128xf32>
    %303 = arith.truncf %302 : vector<8x8x128xf32> to vector<8x8x128xbf16>
    %c0_154 = arith.constant 0 : index
    %c0_155 = arith.constant 0 : index
    %c0_156 = arith.constant 0 : index
    %c0_157 = arith.constant 0 : index
    %304 = vector.load %arg4[%c0_154, %c0_155, %c0_156, %c0_157] : memref<1x8x8x128xbf16, #tpu.memory_space<vmem>>, vector<1x8x8x128xbf16>
    %305 = vector.shape_cast %304 : vector<1x8x8x128xbf16> to vector<8x8x128xbf16>
    %306 = vector.shape_cast %303 : vector<8x8x128xbf16> to vector<1x8x8x128xbf16>
    tpu.vector_store %arg4[%c0_154, %c0_155, %c0_156, %c0_157], %306 {strides = array<i32>} : memref<1x8x8x128xbf16, #tpu.memory_space<vmem>>, vector<1x8x8x128xbf16>,
    return
  }
  func.func @transform_0(%arg0: i32) -> (i32, i32, i32, i32) {
    %c0_i32 = arith.constant 0 : i32
    %c0_i32_0 = arith.constant 0 : i32
    %c0_i32_1 = arith.constant 0 : i32
    %c0_i32_2 = arith.constant 0 : i32
    return %arg0, %c0_i32, %c0_i32_0, %c0_i32_1 : i32, i32, i32, i32
  }
  func.func @transform_1(%arg0: i32) -> (i32, i32, i32) {
    %c0_i32 = arith.constant 0 : i32
    %c0_i32_0 = arith.constant 0 : i32
    %c0_i32_1 = arith.constant 0 : i32
    %c0_i32_2 = arith.constant 0 : i32
    return %c0_i32, %c0_i32_0, %c0_i32_1 : i32, i32, i32
  }
  func.func @transform_2(%arg0: i32) -> (i32, i32) {
    %c0_i32 = arith.constant 0 : i32
    %c0_i32_0 = arith.constant 0 : i32
    %c0_i32_1 = arith.constant 0 : i32
    return %c0_i32, %c0_i32_0 : i32, i32
  }
  func.func @transform_3(%arg0: i32) -> (i32, i32, i32, i32) {
    %c0_i32 = arith.constant 0 : i32
    %c0_i32_0 = arith.constant 0 : i32
    %c0_i32_1 = arith.constant 0 : i32
    %c0_i32_2 = arith.constant 0 : i32
    return %arg0, %c0_i32, %c0_i32_0, %c0_i32_1 : i32, i32, i32, i32
  }
}

</mosaic_0001>

<llo_original>
// kernel: tpu_custom_call.1
$region0: #{tpu_custom_call.1}
  #allocation0 [shape = 'u32[]', space=smem, size = 0x4, offset = 0x4, fixed_abs, tag = 'smem constant byte address 0x4 - core index']
  #allocation1 [shape = 'u32[144,128]{1,0:T(1,128)}', space=vmem, size = 0x12000, scoped, tag = 'internal scratch']
  %s0 = inlined_call_operand.vmem [shape: bf16[4,14,14,4], index: 0, kind: input, shape index: {}]
  %s1 = inlined_call_operand.vmem [shape: bf16[49,4,128], index: 1, kind: input, shape index: {}]
  %s2 = inlined_call_operand.vmem [shape: f32[1,128], index: 2, kind: input, shape index: {}]
  %s3 = inlined_call_operand.hbm [shape: bf16[4,8,8,128], index: 3, kind: output, shape index: {}]
  %s4 = sld [smem:[#allocation0]]
  $region45: #{tpu_custom_call.1} parent=0
    _
  %s6 = ssub.s32 1, %s4
  %s7 = scalar_select 0, %s6, %s4
  $region1: #{tpu_custom_call.1} parent=0
    #allocation2 [shape = 'u8[32768]{0}', space=vmem, size = 0x8000, scoped, tag = 'output window, operand 0']
    #allocation3 [shape = 's32[2]{0}', space=sflag, size = 0x8, scoped, tag = 'scoped memory for tpu_custom_call.1']
    %8 = vsyncpa [#allocation3], 0
    %s9 = scalar_lea.sflag [#allocation3], 1
    %10 = vsyncpa %s9, 0
    loop: start=0, step=1, limit=6
    $region2: #{tpu_custom_call.1} parent=1 // loop_pre_header
      _
    $region3: #{tpu_custom_call.1} parent=1 // loop_header
      %s12 = sphi 0, %s16
      %p13 = scmp.ge.s32.totalorder %s12, 6
      %s22 = sphi 0, %s24
      %s25 = sphi 0, %s22
      %s26 = sphi 0, %s25
      %s42 = sphi 0, %s26
      %s46 = sphi 0, %s46
      %s48 = sphi 0, %s46
      %s49 = sphi 0, %s48
      %s63 = sphi 0, %s49
      %s67 = sphi 0, %s67
      %s69 = sphi 0, %s67
      %s70 = sphi 0, %s69
      %s84 = sphi 0, %s70
      %s90 = sphi 0, %s92
      %s93 = sphi 0, %s90
      %s94 = sphi 0, %s93
      %s110 = sphi 0, %s94
    $region4: #{tpu_custom_call.1} parent=1 // loop_header_branch
      %15 = sbr.rel (%p13) target = $region8
    $region5: #{tpu_custom_call.1} parent=1 // loop_body
      %s17 = ssub.s32 %s12, 1
      %s18 = ssub.s32 %s12, 2
      %s19 = sadd.s32 %s12, 1
      %s20 = ssub.s32 %s12, %s19
      %p21 = scmp.eq.s32.totalorder %s20, 0
      %s23 = sadd.s32 %s22, 1
      %s24 = scalar_select %p21, %s22, %s23
      %p27 = pneg %p21
      %p28 = scmp.eq.s32.totalorder %s12, 3
      %p29 = por %p27, %p28
      %p30 = scmp.ne.s32.totalorder %s22, %s25
      %p31 = scmp.eq.s32.totalorder %s12, 0
      %p32 = por %p30, %p31
      %p33 = scmp.ne.s32.totalorder %s22, %s25
      %p34 = scmp.eq.s32.totalorder %s17, 3
      %p35 = por %p33, %p34
      %p36 = scmp.ne.s32.totalorder %s25, %s26
      %p37 = scmp.eq.s32.totalorder %s17, 0
      %p38 = por %p36, %p37
      %p39 = scmp.ne.s32.totalorder %s25, %s26
      %p40 = scmp.eq.s32.totalorder %s18, 3
      %p41 = por %p39, %p40
      %p43 = scmp.ne.s32.totalorder %s26, %s42
      %p44 = scmp.eq.s32.totalorder %s18, 0
      %p45 = por %p43, %p44
      %s47 = sadd.s32 %s46, 1
      %p50 = scmp.eq.s32.totalorder %s12, 3
      %p51 = scmp.ne.s32.totalorder %s46, %s48
      %p52 = scmp.eq.s32.totalorder %s12, 0
      %p53 = por %p51, %p52
      %p54 = scmp.ne.s32.totalorder %s46, %s48
      %p55 = scmp.eq.s32.totalorder %s17, 3
      %p56 = por %p54, %p55
      %p57 = scmp.ne.s32.totalorder %s48, %s49
      %p58 = scmp.eq.s32.totalorder %s17, 0
      %p59 = por %p57, %p58
      %p60 = scmp.ne.s32.totalorder %s48, %s49
      %p61 = scmp.eq.s32.totalorder %s18, 3
      %p62 = por %p60, %p61
      %p64 = scmp.ne.s32.totalorder %s49, %s63
      %p65 = scmp.eq.s32.totalorder %s18, 0
      %p66 = por %p64, %p65
      %s68 = sadd.s32 %s67, 1
      %p71 = scmp.eq.s32.totalorder %s12, 3
      %p72 = scmp.ne.s32.totalorder %s67, %s69
      %p73 = scmp.eq.s32.totalorder %s12, 0
      %p74 = por %p72, %p73
      %p75 = scmp.ne.s32.totalorder %s67, %s69
      %p76 = scmp.eq.s32.totalorder %s17, 3
      %p77 = por %p75, %p76
      %p78 = scmp.ne.s32.totalorder %s69, %s70
      %p79 = scmp.eq.s32.totalorder %s17, 0
      %p80 = por %p78, %p79
      %p81 = scmp.ne.s32.totalorder %s69, %s70
      %p82 = scmp.eq.s32.totalorder %s18, 3
      %p83 = por %p81, %p82
      %p85 = scmp.ne.s32.totalorder %s70, %s84
      %p86 = scmp.eq.s32.totalorder %s18, 0
      %p87 = por %p85, %p86
      %s88 = ssub.s32 %s12, %s19
      %p89 = scmp.eq.s32.totalorder %s88, 0
      %s91 = sadd.s32 %s90, 1
      %s92 = scalar_select %p89, %s90, %s91
      %p95 = pneg %p89
      %p96 = scmp.eq.s32.totalorder %s12, 3
      %p97 = por %p95, %p96
      %p98 = scmp.ne.s32.totalorder %s90, %s93
      %p99 = scmp.eq.s32.totalorder %s12, 0
      %p100 = por %p98, %p99
      %p101 = scmp.ne.s32.totalorder %s90, %s93
      %p102 = scmp.eq.s32.totalorder %s17, 3
      %p103 = por %p101, %p102
      %p104 = scmp.ne.s32.totalorder %s93, %s94
      %p105 = scmp.eq.s32.totalorder %s17, 0
      %p106 = por %p104, %p105
      %p107 = scmp.ne.s32.totalorder %s93, %s94
      %p108 = scmp.eq.s32.totalorder %s18, 3
      %p109 = por %p107, %p108
      %p111 = scmp.ne.s32.totalorder %s94, %s110
      %p112 = scmp.eq.s32.totalorder %s18, 0
      %p113 = por %p111, %p112
      %p114 = scmp.le.s32.totalorder 1, %s12
      %p115 = scmp.lt.s32.totalorder %s12, 5
      %p116 = pnand %p114, %p115
      %p117 = pneg %p116
      // Predicated region
      $region9: #{tpu_custom_call.1} parent=5 // pred_check
        _
      $region10: #{tpu_custom_call.1} parent=5 // pred_check_branch
        %119 = sbr.rel (%p116) target = $region12
      $region11: #{tpu_custom_call.1} parent=5 // pred_region
        %s120 = ssub.s32 %s12, 1
        // Predicated region
        $region13: #{tpu_custom_call.1} parent=11 // pred_check
          %p121 = pneg %p59
        $region14: #{tpu_custom_call.1} parent=11 // pred_check_branch
          %123 = sbr.rel (%p121) target = $region16
        $region15: #{tpu_custom_call.1} parent=11 // pred_region
          _
        $region16: #{tpu_custom_call.1} parent=11 // pred_fallthru
          _
        // Predicated region
        $region17: #{tpu_custom_call.1} parent=11 // pred_check
          %p124 = pneg %p80
        $region18: #{tpu_custom_call.1} parent=11 // pred_check_branch
          %126 = sbr.rel (%p124) target = $region20
        $region19: #{tpu_custom_call.1} parent=11 // pred_region
          _
        $region20: #{tpu_custom_call.1} parent=11 // pred_fallthru
          _
      $region12: #{tpu_custom_call.1} parent=5 // pred_fallthru
        _
      %p127 = scmp.lt.s32.totalorder %s12, 4
      // Predicated region
      $region21: #{tpu_custom_call.1} parent=5 // pred_check
        %p128 = pneg %p127
      $region22: #{tpu_custom_call.1} parent=5 // pred_check_branch
        %130 = sbr.rel (%p128) target = $region24
      $region23: #{tpu_custom_call.1} parent=5 // pred_region
        // Predicated region
        $region25: #{tpu_custom_call.1} parent=23 // pred_check
          %p131 = pneg %p32
        $region26: #{tpu_custom_call.1} parent=23 // pred_check_branch
          %133 = sbr.rel (%p131) target = $region28
        $region27: #{tpu_custom_call.1} parent=23 // pred_region
          %p134 = scmp.lt.s32.totalorder %s12, 3
          %s135 = scalar_select %p134, %s12, 3
          %s136 = smul.addr %s135, 28
          %s137 = smul.addr %s136, 4
          %s138 = scalar_lea.vmem %s0, %s137
        $region28: #{tpu_custom_call.1} parent=23 // pred_fallthru
          _
      $region24: #{tpu_custom_call.1} parent=5 // pred_fallthru
        _
      %p139 = scmp.le.s32.totalorder 1, %s12
      %p140 = scmp.lt.s32.totalorder %s12, 5
      %p141 = pnand %p139, %p140
      %p142 = pneg %p141
      // Predicated region
      $region29: #{tpu_custom_call.1} parent=5 // pred_check
        _
      $region30: #{tpu_custom_call.1} parent=5 // pred_check_branch
        %144 = sbr.rel (%p141) target = $region32
      $region31: #{tpu_custom_call.1} parent=5 // pred_region
        %s145 = ssub.s32 %s12, 1
        %p146 = scmp.lt.s32.totalorder %s17, 3
        %s147 = scalar_select %p146, %s17, 3
        %s148 = smul.addr %s147, 28
        %s149 = smul.addr %s148, 4
        %s150 = scalar_lea.vmem %s0, %s149
        %p151 = pneg %p38
        %p152 = pneg %p35
        %p153 = pneg %p59
        %p154 = pneg %p56
        %p155 = pneg %p80
        %p156 = pneg %p77
        %p157 = pneg %p106
        %p158 = pneg %p103
        %s159 = sand.u32 %s93, 1
        %s160 = scalar_lea.sflag [#allocation3], %s159
        %s161 = sand.u32 %s93, 1
        %s162 = smul.addr %s161, 32
        %s163 = scalar_lea.vmem [#allocation2], %s162
        %p164 = scmp.lt.s32.totalorder %s17, 3
        %s165 = scalar_select %p164, %s17, 3
        %s166 = smul.addr %s165, 28
        %s167 = smul.addr %s166, 4
        %s168 = scalar_lea.vmem %s0, %s167
        %v170 = vld [vmem:[%s168] sm:$0xf]
        %v171 = vld [vmem:[%s168 + $0x4] sm:$0x7]
        %v172 = vld [vmem:[%s168 + $0x8] sm:$0xf]
        %v173 = vld [vmem:[%s168 + $0xc] sm:$0x7]
        %v174 = vld [vmem:[%s168 + $0x10] sm:$0xf]
        %v175 = vld [vmem:[%s168 + $0x14] sm:$0x7]
        %v176 = vld [vmem:[%s168 + $0x18] sm:$0xf]
        %v177 = vld [vmem:[%s168 + $0x1c] sm:$0x7]
        %v178 = vld [vmem:[%s168 + $0x20] sm:$0xf]
        %v179 = vld [vmem:[%s168 + $0x24] sm:$0x7]
        %v180 = vld [vmem:[%s168 + $0x28] sm:$0xf]
        %v181 = vld [vmem:[%s168 + $0x2c] sm:$0x7]
        %v182 = vld [vmem:[%s168 + $0x30] sm:$0xf]
        %v183 = vld [vmem:[%s168 + $0x34] sm:$0x7]
        %v184 = vld [vmem:[%s168 + $0x38] sm:$0xf]
        %v185 = vld [vmem:[%s168 + $0x3c] sm:$0x7]
        %v186 = vld [vmem:[%s168 + $0x40] sm:$0xf]
        %v187 = vld [vmem:[%s168 + $0x44] sm:$0x7]
        %v188 = vld [vmem:[%s168 + $0x48] sm:$0xf]
        %v189 = vld [vmem:[%s168 + $0x4c] sm:$0x7]
        %v190 = vld [vmem:[%s168 + $0x50] sm:$0xf]
        %v191 = vld [vmem:[%s168 + $0x54] sm:$0x7]
        %v192 = vld [vmem:[%s168 + $0x58] sm:$0xf]
        %v193 = vld [vmem:[%s168 + $0x5c] sm:$0x7]
        %v194 = vld [vmem:[%s168 + $0x60] sm:$0xf]
        %v195 = vld [vmem:[%s168 + $0x64] sm:$0x7]
        %v196 = vld [vmem:[%s168 + $0x68] sm:$0xf]
        %v197 = vld [vmem:[%s168 + $0x6c] sm:$0x7]
        %v198 = vld [vmem:[%s1] sm:$0x3]
        %vm199 = vsmask.f32 3328
        %vm200 = vsmask.f32 7440
        %vm201 = vmor %vm199, %vm200
        %v203 = vshrl.u32 %v170, 16
        %v205 = vrot.slane %v203, 4
        %v206 = vshll.u32 %v170, 16
        %v208 = vrot.slane %v206, 5
        %v209 = vor.u32 %v205, %v208
        %v210 = vrot.slane %v209, 4
        %v212 = vshll.u32 %v171, 16
        %v214 = vrot.slane %v212, 5
        %v215 = vsel %vm201, %v210, %v214
        %v217 = vshrl.u32 %v172, 16
        %v219 = vrot.slane %v217, 4
        %v220 = vshll.u32 %v172, 16
        %v222 = vrot.slane %v220, 5
        %v223 = vor.u32 %v219, %v222
        %v224 = vrot.slane %v223, 4
        %v226 = vshll.u32 %v173, 16
        %v228 = vrot.slane %v226, 5
        %v229 = vsel %vm201, %v224, %v228
        %v231 = vshrl.u32 %v174, 16
        %v233 = vrot.slane %v231, 4
        %v234 = vshll.u32 %v174, 16
        %v236 = vrot.slane %v234, 5
        %v237 = vor.u32 %v233, %v236
        %v238 = vrot.slane %v237, 4
        %v240 = vshll.u32 %v175, 16
        %v242 = vrot.slane %v240, 5
        %v243 = vsel %vm201, %v238, %v242
        %v245 = vshrl.u32 %v176, 16
        %v247 = vrot.slane %v245, 4
        %v248 = vshll.u32 %v176, 16
        %v250 = vrot.slane %v248, 5
        %v251 = vor.u32 %v247, %v250
        %v252 = vrot.slane %v251, 4
        %v254 = vshll.u32 %v177, 16
        %v256 = vrot.slane %v254, 5
        %v257 = vsel %vm201, %v252, %v256
        %v259 = vshrl.u32 %v178, 16
        %v261 = vrot.slane %v259, 4
        %v262 = vshll.u32 %v178, 16
        %v264 = vrot.slane %v262, 5
        %v265 = vor.u32 %v261, %v264
        %v266 = vrot.slane %v265, 4
        %v268 = vshll.u32 %v179, 16
        %v270 = vrot.slane %v268, 5
        %v271 = vsel %vm201, %v266, %v270
        %v273 = vshrl.u32 %v180, 16
        %v275 = vrot.slane %v273, 4
        %v276 = vshll.u32 %v180, 16
        %v278 = vrot.slane %v276, 5
        %v279 = vor.u32 %v275, %v278
        %v280 = vrot.slane %v279, 4
        %v282 = vshll.u32 %v181, 16
        %v284 = vrot.slane %v282, 5
        %v285 = vsel %vm201, %v280, %v284
        %v287 = vshrl.u32 %v182, 16
        %v289 = vrot.slane %v287, 4
        %v290 = vshll.u32 %v182, 16
        %v292 = vrot.slane %v290, 5
        %v293 = vor.u32 %v289, %v292
        %v294 = vrot.slane %v293, 4
        %v296 = vshll.u32 %v183, 16
        %v298 = vrot.slane %v296, 5
        %v299 = vsel %vm201, %v294, %v298
        %v301 = vshrl.u32 %v184, 16
        %v303 = vrot.slane %v301, 4
        %v304 = vshll.u32 %v184, 16
        %v306 = vrot.slane %v304, 5
        %v307 = vor.u32 %v303, %v306
        %v308 = vrot.slane %v307, 4
        %v310 = vshll.u32 %v185, 16
        %v312 = vrot.slane %v310, 5
        %v313 = vsel %vm201, %v308, %v312
        %s314 = scalar_lea.vmem %s1, 2
        %v315 = vld [vmem:[%s314] sm:$0x3]
        %v316 = vunpack.c.l.b16 %v215
        %v317 = vunpack.c.l.b16 %v229
        %v318 = vunpack.c.l.b16 %v243
        %v319 = vunpack.c.l.b16 %v257
        %v320 = vunpack.c.l.b16 %v271
        %v321 = vunpack.c.l.b16 %v285
        %v322 = vunpack.c.l.b16 %v299
        %v323 = vunpack.c.l.b16 %v313
        %v324 = vpack.c.b16 %v317, %v316
        %v325 = vpack.c.b16 %v319, %v318
        %v326 = vpack.c.b16 %v321, %v320
        %v327 = vpack.c.b16 %v323, %v322
        %vm328 = vcmask 31744
        %v330 = vsel %vm328, %v324, 0
        %v333 = vsel %vm328, %v325, 0
        %v336 = vsel %vm328, %v326, 0
        %v339 = vsel %vm328, %v327, 0
        %vm341 = vcmask 1041408
        %v343 = vsel %vm341, %v315, 0
        %345 = vmatprep.subr.bf16.mxu0 0
        %346 = vmatpush1.bf16.msra.mxu0 0
        %347 = vmatprep.subr.bf16.mxu0 0
        %348 = vmatpush1.bf16.msra.mxu0 0
        %349 = vmatprep.subr.bf16.mxu0 0
        %350 = vmatpush1.bf16.msra.mxu0 0
        %351 = vmatprep.subr.bf16.mxu0 0
        %352 = vmatpush1.bf16.msra.mxu0 0
        %353 = vmatprep.subr.bf16.mxu0 0
        %354 = vmatpush1.bf16.msra.mxu0 0
        %355 = vmatprep.subr.bf16.mxu0 0
        %356 = vmatpush1.bf16.msra.mxu0 0
        %357 = vmatprep.subr.bf16.mxu0 0
        %358 = vmatpush1.bf16.msra.mxu0 0
        %359 = vmatprep.subr.bf16.mxu0 0
        %360 = vmatpush1.bf16.msra.mxu0 %v343
        %361 = vmatprep.subr.bf16.mxu0 0
        %362 = vmatpush2.bf16.msra.mxu0 0
        %363 = vmatprep.subr.bf16.mxu0 0
        %364 = vmatpush2.bf16.msra.mxu0 0
        %365 = vmatprep.subr.bf16.mxu0 0
        %366 = vmatpush2.bf16.msra.mxu0 0
        %367 = vmatprep.subr.bf16.mxu0 0
        %368 = vmatpush2.bf16.msra.mxu0 0
        %369 = vmatprep.subr.bf16.mxu0 0
        %370 = vmatpush2.bf16.msra.mxu0 0
        %371 = vmatprep.subr.bf16.mxu0 0
        %372 = vmatpush2.bf16.msra.mxu0 0
        %373 = vmatprep.subr.bf16.mxu0 0
        %374 = vmatpush2.bf16.msra.mxu0 0
        %375 = vmatprep.subr.bf16.mxu0 0
        %376 = vmatpush2.bf16.msra.mxu0 0
        %377 = vmatprep.mubr.bf16.mxu0 0
        %378 = vmatmul.mubr.bf16.gmra.mxu0 %v330
        %v379 = vpop.f32.mrf.mxu0
        %v380 = vadd.f32 0.0, %v379
        %v381 = vpop.f32.mrf.mxu0
        %v382 = vpop.f32.mrf.mxu0
        %v383 = vadd.f32 0.0, %v382
        %v384 = vpop.f32.mrf.mxu0
        %385 = vmatprep.mubr.bf16.mxu0 0
        %386 = vmatmul.mubr.bf16.gmra.mxu0 %v333
        %v387 = vpop.f32.mrf.mxu0
        %v388 = vadd.f32 0.0, %v387
        %v389 = vpop.f32.mrf.mxu0
        %v390 = vpop.f32.mrf.mxu0
        %v391 = vadd.f32 0.0, %v390
        %v392 = vpop.f32.mrf.mxu0
        %393 = vmatprep.mubr.bf16.mxu0 0
        %394 = vmatmul.mubr.bf16.gmra.mxu0 %v336
        %v395 = vpop.f32.mrf.mxu0
        %v396 = vadd.f32 0.0, %v395
        %v397 = vpop.f32.mrf.mxu0
        %v398 = vpop.f32.mrf.mxu0
        %v399 = vadd.f32 0.0, %v398
        %v400 = vpop.f32.mrf.mxu0
        %401 = vmatprep.mubr.bf16.mxu0 0
        %402 = vmatmul.mubr.bf16.gmra.mxu0 %v339
        %v403 = vpop.f32.mrf.mxu0
        %v404 = vadd.f32 0.0, %v403
        %v405 = vpop.f32.mrf.mxu0
        %v406 = vpop.f32.mrf.mxu0
        %v407 = vadd.f32 0.0, %v406
        %v408 = vpop.f32.mrf.mxu0
        %409 = vdwg.mxu0
        %v418 = vunpack.c.l.b16 %v170
        %v419 = vunpack.c.l.b16 %v172
        %v420 = vunpack.c.l.b16 %v174
        %v421 = vunpack.c.l.b16 %v176
        %v422 = vunpack.c.l.b16 %v178
        %v423 = vunpack.c.l.b16 %v180
        %v424 = vunpack.c.l.b16 %v182
        %v425 = vunpack.c.l.b16 %v184
        %v426 = vpack.c.b16 %v419, %v418
        %v427 = vpack.c.b16 %v421, %v420
        %v428 = vpack.c.b16 %v423, %v422
        %v429 = vpack.c.b16 %v425, %v424
        %v431 = vsel %vm328, %v426, 0
        %v434 = vsel %vm328, %v427, 0
        %v437 = vsel %vm328, %v428, 0
        %v440 = vsel %vm328, %v429, 0
        %v443 = vsel %vm341, %v198, 0
        %445 = vmatprep.subr.bf16.mxu0 0
        %446 = vmatpush1.bf16.msra.mxu0 0
        %447 = vmatprep.subr.bf16.mxu0 0
        %448 = vmatpush1.bf16.msra.mxu0 0
        %449 = vmatprep.subr.bf16.mxu0 0
        %450 = vmatpush1.bf16.msra.mxu0 0
        %451 = vmatprep.subr.bf16.mxu0 0
        %452 = vmatpush1.bf16.msra.mxu0 0
        %453 = vmatprep.subr.bf16.mxu0 0
        %454 = vmatpush1.bf16.msra.mxu0 0
        %455 = vmatprep.subr.bf16.mxu0 0
        %456 = vmatpush1.bf16.msra.mxu0 0
        %457 = vmatprep.subr.bf16.mxu0 0
        %458 = vmatpush1.bf16.msra.mxu0 0
        %459 = vmatprep.subr.bf16.mxu0 0
        %460 = vmatpush1.bf16.msra.mxu0 %v443
        %461 = vmatprep.subr.bf16.mxu0 0
        %462 = vmatpush2.bf16.msra.mxu0 0
        %463 = vmatprep.subr.bf16.mxu0 0
        %464 = vmatpush2.bf16.msra.mxu0 0
        %465 = vmatprep.subr.bf16.mxu0 0
        %466 = vmatpush2.bf16.msra.mxu0 0
        %467 = vmatprep.subr.bf16.mxu0 0
        %468 = vmatpush2.bf16.msra.mxu0 0
        %469 = vmatprep.subr.bf16.mxu0 0
        %470 = vmatpush2.bf16.msra.mxu0 0
        %471 = vmatprep.subr.bf16.mxu0 0
        %472 = vmatpush2.bf16.msra.mxu0 0
        %473 = vmatprep.subr.bf16.mxu0 0
        %474 = vmatpush2.bf16.msra.mxu0 0
        %475 = vmatprep.subr.bf16.mxu0 0
        %476 = vmatpush2.bf16.msra.mxu0 0
        %477 = vmatprep.mubr.bf16.mxu0 0
        %478 = vmatmul.mubr.bf16.gmra.mxu0 %v431
        %v479 = vpop.f32.mrf.mxu0
        %v480 = vadd.f32 %v380, %v479
        %v481 = vpop.f32.mrf.mxu0
        %v482 = vpop.f32.mrf.mxu0
        %v483 = vadd.f32 %v383, %v482
        %v484 = vpop.f32.mrf.mxu0
        %485 = vmatprep.mubr.bf16.mxu0 0
        %486 = vmatmul.mubr.bf16.gmra.mxu0 %v434
        %v487 = vpop.f32.mrf.mxu0
        %v488 = vadd.f32 %v388, %v487
        %v489 = vpop.f32.mrf.mxu0
        %v490 = vpop.f32.mrf.mxu0
        %v491 = vadd.f32 %v391, %v490
        %v492 = vpop.f32.mrf.mxu0
        %493 = vmatprep.mubr.bf16.mxu0 0
        %494 = vmatmul.mubr.bf16.gmra.mxu0 %v437
        %v495 = vpop.f32.mrf.mxu0
        %v496 = vadd.f32 %v396, %v495
        %v497 = vpop.f32.mrf.mxu0
        %v498 = vpop.f32.mrf.mxu0
        %v499 = vadd.f32 %v399, %v498
        %v500 = vpop.f32.mrf.mxu0
        %501 = vmatprep.mubr.bf16.mxu0 0
        %502 = vmatmul.mubr.bf16.gmra.mxu0 %v440
        %v503 = vpop.f32.mrf.mxu0
        %v504 = vadd.f32 %v404, %v503
        %v505 = vpop.f32.mrf.mxu0
        %v506 = vpop.f32.mrf.mxu0
        %v507 = vadd.f32 %v407, %v506
        %v508 = vpop.f32.mrf.mxu0
        %509 = vdwg.mxu0
        %vm518 = vcmask 1042432
        %vm519 = vcmask 1046532
        %vm520 = vmor %vm518, %vm519
        %v521 = vrot.slane %v170, 5
        %v522 = vrot.slane %v521, 4
        %v523 = vrot.slane %v171, 5
        %v524 = vsel %vm520, %v522, %v523
        %v525 = vrot.slane %v172, 5
        %v526 = vrot.slane %v525, 4
        %v527 = vrot.slane %v173, 5
        %v528 = vsel %vm520, %v526, %v527
        %v529 = vrot.slane %v174, 5
        %v530 = vrot.slane %v529, 4
        %v531 = vrot.slane %v175, 5
        %v532 = vsel %vm520, %v530, %v531
        %v533 = vrot.slane %v176, 5
        %v534 = vrot.slane %v533, 4
        %v535 = vrot.slane %v177, 5
        %v536 = vsel %vm520, %v534, %v535
        %v537 = vrot.slane %v178, 5
        %v538 = vrot.slane %v537, 4
        %v539 = vrot.slane %v179, 5
        %v540 = vsel %vm520, %v538, %v539
        %v541 = vrot.slane %v180, 5
        %v542 = vrot.slane %v541, 4
        %v543 = vrot.slane %v181, 5
        %v544 = vsel %vm520, %v542, %v543
        %v545 = vrot.slane %v182, 5
        %v546 = vrot.slane %v545, 4
        %v547 = vrot.slane %v183, 5
        %v548 = vsel %vm520, %v546, %v547
        %v549 = vrot.slane %v184, 5
        %v550 = vrot.slane %v549, 4
        %v551 = vrot.slane %v185, 5
        %v552 = vsel %vm520, %v550, %v551
        %s553 = scalar_lea.vmem %s1, 4
        %v554 = vld [vmem:[%s553] sm:$0x3]
        %v555 = vunpack.c.l.b16 %v524
        %v556 = vunpack.c.l.b16 %v528
        %v557 = vunpack.c.l.b16 %v532
        %v558 = vunpack.c.l.b16 %v536
        %v559 = vunpack.c.l.b16 %v540
        %v560 = vunpack.c.l.b16 %v544
        %v561 = vunpack.c.l.b16 %v548
        %v562 = vunpack.c.l.b16 %v552
        %v563 = vpack.c.b16 %v556, %v555
        %v564 = vpack.c.b16 %v558, %v557
        %v565 = vpack.c.b16 %v560, %v559
        %v566 = vpack.c.b16 %v562, %v561
        %v568 = vsel %vm328, %v563, 0
        %v571 = vsel %vm328, %v564, 0
        %v574 = vsel %vm328, %v565, 0
        %v577 = vsel %vm328, %v566, 0
        %v580 = vsel %vm341, %v554, 0
        %582 = vmatprep.subr.bf16.mxu0 0
        %583 = vmatpush1.bf16.msra.mxu0 0
        %584 = vmatprep.subr.bf16.mxu0 0
        %585 = vmatpush1.bf16.msra.mxu0 0
        %586 = vmatprep.subr.bf16.mxu0 0
        %587 = vmatpush1.bf16.msra.mxu0 0
        %588 = vmatprep.subr.bf16.mxu0 0
        %589 = vmatpush1.bf16.msra.mxu0 0
        %590 = vmatprep.subr.bf16.mxu0 0
        %591 = vmatpush1.bf16.msra.mxu0 0
        %592 = vmatprep.subr.bf16.mxu0 0
        %593 = vmatpush1.bf16.msra.mxu0 0
        %594 = vmatprep.subr.bf16.mxu0 0
        %595 = vmatpush1.bf16.msra.mxu0 0
        %596 = vmatprep.subr.bf16.mxu0 0
        %597 = vmatpush1.bf16.msra.mxu0 %v580
        %598 = vmatprep.subr.bf16.mxu0 0
        %599 = vmatpush2.bf16.msra.mxu0 0
        %600 = vmatprep.subr.bf16.mxu0 0
        %601 = vmatpush2.bf16.msra.mxu0 0
        %602 = vmatprep.subr.bf16.mxu0 0
        %603 = vmatpush2.bf16.msra.mxu0 0
        %604 = vmatprep.subr.bf16.mxu0 0
        %605 = vmatpush2.bf16.msra.mxu0 0
        %606 = vmatprep.subr.bf16.mxu0 0
        %607 = vmatpush2.bf16.msra.mxu0 0
        %608 = vmatprep.subr.bf16.mxu0 0
        %609 = vmatpush2.bf16.msra.mxu0 0
        %610 = vmatprep.subr.bf16.mxu0 0
        %611 = vmatpush2.bf16.msra.mxu0 0
        %612 = vmatprep.subr.bf16.mxu0 0
        %613 = vmatpush2.bf16.msra.mxu0 0
        %614 = vmatprep.mubr.bf16.mxu0 0
        %615 = vmatmul.mubr.bf16.gmra.mxu0 %v568
        %v616 = vpop.f32.mrf.mxu0
        %v617 = vadd.f32 0.0, %v616
        %v618 = vpop.f32.mrf.mxu0
        %v619 = vpop.f32.mrf.mxu0
        %v620 = vadd.f32 0.0, %v619
        %v621 = vpop.f32.mrf.mxu0
        %622 = vmatprep.mubr.bf16.mxu0 0
        %623 = vmatmul.mubr.bf16.gmra.mxu0 %v571
        %v624 = vpop.f32.mrf.mxu0
        %v625 = vadd.f32 0.0, %v624
        %v626 = vpop.f32.mrf.mxu0
        %v627 = vpop.f32.mrf.mxu0
        %v628 = vadd.f32 0.0, %v627
        %v629 = vpop.f32.mrf.mxu0
        %630 = vmatprep.mubr.bf16.mxu0 0
        %631 = vmatmul.mubr.bf16.gmra.mxu0 %v574
        %v632 = vpop.f32.mrf.mxu0
        %v633 = vadd.f32 0.0, %v632
        %v634 = vpop.f32.mrf.mxu0
        %v635 = vpop.f32.mrf.mxu0
        %v636 = vadd.f32 0.0, %v635
        %v637 = vpop.f32.mrf.mxu0
        %638 = vmatprep.mubr.bf16.mxu0 0
        %639 = vmatmul.mubr.bf16.gmra.mxu0 %v577
        %v640 = vpop.f32.mrf.mxu0
        %v641 = vadd.f32 0.0, %v640
        %v642 = vpop.f32.mrf.mxu0
        %v643 = vpop.f32.mrf.mxu0
        %v644 = vadd.f32 0.0, %v643
        %v645 = vpop.f32.mrf.mxu0
        %646 = vdwg.mxu0
        %v647 = vadd.f32 %v480, %v617
        %v648 = vadd.f32 %v483, %v620
        %v649 = vadd.f32 %v488, %v625
        %v650 = vadd.f32 %v491, %v628
        %v651 = vadd.f32 %v496, %v633
        %v652 = vadd.f32 %v499, %v636
        %v653 = vadd.f32 %v504, %v641
        %v654 = vadd.f32 %v507, %v644
        %vm655 = vsmask.f32 2304
        %vm656 = vsmask.f32 6416
        %vm657 = vmor %vm655, %vm656
        %v658 = vrot.slane %v203, 5
        %v659 = vrot.slane %v206, 6
        %v660 = vor.u32 %v658, %v659
        %v661 = vrot.slane %v660, 4
        %v662 = vshrl.u32 %v171, 16
        %v664 = vrot.slane %v662, 5
        %v665 = vrot.slane %v212, 6
        %v666 = vor.u32 %v664, %v665
        %v667 = vsel %vm657, %v661, %v666
        %v668 = vrot.slane %v217, 5
        %v669 = vrot.slane %v220, 6
        %v670 = vor.u32 %v668, %v669
        %v671 = vrot.slane %v670, 4
        %v672 = vshrl.u32 %v173, 16
        %v674 = vrot.slane %v672, 5
        %v675 = vrot.slane %v226, 6
        %v676 = vor.u32 %v674, %v675
        %v677 = vsel %vm657, %v671, %v676
        %v678 = vrot.slane %v231, 5
        %v679 = vrot.slane %v234, 6
        %v680 = vor.u32 %v678, %v679
        %v681 = vrot.slane %v680, 4
        %v682 = vshrl.u32 %v175, 16
        %v684 = vrot.slane %v682, 5
        %v685 = vrot.slane %v240, 6
        %v686 = vor.u32 %v684, %v685
        %v687 = vsel %vm657, %v681, %v686
        %v688 = vrot.slane %v245, 5
        %v689 = vrot.slane %v248, 6
        %v690 = vor.u32 %v688, %v689
        %v691 = vrot.slane %v690, 4
        %v692 = vshrl.u32 %v177, 16
        %v694 = vrot.slane %v692, 5
        %v695 = vrot.slane %v254, 6
        %v696 = vor.u32 %v694, %v695
        %v697 = vsel %vm657, %v691, %v696
        %v698 = vrot.slane %v259, 5
        %v699 = vrot.slane %v262, 6
        %v700 = vor.u32 %v698, %v699
        %v701 = vrot.slane %v700, 4
        %v702 = vshrl.u32 %v179, 16
        %v704 = vrot.slane %v702, 5
        %v705 = vrot.slane %v268, 6
        %v706 = vor.u32 %v704, %v705
        %v707 = vsel %vm657, %v701, %v706
        %v708 = vrot.slane %v273, 5
        %v709 = vrot.slane %v276, 6
        %v710 = vor.u32 %v708, %v709
        %v711 = vrot.slane %v710, 4
        %v712 = vshrl.u32 %v181, 16
        %v714 = vrot.slane %v712, 5
        %v715 = vrot.slane %v282, 6
        %v716 = vor.u32 %v714, %v715
        %v717 = vsel %vm657, %v711, %v716
        %v718 = vrot.slane %v287, 5
        %v719 = vrot.slane %v290, 6
        %v720 = vor.u32 %v718, %v719
        %v721 = vrot.slane %v720, 4
        %v722 = vshrl.u32 %v183, 16
        %v724 = vrot.slane %v722, 5
        %v725 = vrot.slane %v296, 6
        %v726 = vor.u32 %v724, %v725
        %v727 = vsel %vm657, %v721, %v726
        %v728 = vrot.slane %v301, 5
        %v729 = vrot.slane %v304, 6
        %v730 = vor.u32 %v728, %v729
        %v731 = vrot.slane %v730, 4
        %v732 = vshrl.u32 %v185, 16
        %v734 = vrot.slane %v732, 5
        %v735 = vrot.slane %v310, 6
        %v736 = vor.u32 %v734, %v735
        %v737 = vsel %vm657, %v731, %v736
        %s738 = scalar_lea.vmem %s1, 6
        %v739 = vld [vmem:[%s738] sm:$0x3]
        %v740 = vunpack.c.l.b16 %v667
        %v741 = vunpack.c.l.b16 %v677
        %v742 = vunpack.c.l.b16 %v687
        %v743 = vunpack.c.l.b16 %v697
        %v744 = vunpack.c.l.b16 %v707
        %v745 = vunpack.c.l.b16 %v717
        %v746 = vunpack.c.l.b16 %v727
        %v747 = vunpack.c.l.b16 %v737
        %v748 = vpack.c.b16 %v741, %v740
        %v749 = vpack.c.b16 %v743, %v742
        %v750 = vpack.c.b16 %v745, %v744
        %v751 = vpack.c.b16 %v747, %v746
        %v753 = vsel %vm328, %v748, 0
        %v756 = vsel %vm328, %v749, 0
        %v759 = vsel %vm328, %v750, 0
        %v762 = vsel %vm328, %v751, 0
        %v765 = vsel %vm341, %v739, 0
        %767 = vmatprep.subr.bf16.mxu0 0
        %768 = vmatpush1.bf16.msra.mxu0 0
        %769 = vmatprep.subr.bf16.mxu0 0
        %770 = vmatpush1.bf16.msra.mxu0 0
        %771 = vmatprep.subr.bf16.mxu0 0
        %772 = vmatpush1.bf16.msra.mxu0 0
        %773 = vmatprep.subr.bf16.mxu0 0
        %774 = vmatpush1.bf16.msra.mxu0 0
        %775 = vmatprep.subr.bf16.mxu0 0
        %776 = vmatpush1.bf16.msra.mxu0 0
        %777 = vmatprep.subr.bf16.mxu0 0
        %778 = vmatpush1.bf16.msra.mxu0 0
        %779 = vmatprep.subr.bf16.mxu0 0
        %780 = vmatpush1.bf16.msra.mxu0 0
        %781 = vmatprep.subr.bf16.mxu0 0
        %782 = vmatpush1.bf16.msra.mxu0 %v765
        %783 = vmatprep.subr.bf16.mxu0 0
        %784 = vmatpush2.bf16.msra.mxu0 0
        %785 = vmatprep.subr.bf16.mxu0 0
        %786 = vmatpush2.bf16.msra.mxu0 0
        %787 = vmatprep.subr.bf16.mxu0 0
        %788 = vmatpush2.bf16.msra.mxu0 0
        %789 = vmatprep.subr.bf16.mxu0 0
        %790 = vmatpush2.bf16.msra.mxu0 0
        %791 = vmatprep.subr.bf16.mxu0 0
        %792 = vmatpush2.bf16.msra.mxu0 0
        %793 = vmatprep.subr.bf16.mxu0 0
        %794 = vmatpush2.bf16.msra.mxu0 0
        %795 = vmatprep.subr.bf16.mxu0 0
        %796 = vmatpush2.bf16.msra.mxu0 0
        %797 = vmatprep.subr.bf16.mxu0 0
        %798 = vmatpush2.bf16.msra.mxu0 0
        %799 = vmatprep.mubr.bf16.mxu0 0
        %800 = vmatmul.mubr.bf16.gmra.mxu0 %v753
        %v801 = vpop.f32.mrf.mxu0
        %v802 = vadd.f32 0.0, %v801
        %v803 = vpop.f32.mrf.mxu0
        %v804 = vpop.f32.mrf.mxu0
        %v805 = vadd.f32 0.0, %v804
        %v806 = vpop.f32.mrf.mxu0
        %807 = vmatprep.mubr.bf16.mxu0 0
        %808 = vmatmul.mubr.bf16.gmra.mxu0 %v756
        %v809 = vpop.f32.mrf.mxu0
        %v810 = vadd.f32 0.0, %v809
        %v811 = vpop.f32.mrf.mxu0
        %v812 = vpop.f32.mrf.mxu0
        %v813 = vadd.f32 0.0, %v812
        %v814 = vpop.f32.mrf.mxu0
        %815 = vmatprep.mubr.bf16.mxu0 0
        %816 = vmatmul.mubr.bf16.gmra.mxu0 %v759
        %v817 = vpop.f32.mrf.mxu0
        %v818 = vadd.f32 0.0, %v817
        %v819 = vpop.f32.mrf.mxu0
        %v820 = vpop.f32.mrf.mxu0
        %v821 = vadd.f32 0.0, %v820
        %v822 = vpop.f32.mrf.mxu0
        %823 = vmatprep.mubr.bf16.mxu0 0
        %824 = vmatmul.mubr.bf16.gmra.mxu0 %v762
        %v825 = vpop.f32.mrf.mxu0
        %v826 = vadd.f32 0.0, %v825
        %v827 = vpop.f32.mrf.mxu0
        %v828 = vpop.f32.mrf.mxu0
        %v829 = vadd.f32 0.0, %v828
        %v830 = vpop.f32.mrf.mxu0
        %831 = vdwg.mxu0
        %v832 = vadd.f32 %v647, %v802
        %v833 = vadd.f32 %v648, %v805
        %v834 = vadd.f32 %v649, %v810
        %v835 = vadd.f32 %v650, %v813
        %v836 = vadd.f32 %v651, %v818
        %v837 = vadd.f32 %v652, %v821
        %v838 = vadd.f32 %v653, %v826
        %v839 = vadd.f32 %v654, %v829
        %vm840 = vcmask 1041408
        %vm841 = vcmask 1045508
        %vm842 = vmor %vm840, %vm841
        %v843 = vrot.slane %v170, 6
        %v844 = vrot.slane %v843, 4
        %v845 = vrot.slane %v171, 6
        %v846 = vsel %vm842, %v844, %v845
        %v847 = vrot.slane %v172, 6
        %v848 = vrot.slane %v847, 4
        %v849 = vrot.slane %v173, 6
        %v850 = vsel %vm842, %v848, %v849
        %v851 = vrot.slane %v174, 6
        %v852 = vrot.slane %v851, 4
        %v853 = vrot.slane %v175, 6
        %v854 = vsel %vm842, %v852, %v853
        %v855 = vrot.slane %v176, 6
        %v856 = vrot.slane %v855, 4
        %v857 = vrot.slane %v177, 6
        %v858 = vsel %vm842, %v856, %v857
        %v859 = vrot.slane %v178, 6
        %v860 = vrot.slane %v859, 4
        %v861 = vrot.slane %v179, 6
        %v862 = vsel %vm842, %v860, %v861
        %v863 = vrot.slane %v180, 6
        %v864 = vrot.slane %v863, 4
        %v865 = vrot.slane %v181, 6
        %v866 = vsel %vm842, %v864, %v865
        %v867 = vrot.slane %v182, 6
        %v868 = vrot.slane %v867, 4
        %v869 = vrot.slane %v183, 6
        %v870 = vsel %vm842, %v868, %v869
        %v871 = vrot.slane %v184, 6
        %v872 = vrot.slane %v871, 4
        %v873 = vrot.slane %v185, 6
        %v874 = vsel %vm842, %v872, %v873
        %s875 = scalar_lea.vmem %s1, 8
        %v876 = vld [vmem:[%s875] sm:$0x3]
        %v877 = vunpack.c.l.b16 %v846
        %v878 = vunpack.c.l.b16 %v850
        %v879 = vunpack.c.l.b16 %v854
        %v880 = vunpack.c.l.b16 %v858
        %v881 = vunpack.c.l.b16 %v862
        %v882 = vunpack.c.l.b16 %v866
        %v883 = vunpack.c.l.b16 %v870
        %v884 = vunpack.c.l.b16 %v874
        %v885 = vpack.c.b16 %v878, %v877
        %v886 = vpack.c.b16 %v880, %v879
        %v887 = vpack.c.b16 %v882, %v881
        %v888 = vpack.c.b16 %v884, %v883
        %v890 = vsel %vm328, %v885, 0
        %v893 = vsel %vm328, %v886, 0
        %v896 = vsel %vm328, %v887, 0
        %v899 = vsel %vm328, %v888, 0
        %v902 = vsel %vm341, %v876, 0
        %904 = vmatprep.subr.bf16.mxu0 0
        %905 = vmatpush1.bf16.msra.mxu0 0
        %906 = vmatprep.subr.bf16.mxu0 0
        %907 = vmatpush1.bf16.msra.mxu0 0
        %908 = vmatprep.subr.bf16.mxu0 0
        %909 = vmatpush1.bf16.msra.mxu0 0
        %910 = vmatprep.subr.bf16.mxu0 0
        %911 = vmatpush1.bf16.msra.mxu0 0
        %912 = vmatprep.subr.bf16.mxu0 0
        %913 = vmatpush1.bf16.msra.mxu0 0
        %914 = vmatprep.subr.bf16.mxu0 0
        %915 = vmatpush1.bf16.msra.mxu0 0
        %916 = vmatprep.subr.bf16.mxu0 0
        %917 = vmatpush1.bf16.msra.mxu0 0
        %918 = vmatprep.subr.bf16.mxu0 0
        %919 = vmatpush1.bf16.msra.mxu0 %v902
        %920 = vmatprep.subr.bf16.mxu0 0
        %921 = vmatpush2.bf16.msra.mxu0 0
        %922 = vmatprep.subr.bf16.mxu0 0
        %923 = vmatpush2.bf16.msra.mxu0 0
        %924 = vmatprep.subr.bf16.mxu0 0
        %925 = vmatpush2.bf16.msra.mxu0 0
        %926 = vmatprep.subr.bf16.mxu0 0
        %927 = vmatpush2.bf16.msra.mxu0 0
        %928 = vmatprep.subr.bf16.mxu0 0
        %929 = vmatpush2.bf16.msra.mxu0 0
        %930 = vmatprep.subr.bf16.mxu0 0
        %931 = vmatpush2.bf16.msra.mxu0 0
        %932 = vmatprep.subr.bf16.mxu0 0
        %933 = vmatpush2.bf16.msra.mxu0 0
        %934 = vmatprep.subr.bf16.mxu0 0
        %935 = vmatpush2.bf16.msra.mxu0 0
        %936 = vmatprep.mubr.bf16.mxu0 0
        %937 = vmatmul.mubr.bf16.gmra.mxu0 %v890
        %v938 = vpop.f32.mrf.mxu0
        %v939 = vadd.f32 0.0, %v938
        %v940 = vpop.f32.mrf.mxu0
        %v941 = vpop.f32.mrf.mxu0
        %v942 = vadd.f32 0.0, %v941
        %v943 = vpop.f32.mrf.mxu0
        %944 = vmatprep.mubr.bf16.mxu0 0
        %945 = vmatmul.mubr.bf16.gmra.mxu0 %v893
        %v946 = vpop.f32.mrf.mxu0
        %v947 = vadd.f32 0.0, %v946
        %v948 = vpop.f32.mrf.mxu0
        %v949 = vpop.f32.mrf.mxu0
        %v950 = vadd.f32 0.0, %v949
        %v951 = vpop.f32.mrf.mxu0
        %952 = vmatprep.mubr.bf16.mxu0 0
        %953 = vmatmul.mubr.bf16.gmra.mxu0 %v896
        %v954 = vpop.f32.mrf.mxu0
        %v955 = vadd.f32 0.0, %v954
        %v956 = vpop.f32.mrf.mxu0
        %v957 = vpop.f32.mrf.mxu0
        %v958 = vadd.f32 0.0, %v957
        %v959 = vpop.f32.mrf.mxu0
        %960 = vmatprep.mubr.bf16.mxu0 0
        %961 = vmatmul.mubr.bf16.gmra.mxu0 %v899
        %v962 = vpop.f32.mrf.mxu0
        %v963 = vadd.f32 0.0, %v962
        %v964 = vpop.f32.mrf.mxu0
        %v965 = vpop.f32.mrf.mxu0
        %v966 = vadd.f32 0.0, %v965
        %v967 = vpop.f32.mrf.mxu0
        %968 = vdwg.mxu0
        %v969 = vadd.f32 %v832, %v939
        %v970 = vadd.f32 %v833, %v942
        %v971 = vadd.f32 %v834, %v947
        %v972 = vadd.f32 %v835, %v950
        %v973 = vadd.f32 %v836, %v955
        %v974 = vadd.f32 %v837, %v958
        %v975 = vadd.f32 %v838, %v963
        %v976 = vadd.f32 %v839, %v966
        %vm977 = vsmask.f32 1280
        %vm978 = vsmask.f32 5392
        %vm979 = vmor %vm977, %vm978
        %v980 = vrot.slane %v203, 6
        %v981 = vrot.slane %v206, 7
        %v982 = vor.u32 %v980, %v981
        %v983 = vrot.slane %v982, 4
        %v984 = vrot.slane %v662, 6
        %v985 = vrot.slane %v212, 7
        %v986 = vor.u32 %v984, %v985
        %v987 = vsel %vm979, %v983, %v986
        %v988 = vrot.slane %v217, 6
        %v989 = vrot.slane %v220, 7
        %v990 = vor.u32 %v988, %v989
        %v991 = vrot.slane %v990, 4
        %v992 = vrot.slane %v672, 6
        %v993 = vrot.slane %v226, 7
        %v994 = vor.u32 %v992, %v993
        %v995 = vsel %vm979, %v991, %v994
        %v996 = vrot.slane %v231, 6
        %v997 = vrot.slane %v234, 7
        %v998 = vor.u32 %v996, %v997
        %v999 = vrot.slane %v998, 4
        %v1000 = vrot.slane %v682, 6
        %v1001 = vrot.slane %v240, 7
        %v1002 = vor.u32 %v1000, %v1001
        %v1003 = vsel %vm979, %v999, %v1002
        %v1004 = vrot.slane %v245, 6
        %v1005 = vrot.slane %v248, 7
        %v1006 = vor.u32 %v1004, %v1005
        %v1007 = vrot.slane %v1006, 4
        %v1008 = vrot.slane %v692, 6
        %v1009 = vrot.slane %v254, 7
        %v1010 = vor.u32 %v1008, %v1009
        %v1011 = vsel %vm979, %v1007, %v1010
        %v1012 = vrot.slane %v259, 6
        %v1013 = vrot.slane %v262, 7
        %v1014 = vor.u32 %v1012, %v1013
        %v1015 = vrot.slane %v1014, 4
        %v1016 = vrot.slane %v702, 6
        %v1017 = vrot.slane %v268, 7
        %v1018 = vor.u32 %v1016, %v1017
        %v1019 = vsel %vm979, %v1015, %v1018
        %v1020 = vrot.slane %v273, 6
        %v1021 = vrot.slane %v276, 7
        %v1022 = vor.u32 %v1020, %v1021
        %v1023 = vrot.slane %v1022, 4
        %v1024 = vrot.slane %v712, 6
        %v1025 = vrot.slane %v282, 7
        %v1026 = vor.u32 %v1024, %v1025
        %v1027 = vsel %vm979, %v1023, %v1026
        %v1028 = vrot.slane %v287, 6
        %v1029 = vrot.slane %v290, 7
        %v1030 = vor.u32 %v1028, %v1029
        %v1031 = vrot.slane %v1030, 4
        %v1032 = vrot.slane %v722, 6
        %v1033 = vrot.slane %v296, 7
        %v1034 = vor.u32 %v1032, %v1033
        %v1035 = vsel %vm979, %v1031, %v1034
        %v1036 = vrot.slane %v301, 6
        %v1037 = vrot.slane %v304, 7
        %v1038 = vor.u32 %v1036, %v1037
        %v1039 = vrot.slane %v1038, 4
        %v1040 = vrot.slane %v732, 6
        %v1041 = vrot.slane %v310, 7
        %v1042 = vor.u32 %v1040, %v1041
        %v1043 = vsel %vm979, %v1039, %v1042
        %s1044 = scalar_lea.vmem %s1, 10
        %v1045 = vld [vmem:[%s1044] sm:$0x3]
        %v1046 = vunpack.c.l.b16 %v987
        %v1047 = vunpack.c.l.b16 %v995
        %v1048 = vunpack.c.l.b16 %v1003
        %v1049 = vunpack.c.l.b16 %v1011
        %v1050 = vunpack.c.l.b16 %v1019
        %v1051 = vunpack.c.l.b16 %v1027
        %v1052 = vunpack.c.l.b16 %v1035
        %v1053 = vunpack.c.l.b16 %v1043
        %v1054 = vpack.c.b16 %v1047, %v1046
        %v1055 = vpack.c.b16 %v1049, %v1048
        %v1056 = vpack.c.b16 %v1051, %v1050
        %v1057 = vpack.c.b16 %v1053, %v1052
        %v1059 = vsel %vm328, %v1054, 0
        %v1062 = vsel %vm328, %v1055, 0
        %v1065 = vsel %vm328, %v1056, 0
        %v1068 = vsel %vm328, %v1057, 0
        %v1071 = vsel %vm341, %v1045, 0
        %1073 = vmatprep.subr.bf16.mxu0 0
        %1074 = vmatpush1.bf16.msra.mxu0 0
        %1075 = vmatprep.subr.bf16.mxu0 0
        %1076 = vmatpush1.bf16.msra.mxu0 0
        %1077 = vmatprep.subr.bf16.mxu0 0
        %1078 = vmatpush1.bf16.msra.mxu0 0
        %1079 = vmatprep.subr.bf16.mxu0 0
        %1080 = vmatpush1.bf16.msra.mxu0 0
        %1081 = vmatprep.subr.bf16.mxu0 0
        %1082 = vmatpush1.bf16.msra.mxu0 0
        %1083 = vmatprep.subr.bf16.mxu0 0
        %1084 = vmatpush1.bf16.msra.mxu0 0
        %1085 = vmatprep.subr.bf16.mxu0 0
        %1086 = vmatpush1.bf16.msra.mxu0 0
        %1087 = vmatprep.subr.bf16.mxu0 0
        %1088 = vmatpush1.bf16.msra.mxu0 %v1071
        %1089 = vmatprep.subr.bf16.mxu0 0
        %1090 = vmatpush2.bf16.msra.mxu0 0
        %1091 = vmatprep.subr.bf16.mxu0 0
        %1092 = vmatpush2.bf16.msra.mxu0 0
        %1093 = vmatprep.subr.bf16.mxu0 0
        %1094 = vmatpush2.bf16.msra.mxu0 0
        %1095 = vmatprep.subr.bf16.mxu0 0
        %1096 = vmatpush2.bf16.msra.mxu0 0
        %1097 = vmatprep.subr.bf16.mxu0 0
        %1098 = vmatpush2.bf16.msra.mxu0 0
        %1099 = vmatprep.subr.bf16.mxu0 0
        %1100 = vmatpush2.bf16.msra.mxu0 0
        %1101 = vmatprep.subr.bf16.mxu0 0
        %1102 = vmatpush2.bf16.msra.mxu0 0
        %1103 = vmatprep.subr.bf16.mxu0 0
        %1104 = vmatpush2.bf16.msra.mxu0 0
        %1105 = vmatprep.mubr.bf16.mxu0 0
        %1106 = vmatmul.mubr.bf16.gmra.mxu0 %v1059
        %v1107 = vpop.f32.mrf.mxu0
        %v1108 = vadd.f32 0.0, %v1107
        %v1109 = vpop.f32.mrf.mxu0
        %v1110 = vpop.f32.mrf.mxu0
        %v1111 = vadd.f32 0.0, %v1110
        %v1112 = vpop.f32.mrf.mxu0
        %1113 = vmatprep.mubr.bf16.mxu0 0
        %1114 = vmatmul.mubr.bf16.gmra.mxu0 %v1062
        %v1115 = vpop.f32.mrf.mxu0
        %v1116 = vadd.f32 0.0, %v1115
        %v1117 = vpop.f32.mrf.mxu0
        %v1118 = vpop.f32.mrf.mxu0
        %v1119 = vadd.f32 0.0, %v1118
        %v1120 = vpop.f32.mrf.mxu0
        %1121 = vmatprep.mubr.bf16.mxu0 0
        %1122 = vmatmul.mubr.bf16.gmra.mxu0 %v1065
        %v1123 = vpop.f32.mrf.mxu0
        %v1124 = vadd.f32 0.0, %v1123
        %v1125 = vpop.f32.mrf.mxu0
        %v1126 = vpop.f32.mrf.mxu0
        %v1127 = vadd.f32 0.0, %v1126
        %v1128 = vpop.f32.mrf.mxu0
        %1129 = vmatprep.mubr.bf16.mxu0 0
        %1130 = vmatmul.mubr.bf16.gmra.mxu0 %v1068
        %v1131 = vpop.f32.mrf.mxu0
        %v1132 = vadd.f32 0.0, %v1131
        %v1133 = vpop.f32.mrf.mxu0
        %v1134 = vpop.f32.mrf.mxu0
        %v1135 = vadd.f32 0.0, %v1134
        %v1136 = vpop.f32.mrf.mxu0
        %1137 = vdwg.mxu0
        %v1138 = vadd.f32 %v969, %v1108
        %v1139 = vadd.f32 %v970, %v1111
        %v1140 = vadd.f32 %v971, %v1116
        %v1141 = vadd.f32 %v972, %v1119
        %v1142 = vadd.f32 %v973, %v1124
        %v1143 = vadd.f32 %v974, %v1127
        %v1144 = vadd.f32 %v975, %v1132
        %v1145 = vadd.f32 %v976, %v1135
        %vm1146 = vcmask 1040384
        %vm1147 = vcmask 1044484
        %vm1148 = vmor %vm1146, %vm1147
        %v1149 = vrot.slane %v170, 7
        %v1150 = vrot.slane %v1149, 4
        %v1151 = vrot.slane %v171, 7
        %v1152 = vsel %vm1148, %v1150, %v1151
        %v1153 = vrot.slane %v172, 7
        %v1154 = vrot.slane %v1153, 4
        %v1155 = vrot.slane %v173, 7
        %v1156 = vsel %vm1148, %v1154, %v1155
        %v1157 = vrot.slane %v174, 7
        %v1158 = vrot.slane %v1157, 4
        %v1159 = vrot.slane %v175, 7
        %v1160 = vsel %vm1148, %v1158, %v1159
        %v1161 = vrot.slane %v176, 7
        %v1162 = vrot.slane %v1161, 4
        %v1163 = vrot.slane %v177, 7
        %v1164 = vsel %vm1148, %v1162, %v1163
        %v1165 = vrot.slane %v178, 7
        %v1166 = vrot.slane %v1165, 4
        %v1167 = vrot.slane %v179, 7
        %v1168 = vsel %vm1148, %v1166, %v1167
        %v1169 = vrot.slane %v180, 7
        %v1170 = vrot.slane %v1169, 4
        %v1171 = vrot.slane %v181, 7
        %v1172 = vsel %vm1148, %v1170, %v1171
        %v1173 = vrot.slane %v182, 7
        %v1174 = vrot.slane %v1173, 4
        %v1175 = vrot.slane %v183, 7
        %v1176 = vsel %vm1148, %v1174, %v1175
        %v1177 = vrot.slane %v184, 7
        %v1178 = vrot.slane %v1177, 4
        %v1179 = vrot.slane %v185, 7
        %v1180 = vsel %vm1148, %v1178, %v1179
        %s1181 = scalar_lea.vmem %s1, 12
        %v1182 = vld [vmem:[%s1181] sm:$0x3]
        %v1183 = vunpack.c.l.b16 %v1152
        %v1184 = vunpack.c.l.b16 %v1156
        %v1185 = vunpack.c.l.b16 %v1160
        %v1186 = vunpack.c.l.b16 %v1164
        %v1187 = vunpack.c.l.b16 %v1168
        %v1188 = vunpack.c.l.b16 %v1172
        %v1189 = vunpack.c.l.b16 %v1176
        %v1190 = vunpack.c.l.b16 %v1180
        %v1191 = vpack.c.b16 %v1184, %v1183
        %v1192 = vpack.c.b16 %v1186, %v1185
        %v1193 = vpack.c.b16 %v1188, %v1187
        %v1194 = vpack.c.b16 %v1190, %v1189
        %v1196 = vsel %vm328, %v1191, 0
        %v1199 = vsel %vm328, %v1192, 0
        %v1202 = vsel %vm328, %v1193, 0
        %v1205 = vsel %vm328, %v1194, 0
        %v1208 = vsel %vm341, %v1182, 0
        %1210 = vmatprep.subr.bf16.mxu0 0
        %1211 = vmatpush1.bf16.msra.mxu0 0
        %1212 = vmatprep.subr.bf16.mxu0 0
        %1213 = vmatpush1.bf16.msra.mxu0 0
        %1214 = vmatprep.subr.bf16.mxu0 0
        %1215 = vmatpush1.bf16.msra.mxu0 0
        %1216 = vmatprep.subr.bf16.mxu0 0
        %1217 = vmatpush1.bf16.msra.mxu0 0
        %1218 = vmatprep.subr.bf16.mxu0 0
        %1219 = vmatpush1.bf16.msra.mxu0 0
        %1220 = vmatprep.subr.bf16.mxu0 0
        %1221 = vmatpush1.bf16.msra.mxu0 0
        %1222 = vmatprep.subr.bf16.mxu0 0
        %1223 = vmatpush1.bf16.msra.mxu0 0
        %1224 = vmatprep.subr.bf16.mxu0 0
        %1225 = vmatpush1.bf16.msra.mxu0 %v1208
        %1226 = vmatprep.subr.bf16.mxu0 0
        %1227 = vmatpush2.bf16.msra.mxu0 0
        %1228 = vmatprep.subr.bf16.mxu0 0
        %1229 = vmatpush2.bf16.msra.mxu0 0
        %1230 = vmatprep.subr.bf16.mxu0 0
        %1231 = vmatpush2.bf16.msra.mxu0 0
        %1232 = vmatprep.subr.bf16.mxu0 0
        %1233 = vmatpush2.bf16.msra.mxu0 0
        %1234 = vmatprep.subr.bf16.mxu0 0
        %1235 = vmatpush2.bf16.msra.mxu0 0
        %1236 = vmatprep.subr.bf16.mxu0 0
        %1237 = vmatpush2.bf16.msra.mxu0 0
        %1238 = vmatprep.subr.bf16.mxu0 0
        %1239 = vmatpush2.bf16.msra.mxu0 0
        %1240 = vmatprep.subr.bf16.mxu0 0
        %1241 = vmatpush2.bf16.msra.mxu0 0
        %1242 = vmatprep.mubr.bf16.mxu0 0
        %1243 = vmatmul.mubr.bf16.gmra.mxu0 %v1196
        %v1244 = vpop.f32.mrf.mxu0
        %v1245 = vadd.f32 0.0, %v1244
        %v1246 = vpop.f32.mrf.mxu0
        %v1247 = vpop.f32.mrf.mxu0
        %v1248 = vadd.f32 0.0, %v1247
        %v1249 = vpop.f32.mrf.mxu0
        %1250 = vmatprep.mubr.bf16.mxu0 0
        %1251 = vmatmul.mubr.bf16.gmra.mxu0 %v1199
        %v1252 = vpop.f32.mrf.mxu0
        %v1253 = vadd.f32 0.0, %v1252
        %v1254 = vpop.f32.mrf.mxu0
        %v1255 = vpop.f32.mrf.mxu0
        %v1256 = vadd.f32 0.0, %v1255
        %v1257 = vpop.f32.mrf.mxu0
        %1258 = vmatprep.mubr.bf16.mxu0 0
        %1259 = vmatmul.mubr.bf16.gmra.mxu0 %v1202
        %v1260 = vpop.f32.mrf.mxu0
        %v1261 = vadd.f32 0.0, %v1260
        %v1262 = vpop.f32.mrf.mxu0
        %v1263 = vpop.f32.mrf.mxu0
        %v1264 = vadd.f32 0.0, %v1263
        %v1265 = vpop.f32.mrf.mxu0
        %1266 = vmatprep.mubr.bf16.mxu0 0
        %1267 = vmatmul.mubr.bf16.gmra.mxu0 %v1205
        %v1268 = vpop.f32.mrf.mxu0
        %v1269 = vadd.f32 0.0, %v1268
        %v1270 = vpop.f32.mrf.mxu0
        %v1271 = vpop.f32.mrf.mxu0
        %v1272 = vadd.f32 0.0, %v1271
        %v1273 = vpop.f32.mrf.mxu0
        %1274 = vdwg.mxu0
        %v1275 = vadd.f32 %v1138, %v1245
        %v1276 = vadd.f32 %v1139, %v1248
        %v1277 = vadd.f32 %v1140, %v1253
        %v1278 = vadd.f32 %v1141, %v1256
        %v1279 = vadd.f32 %v1142, %v1261
        %v1280 = vadd.f32 %v1143, %v1264
        %v1281 = vadd.f32 %v1144, %v1269
        %v1282 = vadd.f32 %v1145, %v1272
        %s1283 = scalar_lea.vmem %s1, 14
        %v1284 = vld [vmem:[%s1283] sm:$0x3]
        %v1286 = vunpack.c.l.b16 %v186
        %v1287 = vpack.c.b16 %v420, %v419
        %v1288 = vpack.c.b16 %v422, %v421
        %v1289 = vpack.c.b16 %v424, %v423
        %v1290 = vpack.c.b16 %v1286, %v425
        %v1292 = vsel %vm328, %v1287, 0
        %v1295 = vsel %vm328, %v1288, 0
        %v1298 = vsel %vm328, %v1289, 0
        %v1301 = vsel %vm328, %v1290, 0
        %v1304 = vsel %vm341, %v1284, 0
        %1306 = vmatprep.subr.bf16.mxu0 0
        %1307 = vmatpush1.bf16.msra.mxu0 0
        %1308 = vmatprep.subr.bf16.mxu0 0
        %1309 = vmatpush1.bf16.msra.mxu0 0
        %1310 = vmatprep.subr.bf16.mxu0 0
        %1311 = vmatpush1.bf16.msra.mxu0 0
        %1312 = vmatprep.subr.bf16.mxu0 0
        %1313 = vmatpush1.bf16.msra.mxu0 0
        %1314 = vmatprep.subr.bf16.mxu0 0
        %1315 = vmatpush1.bf16.msra.mxu0 0
        %1316 = vmatprep.subr.bf16.mxu0 0
        %1317 = vmatpush1.bf16.msra.mxu0 0
        %1318 = vmatprep.subr.bf16.mxu0 0
        %1319 = vmatpush1.bf16.msra.mxu0 0
        %1320 = vmatprep.subr.bf16.mxu0 0
        %1321 = vmatpush1.bf16.msra.mxu0 %v1304
        %1322 = vmatprep.subr.bf16.mxu0 0
        %1323 = vmatpush2.bf16.msra.mxu0 0
        %1324 = vmatprep.subr.bf16.mxu0 0
        %1325 = vmatpush2.bf16.msra.mxu0 0
        %1326 = vmatprep.subr.bf16.mxu0 0
        %1327 = vmatpush2.bf16.msra.mxu0 0
        %1328 = vmatprep.subr.bf16.mxu0 0
        %1329 = vmatpush2.bf16.msra.mxu0 0
        %1330 = vmatprep.subr.bf16.mxu0 0
        %1331 = vmatpush2.bf16.msra.mxu0 0
        %1332 = vmatprep.subr.bf16.mxu0 0
        %1333 = vmatpush2.bf16.msra.mxu0 0
        %1334 = vmatprep.subr.bf16.mxu0 0
        %1335 = vmatpush2.bf16.msra.mxu0 0
        %1336 = vmatprep.subr.bf16.mxu0 0
        %1337 = vmatpush2.bf16.msra.mxu0 0
        %1338 = vmatprep.mubr.bf16.mxu0 0
        %1339 = vmatmul.mubr.bf16.gmra.mxu0 %v1292
        %v1340 = vpop.f32.mrf.mxu0
        %v1341 = vadd.f32 0.0, %v1340
        %v1342 = vpop.f32.mrf.mxu0
        %v1343 = vpop.f32.mrf.mxu0
        %v1344 = vadd.f32 0.0, %v1343
        %v1345 = vpop.f32.mrf.mxu0
        %1346 = vmatprep.mubr.bf16.mxu0 0
        %1347 = vmatmul.mubr.bf16.gmra.mxu0 %v1295
        %v1348 = vpop.f32.mrf.mxu0
        %v1349 = vadd.f32 0.0, %v1348
        %v1350 = vpop.f32.mrf.mxu0
        %v1351 = vpop.f32.mrf.mxu0
        %v1352 = vadd.f32 0.0, %v1351
        %v1353 = vpop.f32.mrf.mxu0
        %1354 = vmatprep.mubr.bf16.mxu0 0
        %1355 = vmatmul.mubr.bf16.gmra.mxu0 %v1298
        %v1356 = vpop.f32.mrf.mxu0
        %v1357 = vadd.f32 0.0, %v1356
        %v1358 = vpop.f32.mrf.mxu0
        %v1359 = vpop.f32.mrf.mxu0
        %v1360 = vadd.f32 0.0, %v1359
        %v1361 = vpop.f32.mrf.mxu0
        %1362 = vmatprep.mubr.bf16.mxu0 0
        %1363 = vmatmul.mubr.bf16.gmra.mxu0 %v1301
        %v1364 = vpop.f32.mrf.mxu0
        %v1365 = vadd.f32 0.0, %v1364
        %v1366 = vpop.f32.mrf.mxu0
        %v1367 = vpop.f32.mrf.mxu0
        %v1368 = vadd.f32 0.0, %v1367
        %v1369 = vpop.f32.mrf.mxu0
        %1370 = vdwg.mxu0
        %v1371 = vadd.f32 %v1275, %v1341
        %v1372 = vadd.f32 %v1276, %v1344
        %v1373 = vadd.f32 %v1277, %v1349
        %v1374 = vadd.f32 %v1278, %v1352
        %v1375 = vadd.f32 %v1279, %v1357
        %v1376 = vadd.f32 %v1280, %v1360
        %v1377 = vadd.f32 %v1281, %v1365
        %v1378 = vadd.f32 %v1282, %v1368
        %v1380 = vshrl.u32 %v186, 16
        %v1382 = vrot.slane %v1380, 4
        %v1383 = vshll.u32 %v186, 16
        %v1385 = vrot.slane %v1383, 5
        %v1386 = vor.u32 %v1382, %v1385
        %v1387 = vrot.slane %v1386, 4
        %v1389 = vshll.u32 %v187, 16
        %v1391 = vrot.slane %v1389, 5
        %v1392 = vsel %vm201, %v1387, %v1391
        %s1393 = scalar_lea.vmem %s1, 16
        %v1394 = vld [vmem:[%s1393] sm:$0x3]
        %v1395 = vunpack.c.l.b16 %v1392
        %v1396 = vpack.c.b16 %v318, %v317
        %v1397 = vpack.c.b16 %v320, %v319
        %v1398 = vpack.c.b16 %v322, %v321
        %v1399 = vpack.c.b16 %v1395, %v323
        %v1401 = vsel %vm328, %v1396, 0
        %v1404 = vsel %vm328, %v1397, 0
        %v1407 = vsel %vm328, %v1398, 0
        %v1410 = vsel %vm328, %v1399, 0
        %v1413 = vsel %vm341, %v1394, 0
        %1415 = vmatprep.subr.bf16.mxu0 0
        %1416 = vmatpush1.bf16.msra.mxu0 0
        %1417 = vmatprep.subr.bf16.mxu0 0
        %1418 = vmatpush1.bf16.msra.mxu0 0
        %1419 = vmatprep.subr.bf16.mxu0 0
        %1420 = vmatpush1.bf16.msra.mxu0 0
        %1421 = vmatprep.subr.bf16.mxu0 0
        %1422 = vmatpush1.bf16.msra.mxu0 0
        %1423 = vmatprep.subr.bf16.mxu0 0
        %1424 = vmatpush1.bf16.msra.mxu0 0
        %1425 = vmatprep.subr.bf16.mxu0 0
        %1426 = vmatpush1.bf16.msra.mxu0 0
        %1427 = vmatprep.subr.bf16.mxu0 0
        %1428 = vmatpush1.bf16.msra.mxu0 0
        %1429 = vmatprep.subr.bf16.mxu0 0
        %1430 = vmatpush1.bf16.msra.mxu0 %v1413
        %1431 = vmatprep.subr.bf16.mxu0 0
        %1432 = vmatpush2.bf16.msra.mxu0 0
        %1433 = vmatprep.subr.bf16.mxu0 0
        %1434 = vmatpush2.bf16.msra.mxu0 0
        %1435 = vmatprep.subr.bf16.mxu0 0
        %1436 = vmatpush2.bf16.msra.mxu0 0
        %1437 = vmatprep.subr.bf16.mxu0 0
        %1438 = vmatpush2.bf16.msra.mxu0 0
        %1439 = vmatprep.subr.bf16.mxu0 0
        %1440 = vmatpush2.bf16.msra.mxu0 0
        %1441 = vmatprep.subr.bf16.mxu0 0
        %1442 = vmatpush2.bf16.msra.mxu0 0
        %1443 = vmatprep.subr.bf16.mxu0 0
        %1444 = vmatpush2.bf16.msra.mxu0 0
        %1445 = vmatprep.subr.bf16.mxu0 0
        %1446 = vmatpush2.bf16.msra.mxu0 0
        %1447 = vmatprep.mubr.bf16.mxu0 0
        %1448 = vmatmul.mubr.bf16.gmra.mxu0 %v1401
        %v1449 = vpop.f32.mrf.mxu0
        %v1450 = vadd.f32 0.0, %v1449
        %v1451 = vpop.f32.mrf.mxu0
        %v1452 = vpop.f32.mrf.mxu0
        %v1453 = vadd.f32 0.0, %v1452
        %v1454 = vpop.f32.mrf.mxu0
        %1455 = vmatprep.mubr.bf16.mxu0 0
        %1456 = vmatmul.mubr.bf16.gmra.mxu0 %v1404
        %v1457 = vpop.f32.mrf.mxu0
        %v1458 = vadd.f32 0.0, %v1457
        %v1459 = vpop.f32.mrf.mxu0
        %v1460 = vpop.f32.mrf.mxu0
        %v1461 = vadd.f32 0.0, %v1460
        %v1462 = vpop.f32.mrf.mxu0
        %1463 = vmatprep.mubr.bf16.mxu0 0
        %1464 = vmatmul.mubr.bf16.gmra.mxu0 %v1407
        %v1465 = vpop.f32.mrf.mxu0
        %v1466 = vadd.f32 0.0, %v1465
        %v1467 = vpop.f32.mrf.mxu0
        %v1468 = vpop.f32.mrf.mxu0
        %v1469 = vadd.f32 0.0, %v1468
        %v1470 = vpop.f32.mrf.mxu0
        %1471 = vmatprep.mubr.bf16.mxu0 0
        %1472 = vmatmul.mubr.bf16.gmra.mxu0 %v1410
        %v1473 = vpop.f32.mrf.mxu0
        %v1474 = vadd.f32 0.0, %v1473
        %v1475 = vpop.f32.mrf.mxu0
        %v1476 = vpop.f32.mrf.mxu0
        %v1477 = vadd.f32 0.0, %v1476
        %v1478 = vpop.f32.mrf.mxu0
        %1479 = vdwg.mxu0
        %v1480 = vadd.f32 %v1371, %v1450
        %v1481 = vadd.f32 %v1372, %v1453
        %v1482 = vadd.f32 %v1373, %v1458
        %v1483 = vadd.f32 %v1374, %v1461
        %v1484 = vadd.f32 %v1375, %v1466
        %v1485 = vadd.f32 %v1376, %v1469
        %v1486 = vadd.f32 %v1377, %v1474
        %v1487 = vadd.f32 %v1378, %v1477
        %v1489 = vrot.slane %v186, 5
        %v1490 = vrot.slane %v1489, 4
        %v1491 = vrot.slane %v187, 5
        %v1492 = vsel %vm520, %v1490, %v1491
        %s1493 = scalar_lea.vmem %s1, 18
        %v1494 = vld [vmem:[%s1493] sm:$0x3]
        %v1495 = vunpack.c.l.b16 %v1492
        %v1496 = vpack.c.b16 %v557, %v556
        %v1497 = vpack.c.b16 %v559, %v558
        %v1498 = vpack.c.b16 %v561, %v560
        %v1499 = vpack.c.b16 %v1495, %v562
        %v1501 = vsel %vm328, %v1496, 0
        %v1504 = vsel %vm328, %v1497, 0
        %v1507 = vsel %vm328, %v1498, 0
        %v1510 = vsel %vm328, %v1499, 0
        %v1513 = vsel %vm341, %v1494, 0
        %1515 = vmatprep.subr.bf16.mxu0 0
        %1516 = vmatpush1.bf16.msra.mxu0 0
        %1517 = vmatprep.subr.bf16.mxu0 0
        %1518 = vmatpush1.bf16.msra.mxu0 0
        %1519 = vmatprep.subr.bf16.mxu0 0
        %1520 = vmatpush1.bf16.msra.mxu0 0
        %1521 = vmatprep.subr.bf16.mxu0 0
        %1522 = vmatpush1.bf16.msra.mxu0 0
        %1523 = vmatprep.subr.bf16.mxu0 0
        %1524 = vmatpush1.bf16.msra.mxu0 0
        %1525 = vmatprep.subr.bf16.mxu0 0
        %1526 = vmatpush1.bf16.msra.mxu0 0
        %1527 = vmatprep.subr.bf16.mxu0 0
        %1528 = vmatpush1.bf16.msra.mxu0 0
        %1529 = vmatprep.subr.bf16.mxu0 0
        %1530 = vmatpush1.bf16.msra.mxu0 %v1513
        %1531 = vmatprep.subr.bf16.mxu0 0
        %1532 = vmatpush2.bf16.msra.mxu0 0
        %1533 = vmatprep.subr.bf16.mxu0 0
        %1534 = vmatpush2.bf16.msra.mxu0 0
        %1535 = vmatprep.subr.bf16.mxu0 0
        %1536 = vmatpush2.bf16.msra.mxu0 0
        %1537 = vmatprep.subr.bf16.mxu0 0
        %1538 = vmatpush2.bf16.msra.mxu0 0
        %1539 = vmatprep.subr.bf16.mxu0 0
        %1540 = vmatpush2.bf16.msra.mxu0 0
        %1541 = vmatprep.subr.bf16.mxu0 0
        %1542 = vmatpush2.bf16.msra.mxu0 0
        %1543 = vmatprep.subr.bf16.mxu0 0
        %1544 = vmatpush2.bf16.msra.mxu0 0
        %1545 = vmatprep.subr.bf16.mxu0 0
        %1546 = vmatpush2.bf16.msra.mxu0 0
        %1547 = vmatprep.mubr.bf16.mxu0 0
        %1548 = vmatmul.mubr.bf16.gmra.mxu0 %v1501
        %v1549 = vpop.f32.mrf.mxu0
        %v1550 = vadd.f32 0.0, %v1549
        %v1551 = vpop.f32.mrf.mxu0
        %v1552 = vpop.f32.mrf.mxu0
        %v1553 = vadd.f32 0.0, %v1552
        %v1554 = vpop.f32.mrf.mxu0
        %1555 = vmatprep.mubr.bf16.mxu0 0
        %1556 = vmatmul.mubr.bf16.gmra.mxu0 %v1504
        %v1557 = vpop.f32.mrf.mxu0
        %v1558 = vadd.f32 0.0, %v1557
        %v1559 = vpop.f32.mrf.mxu0
        %v1560 = vpop.f32.mrf.mxu0
        %v1561 = vadd.f32 0.0, %v1560
        %v1562 = vpop.f32.mrf.mxu0
        %1563 = vmatprep.mubr.bf16.mxu0 0
        %1564 = vmatmul.mubr.bf16.gmra.mxu0 %v1507
        %v1565 = vpop.f32.mrf.mxu0
        %v1566 = vadd.f32 0.0, %v1565
        %v1567 = vpop.f32.mrf.mxu0
        %v1568 = vpop.f32.mrf.mxu0
        %v1569 = vadd.f32 0.0, %v1568
        %v1570 = vpop.f32.mrf.mxu0
        %1571 = vmatprep.mubr.bf16.mxu0 0
        %1572 = vmatmul.mubr.bf16.gmra.mxu0 %v1510
        %v1573 = vpop.f32.mrf.mxu0
        %v1574 = vadd.f32 0.0, %v1573
        %v1575 = vpop.f32.mrf.mxu0
        %v1576 = vpop.f32.mrf.mxu0
        %v1577 = vadd.f32 0.0, %v1576
        %v1578 = vpop.f32.mrf.mxu0
        %1579 = vdwg.mxu0
        %v1580 = vadd.f32 %v1480, %v1550
        %v1581 = vadd.f32 %v1481, %v1553
        %v1582 = vadd.f32 %v1482, %v1558
        %v1583 = vadd.f32 %v1483, %v1561
        %v1584 = vadd.f32 %v1484, %v1566
        %v1585 = vadd.f32 %v1485, %v1569
        %v1586 = vadd.f32 %v1486, %v1574
        %v1587 = vadd.f32 %v1487, %v1577
        %v1588 = vrot.slane %v1380, 5
        %v1589 = vrot.slane %v1383, 6
        %v1590 = vor.u32 %v1588, %v1589
        %v1591 = vrot.slane %v1590, 4
        %v1592 = vshrl.u32 %v187, 16
        %v1594 = vrot.slane %v1592, 5
        %v1595 = vrot.slane %v1389, 6
        %v1596 = vor.u32 %v1594, %v1595
        %v1597 = vsel %vm657, %v1591, %v1596
        %s1598 = scalar_lea.vmem %s1, 20
        %v1599 = vld [vmem:[%s1598] sm:$0x3]
        %v1600 = vunpack.c.l.b16 %v1597
        %v1601 = vpack.c.b16 %v742, %v741
        %v1602 = vpack.c.b16 %v744, %v743
        %v1603 = vpack.c.b16 %v746, %v745
        %v1604 = vpack.c.b16 %v1600, %v747
        %v1606 = vsel %vm328, %v1601, 0
        %v1609 = vsel %vm328, %v1602, 0
        %v1612 = vsel %vm328, %v1603, 0
        %v1615 = vsel %vm328, %v1604, 0
        %v1618 = vsel %vm341, %v1599, 0
        %1620 = vmatprep.subr.bf16.mxu0 0
        %1621 = vmatpush1.bf16.msra.mxu0 0
        %1622 = vmatprep.subr.bf16.mxu0 0
        %1623 = vmatpush1.bf16.msra.mxu0 0
        %1624 = vmatprep.subr.bf16.mxu0 0
        %1625 = vmatpush1.bf16.msra.mxu0 0
        %1626 = vmatprep.subr.bf16.mxu0 0
        %1627 = vmatpush1.bf16.msra.mxu0 0
        %1628 = vmatprep.subr.bf16.mxu0 0
        %1629 = vmatpush1.bf16.msra.mxu0 0
        %1630 = vmatprep.subr.bf16.mxu0 0
        %1631 = vmatpush1.bf16.msra.mxu0 0
        %1632 = vmatprep.subr.bf16.mxu0 0
        %1633 = vmatpush1.bf16.msra.mxu0 0
        %1634 = vmatprep.subr.bf16.mxu0 0
        %1635 = vmatpush1.bf16.msra.mxu0 %v1618
        %1636 = vmatprep.subr.bf16.mxu0 0
        %1637 = vmatpush2.bf16.msra.mxu0 0
        %1638 = vmatprep.subr.bf16.mxu0 0
        %1639 = vmatpush2.bf16.msra.mxu0 0
        %1640 = vmatprep.subr.bf16.mxu0 0
        %1641 = vmatpush2.bf16.msra.mxu0 0
        %1642 = vmatprep.subr.bf16.mxu0 0
        %1643 = vmatpush2.bf16.msra.mxu0 0
        %1644 = vmatprep.subr.bf16.mxu0 0
        %1645 = vmatpush2.bf16.msra.mxu0 0
        %1646 = vmatprep.subr.bf16.mxu0 0
        %1647 = vmatpush2.bf16.msra.mxu0 0
        %1648 = vmatprep.subr.bf16.mxu0 0
        %1649 = vmatpush2.bf16.msra.mxu0 0
        %1650 = vmatprep.subr.bf16.mxu0 0
        %1651 = vmatpush2.bf16.msra.mxu0 0
        %1652 = vmatprep.mubr.bf16.mxu0 0
        %1653 = vmatmul.mubr.bf16.gmra.mxu0 %v1606
        %v1654 = vpop.f32.mrf.mxu0
        %v1655 = vadd.f32 0.0, %v1654
        %v1656 = vpop.f32.mrf.mxu0
        %v1657 = vpop.f32.mrf.mxu0
        %v1658 = vadd.f32 0.0, %v1657
        %v1659 = vpop.f32.mrf.mxu0
        %1660 = vmatprep.mubr.bf16.mxu0 0
        %1661 = vmatmul.mubr.bf16.gmra.mxu0 %v1609
        %v1662 = vpop.f32.mrf.mxu0
        %v1663 = vadd.f32 0.0, %v1662
        %v1664 = vpop.f32.mrf.mxu0
        %v1665 = vpop.f32.mrf.mxu0
        %v1666 = vadd.f32 0.0, %v1665
        %v1667 = vpop.f32.mrf.mxu0
        %1668 = vmatprep.mubr.bf16.mxu0 0
        %1669 = vmatmul.mubr.bf16.gmra.mxu0 %v1612
        %v1670 = vpop.f32.mrf.mxu0
        %v1671 = vadd.f32 0.0, %v1670
        %v1672 = vpop.f32.mrf.mxu0
        %v1673 = vpop.f32.mrf.mxu0
        %v1674 = vadd.f32 0.0, %v1673
        %v1675 = vpop.f32.mrf.mxu0
        %1676 = vmatprep.mubr.bf16.mxu0 0
        %1677 = vmatmul.mubr.bf16.gmra.mxu0 %v1615
        %v1678 = vpop.f32.mrf.mxu0
        %v1679 = vadd.f32 0.0, %v1678
        %v1680 = vpop.f32.mrf.mxu0
        %v1681 = vpop.f32.mrf.mxu0
        %v1682 = vadd.f32 0.0, %v1681
        %v1683 = vpop.f32.mrf.mxu0
        %1684 = vdwg.mxu0
        %v1685 = vadd.f32 %v1580, %v1655
        %v1686 = vadd.f32 %v1581, %v1658
        %v1687 = vadd.f32 %v1582, %v1663
        %v1688 = vadd.f32 %v1583, %v1666
        %v1689 = vadd.f32 %v1584, %v1671
        %v1690 = vadd.f32 %v1585, %v1674
        %v1691 = vadd.f32 %v1586, %v1679
        %v1692 = vadd.f32 %v1587, %v1682
        %v1693 = vrot.slane %v186, 6
        %v1694 = vrot.slane %v1693, 4
        %v1695 = vrot.slane %v187, 6
        %v1696 = vsel %vm842, %v1694, %v1695
        %s1697 = scalar_lea.vmem %s1, 22
        %v1698 = vld [vmem:[%s1697] sm:$0x3]
        %v1699 = vunpack.c.l.b16 %v1696
        %v1700 = vpack.c.b16 %v879, %v878
        %v1701 = vpack.c.b16 %v881, %v880
        %v1702 = vpack.c.b16 %v883, %v882
        %v1703 = vpack.c.b16 %v1699, %v884
        %v1705 = vsel %vm328, %v1700, 0
        %v1708 = vsel %vm328, %v1701, 0
        %v1711 = vsel %vm328, %v1702, 0
        %v1714 = vsel %vm328, %v1703, 0
        %v1717 = vsel %vm341, %v1698, 0
        %1719 = vmatprep.subr.bf16.mxu0 0
        %1720 = vmatpush1.bf16.msra.mxu0 0
        %1721 = vmatprep.subr.bf16.mxu0 0
        %1722 = vmatpush1.bf16.msra.mxu0 0
        %1723 = vmatprep.subr.bf16.mxu0 0
        %1724 = vmatpush1.bf16.msra.mxu0 0
        %1725 = vmatprep.subr.bf16.mxu0 0
        %1726 = vmatpush1.bf16.msra.mxu0 0
        %1727 = vmatprep.subr.bf16.mxu0 0
        %1728 = vmatpush1.bf16.msra.mxu0 0
        %1729 = vmatprep.subr.bf16.mxu0 0
        %1730 = vmatpush1.bf16.msra.mxu0 0
        %1731 = vmatprep.subr.bf16.mxu0 0
        %1732 = vmatpush1.bf16.msra.mxu0 0
        %1733 = vmatprep.subr.bf16.mxu0 0
        %1734 = vmatpush1.bf16.msra.mxu0 %v1717
        %1735 = vmatprep.subr.bf16.mxu0 0
        %1736 = vmatpush2.bf16.msra.mxu0 0
        %1737 = vmatprep.subr.bf16.mxu0 0
        %1738 = vmatpush2.bf16.msra.mxu0 0
        %1739 = vmatprep.subr.bf16.mxu0 0
        %1740 = vmatpush2.bf16.msra.mxu0 0
        %1741 = vmatprep.subr.bf16.mxu0 0
        %1742 = vmatpush2.bf16.msra.mxu0 0
        %1743 = vmatprep.subr.bf16.mxu0 0
        %1744 = vmatpush2.bf16.msra.mxu0 0
        %1745 = vmatprep.subr.bf16.mxu0 0
        %1746 = vmatpush2.bf16.msra.mxu0 0
        %1747 = vmatprep.subr.bf16.mxu0 0
        %1748 = vmatpush2.bf16.msra.mxu0 0
        %1749 = vmatprep.subr.bf16.mxu0 0
        %1750 = vmatpush2.bf16.msra.mxu0 0
        %1751 = vmatprep.mubr.bf16.mxu0 0
        %1752 = vmatmul.mubr.bf16.gmra.mxu0 %v1705
        %v1753 = vpop.f32.mrf.mxu0
        %v1754 = vadd.f32 0.0, %v1753
        %v1755 = vpop.f32.mrf.mxu0
        %v1756 = vpop.f32.mrf.mxu0
        %v1757 = vadd.f32 0.0, %v1756
        %v1758 = vpop.f32.mrf.mxu0
        %1759 = vmatprep.mubr.bf16.mxu0 0
        %1760 = vmatmul.mubr.bf16.gmra.mxu0 %v1708
        %v1761 = vpop.f32.mrf.mxu0
        %v1762 = vadd.f32 0.0, %v1761
        %v1763 = vpop.f32.mrf.mxu0
        %v1764 = vpop.f32.mrf.mxu0
        %v1765 = vadd.f32 0.0, %v1764
        %v1766 = vpop.f32.mrf.mxu0
        %1767 = vmatprep.mubr.bf16.mxu0 0
        %1768 = vmatmul.mubr.bf16.gmra.mxu0 %v1711
        %v1769 = vpop.f32.mrf.mxu0
        %v1770 = vadd.f32 0.0, %v1769
        %v1771 = vpop.f32.mrf.mxu0
        %v1772 = vpop.f32.mrf.mxu0
        %v1773 = vadd.f32 0.0, %v1772
        %v1774 = vpop.f32.mrf.mxu0
        %1775 = vmatprep.mubr.bf16.mxu0 0
        %1776 = vmatmul.mubr.bf16.gmra.mxu0 %v1714
        %v1777 = vpop.f32.mrf.mxu0
        %v1778 = vadd.f32 0.0, %v1777
        %v1779 = vpop.f32.mrf.mxu0
        %v1780 = vpop.f32.mrf.mxu0
        %v1781 = vadd.f32 0.0, %v1780
        %v1782 = vpop.f32.mrf.mxu0
        %1783 = vdwg.mxu0
        %v1784 = vadd.f32 %v1685, %v1754
        %v1785 = vadd.f32 %v1686, %v1757
        %v1786 = vadd.f32 %v1687, %v1762
        %v1787 = vadd.f32 %v1688, %v1765
        %v1788 = vadd.f32 %v1689, %v1770
        %v1789 = vadd.f32 %v1690, %v1773
        %v1790 = vadd.f32 %v1691, %v1778
        %v1791 = vadd.f32 %v1692, %v1781
        %v1792 = vrot.slane %v1380, 6
        %v1793 = vrot.slane %v1383, 7
        %v1794 = vor.u32 %v1792, %v1793
        %v1795 = vrot.slane %v1794, 4
        %v1796 = vrot.slane %v1592, 6
        %v1797 = vrot.slane %v1389, 7
        %v1798 = vor.u32 %v1796, %v1797
        %v1799 = vsel %vm979, %v1795, %v1798
        %s1800 = scalar_lea.vmem %s1, 24
        %v1801 = vld [vmem:[%s1800] sm:$0x3]
        %v1802 = vunpack.c.l.b16 %v1799
        %v1803 = vpack.c.b16 %v1048, %v1047
        %v1804 = vpack.c.b16 %v1050, %v1049
        %v1805 = vpack.c.b16 %v1052, %v1051
        %v1806 = vpack.c.b16 %v1802, %v1053
        %v1808 = vsel %vm328, %v1803, 0
        %v1811 = vsel %vm328, %v1804, 0
        %v1814 = vsel %vm328, %v1805, 0
        %v1817 = vsel %vm328, %v1806, 0
        %v1820 = vsel %vm341, %v1801, 0
        %1822 = vmatprep.subr.bf16.mxu0 0
        %1823 = vmatpush1.bf16.msra.mxu0 0
        %1824 = vmatprep.subr.bf16.mxu0 0
        %1825 = vmatpush1.bf16.msra.mxu0 0
        %1826 = vmatprep.subr.bf16.mxu0 0
        %1827 = vmatpush1.bf16.msra.mxu0 0
        %1828 = vmatprep.subr.bf16.mxu0 0
        %1829 = vmatpush1.bf16.msra.mxu0 0
        %1830 = vmatprep.subr.bf16.mxu0 0
        %1831 = vmatpush1.bf16.msra.mxu0 0
        %1832 = vmatprep.subr.bf16.mxu0 0
        %1833 = vmatpush1.bf16.msra.mxu0 0
        %1834 = vmatprep.subr.bf16.mxu0 0
        %1835 = vmatpush1.bf16.msra.mxu0 0
        %1836 = vmatprep.subr.bf16.mxu0 0
        %1837 = vmatpush1.bf16.msra.mxu0 %v1820
        %1838 = vmatprep.subr.bf16.mxu0 0
        %1839 = vmatpush2.bf16.msra.mxu0 0
        %1840 = vmatprep.subr.bf16.mxu0 0
        %1841 = vmatpush2.bf16.msra.mxu0 0
        %1842 = vmatprep.subr.bf16.mxu0 0
        %1843 = vmatpush2.bf16.msra.mxu0 0
        %1844 = vmatprep.subr.bf16.mxu0 0
        %1845 = vmatpush2.bf16.msra.mxu0 0
        %1846 = vmatprep.subr.bf16.mxu0 0
        %1847 = vmatpush2.bf16.msra.mxu0 0
        %1848 = vmatprep.subr.bf16.mxu0 0
        %1849 = vmatpush2.bf16.msra.mxu0 0
        %1850 = vmatprep.subr.bf16.mxu0 0
        %1851 = vmatpush2.bf16.msra.mxu0 0
        %1852 = vmatprep.subr.bf16.mxu0 0
        %1853 = vmatpush2.bf16.msra.mxu0 0
        %1854 = vmatprep.mubr.bf16.mxu0 0
        %1855 = vmatmul.mubr.bf16.gmra.mxu0 %v1808
        %v1856 = vpop.f32.mrf.mxu0
        %v1857 = vadd.f32 0.0, %v1856
        %v1858 = vpop.f32.mrf.mxu0
        %v1859 = vpop.f32.mrf.mxu0
        %v1860 = vadd.f32 0.0, %v1859
        %v1861 = vpop.f32.mrf.mxu0
        %1862 = vmatprep.mubr.bf16.mxu0 0
        %1863 = vmatmul.mubr.bf16.gmra.mxu0 %v1811
        %v1864 = vpop.f32.mrf.mxu0
        %v1865 = vadd.f32 0.0, %v1864
        %v1866 = vpop.f32.mrf.mxu0
        %v1867 = vpop.f32.mrf.mxu0
        %v1868 = vadd.f32 0.0, %v1867
        %v1869 = vpop.f32.mrf.mxu0
        %1870 = vmatprep.mubr.bf16.mxu0 0
        %1871 = vmatmul.mubr.bf16.gmra.mxu0 %v1814
        %v1872 = vpop.f32.mrf.mxu0
        %v1873 = vadd.f32 0.0, %v1872
        %v1874 = vpop.f32.mrf.mxu0
        %v1875 = vpop.f32.mrf.mxu0
        %v1876 = vadd.f32 0.0, %v1875
        %v1877 = vpop.f32.mrf.mxu0
        %1878 = vmatprep.mubr.bf16.mxu0 0
        %1879 = vmatmul.mubr.bf16.gmra.mxu0 %v1817
        %v1880 = vpop.f32.mrf.mxu0
        %v1881 = vadd.f32 0.0, %v1880
        %v1882 = vpop.f32.mrf.mxu0
        %v1883 = vpop.f32.mrf.mxu0
        %v1884 = vadd.f32 0.0, %v1883
        %v1885 = vpop.f32.mrf.mxu0
        %1886 = vdwg.mxu0
        %v1887 = vadd.f32 %v1784, %v1857
        %v1888 = vadd.f32 %v1785, %v1860
        %v1889 = vadd.f32 %v1786, %v1865
        %v1890 = vadd.f32 %v1787, %v1868
        %v1891 = vadd.f32 %v1788, %v1873
        %v1892 = vadd.f32 %v1789, %v1876
        %v1893 = vadd.f32 %v1790, %v1881
        %v1894 = vadd.f32 %v1791, %v1884
        %v1895 = vrot.slane %v186, 7
        %v1896 = vrot.slane %v1895, 4
        %v1897 = vrot.slane %v187, 7
        %v1898 = vsel %vm1148, %v1896, %v1897
        %s1899 = scalar_lea.vmem %s1, 26
        %v1900 = vld [vmem:[%s1899] sm:$0x3]
        %v1901 = vunpack.c.l.b16 %v1898
        %v1902 = vpack.c.b16 %v1185, %v1184
        %v1903 = vpack.c.b16 %v1187, %v1186
        %v1904 = vpack.c.b16 %v1189, %v1188
        %v1905 = vpack.c.b16 %v1901, %v1190
        %v1907 = vsel %vm328, %v1902, 0
        %v1910 = vsel %vm328, %v1903, 0
        %v1913 = vsel %vm328, %v1904, 0
        %v1916 = vsel %vm328, %v1905, 0
        %v1919 = vsel %vm341, %v1900, 0
        %1921 = vmatprep.subr.bf16.mxu0 0
        %1922 = vmatpush1.bf16.msra.mxu0 0
        %1923 = vmatprep.subr.bf16.mxu0 0
        %1924 = vmatpush1.bf16.msra.mxu0 0
        %1925 = vmatprep.subr.bf16.mxu0 0
        %1926 = vmatpush1.bf16.msra.mxu0 0
        %1927 = vmatprep.subr.bf16.mxu0 0
        %1928 = vmatpush1.bf16.msra.mxu0 0
        %1929 = vmatprep.subr.bf16.mxu0 0
        %1930 = vmatpush1.bf16.msra.mxu0 0
        %1931 = vmatprep.subr.bf16.mxu0 0
        %1932 = vmatpush1.bf16.msra.mxu0 0
        %1933 = vmatprep.subr.bf16.mxu0 0
        %1934 = vmatpush1.bf16.msra.mxu0 0
        %1935 = vmatprep.subr.bf16.mxu0 0
        %1936 = vmatpush1.bf16.msra.mxu0 %v1919
        %1937 = vmatprep.subr.bf16.mxu0 0
        %1938 = vmatpush2.bf16.msra.mxu0 0
        %1939 = vmatprep.subr.bf16.mxu0 0
        %1940 = vmatpush2.bf16.msra.mxu0 0
        %1941 = vmatprep.subr.bf16.mxu0 0
        %1942 = vmatpush2.bf16.msra.mxu0 0
        %1943 = vmatprep.subr.bf16.mxu0 0
        %1944 = vmatpush2.bf16.msra.mxu0 0
        %1945 = vmatprep.subr.bf16.mxu0 0
        %1946 = vmatpush2.bf16.msra.mxu0 0
        %1947 = vmatprep.subr.bf16.mxu0 0
        %1948 = vmatpush2.bf16.msra.mxu0 0
        %1949 = vmatprep.subr.bf16.mxu0 0
        %1950 = vmatpush2.bf16.msra.mxu0 0
        %1951 = vmatprep.subr.bf16.mxu0 0
        %1952 = vmatpush2.bf16.msra.mxu0 0
        %1953 = vmatprep.mubr.bf16.mxu0 0
        %1954 = vmatmul.mubr.bf16.gmra.mxu0 %v1907
        %v1955 = vpop.f32.mrf.mxu0
        %v1956 = vadd.f32 0.0, %v1955
        %v1957 = vpop.f32.mrf.mxu0
        %v1958 = vpop.f32.mrf.mxu0
        %v1959 = vadd.f32 0.0, %v1958
        %v1960 = vpop.f32.mrf.mxu0
        %1961 = vmatprep.mubr.bf16.mxu0 0
        %1962 = vmatmul.mubr.bf16.gmra.mxu0 %v1910
        %v1963 = vpop.f32.mrf.mxu0
        %v1964 = vadd.f32 0.0, %v1963
        %v1965 = vpop.f32.mrf.mxu0
        %v1966 = vpop.f32.mrf.mxu0
        %v1967 = vadd.f32 0.0, %v1966
        %v1968 = vpop.f32.mrf.mxu0
        %1969 = vmatprep.mubr.bf16.mxu0 0
        %1970 = vmatmul.mubr.bf16.gmra.mxu0 %v1913
        %v1971 = vpop.f32.mrf.mxu0
        %v1972 = vadd.f32 0.0, %v1971
        %v1973 = vpop.f32.mrf.mxu0
        %v1974 = vpop.f32.mrf.mxu0
        %v1975 = vadd.f32 0.0, %v1974
        %v1976 = vpop.f32.mrf.mxu0
        %1977 = vmatprep.mubr.bf16.mxu0 0
        %1978 = vmatmul.mubr.bf16.gmra.mxu0 %v1916
        %v1979 = vpop.f32.mrf.mxu0
        %v1980 = vadd.f32 0.0, %v1979
        %v1981 = vpop.f32.mrf.mxu0
        %v1982 = vpop.f32.mrf.mxu0
        %v1983 = vadd.f32 0.0, %v1982
        %v1984 = vpop.f32.mrf.mxu0
        %1985 = vdwg.mxu0
        %v1986 = vadd.f32 %v1887, %v1956
        %v1987 = vadd.f32 %v1888, %v1959
        %v1988 = vadd.f32 %v1889, %v1964
        %v1989 = vadd.f32 %v1890, %v1967
        %v1990 = vadd.f32 %v1891, %v1972
        %v1991 = vadd.f32 %v1892, %v1975
        %v1992 = vadd.f32 %v1893, %v1980
        %v1993 = vadd.f32 %v1894, %v1983
        %s1994 = scalar_lea.vmem %s1, 28
        %v1995 = vld [vmem:[%s1994] sm:$0x3]
        %v1997 = vunpack.c.l.b16 %v188
        %v1998 = vpack.c.b16 %v1997, %v1286
        %v2000 = vsel %vm328, %v1998, 0
        %v2003 = vsel %vm341, %v1995, 0
        %2005 = vmatprep.subr.bf16.mxu0 0
        %2006 = vmatpush1.bf16.msra.mxu0 0
        %2007 = vmatprep.subr.bf16.mxu0 0
        %2008 = vmatpush1.bf16.msra.mxu0 0
        %2009 = vmatprep.subr.bf16.mxu0 0
        %2010 = vmatpush1.bf16.msra.mxu0 0
        %2011 = vmatprep.subr.bf16.mxu0 0
        %2012 = vmatpush1.bf16.msra.mxu0 0
        %2013 = vmatprep.subr.bf16.mxu0 0
        %2014 = vmatpush1.bf16.msra.mxu0 0
        %2015 = vmatprep.subr.bf16.mxu0 0
        %2016 = vmatpush1.bf16.msra.mxu0 0
        %2017 = vmatprep.subr.bf16.mxu0 0
        %2018 = vmatpush1.bf16.msra.mxu0 0
        %2019 = vmatprep.subr.bf16.mxu0 0
        %2020 = vmatpush1.bf16.msra.mxu0 %v2003
        %2021 = vmatprep.subr.bf16.mxu0 0
        %2022 = vmatpush2.bf16.msra.mxu0 0
        %2023 = vmatprep.subr.bf16.mxu0 0
        %2024 = vmatpush2.bf16.msra.mxu0 0
        %2025 = vmatprep.subr.bf16.mxu0 0
        %2026 = vmatpush2.bf16.msra.mxu0 0
        %2027 = vmatprep.subr.bf16.mxu0 0
        %2028 = vmatpush2.bf16.msra.mxu0 0
        %2029 = vmatprep.subr.bf16.mxu0 0
        %2030 = vmatpush2.bf16.msra.mxu0 0
        %2031 = vmatprep.subr.bf16.mxu0 0
        %2032 = vmatpush2.bf16.msra.mxu0 0
        %2033 = vmatprep.subr.bf16.mxu0 0
        %2034 = vmatpush2.bf16.msra.mxu0 0
        %2035 = vmatprep.subr.bf16.mxu0 0
        %2036 = vmatpush2.bf16.msra.mxu0 0
        %2037 = vmatprep.mubr.bf16.mxu0 0
        %2038 = vmatmul.mubr.bf16.gmra.mxu0 %v434
        %v2039 = vpop.f32.mrf.mxu0
        %v2040 = vadd.f32 0.0, %v2039
        %v2041 = vpop.f32.mrf.mxu0
        %v2042 = vpop.f32.mrf.mxu0
        %v2043 = vadd.f32 0.0, %v2042
        %v2044 = vpop.f32.mrf.mxu0
        %2045 = vmatprep.mubr.bf16.mxu0 0
        %2046 = vmatmul.mubr.bf16.gmra.mxu0 %v437
        %v2047 = vpop.f32.mrf.mxu0
        %v2048 = vadd.f32 0.0, %v2047
        %v2049 = vpop.f32.mrf.mxu0
        %v2050 = vpop.f32.mrf.mxu0
        %v2051 = vadd.f32 0.0, %v2050
        %v2052 = vpop.f32.mrf.mxu0
        %2053 = vmatprep.mubr.bf16.mxu0 0
        %2054 = vmatmul.mubr.bf16.gmra.mxu0 %v440
        %v2055 = vpop.f32.mrf.mxu0
        %v2056 = vadd.f32 0.0, %v2055
        %v2057 = vpop.f32.mrf.mxu0
        %v2058 = vpop.f32.mrf.mxu0
        %v2059 = vadd.f32 0.0, %v2058
        %v2060 = vpop.f32.mrf.mxu0
        %2061 = vmatprep.mubr.bf16.mxu0 0
        %2062 = vmatmul.mubr.bf16.gmra.mxu0 %v2000
        %v2063 = vpop.f32.mrf.mxu0
        %v2064 = vadd.f32 0.0, %v2063
        %v2065 = vpop.f32.mrf.mxu0
        %v2066 = vpop.f32.mrf.mxu0
        %v2067 = vadd.f32 0.0, %v2066
        %v2068 = vpop.f32.mrf.mxu0
        %2069 = vdwg.mxu0
        %v2070 = vadd.f32 %v1986, %v2040
        %v2071 = vadd.f32 %v1987, %v2043
        %v2072 = vadd.f32 %v1988, %v2048
        %v2073 = vadd.f32 %v1989, %v2051
        %v2074 = vadd.f32 %v1990, %v2056
        %v2075 = vadd.f32 %v1991, %v2059
        %v2076 = vadd.f32 %v1992, %v2064
        %v2077 = vadd.f32 %v1993, %v2067
        %v2079 = vshrl.u32 %v188, 16
        %v2081 = vrot.slane %v2079, 4
        %v2082 = vshll.u32 %v188, 16
        %v2084 = vrot.slane %v2082, 5
        %v2085 = vor.u32 %v2081, %v2084
        %v2086 = vrot.slane %v2085, 4
        %v2088 = vshll.u32 %v189, 16
        %v2090 = vrot.slane %v2088, 5
        %v2091 = vsel %vm201, %v2086, %v2090
        %s2092 = scalar_lea.vmem %s1, 30
        %v2093 = vld [vmem:[%s2092] sm:$0x3]
        %v2094 = vunpack.c.l.b16 %v2091
        %v2095 = vpack.c.b16 %v2094, %v1395
        %v2097 = vsel %vm328, %v2095, 0
        %v2100 = vsel %vm341, %v2093, 0
        %2102 = vmatprep.subr.bf16.mxu0 0
        %2103 = vmatpush1.bf16.msra.mxu0 0
        %2104 = vmatprep.subr.bf16.mxu0 0
        %2105 = vmatpush1.bf16.msra.mxu0 0
        %2106 = vmatprep.subr.bf16.mxu0 0
        %2107 = vmatpush1.bf16.msra.mxu0 0
        %2108 = vmatprep.subr.bf16.mxu0 0
        %2109 = vmatpush1.bf16.msra.mxu0 0
        %2110 = vmatprep.subr.bf16.mxu0 0
        %2111 = vmatpush1.bf16.msra.mxu0 0
        %2112 = vmatprep.subr.bf16.mxu0 0
        %2113 = vmatpush1.bf16.msra.mxu0 0
        %2114 = vmatprep.subr.bf16.mxu0 0
        %2115 = vmatpush1.bf16.msra.mxu0 0
        %2116 = vmatprep.subr.bf16.mxu0 0
        %2117 = vmatpush1.bf16.msra.mxu0 %v2100
        %2118 = vmatprep.subr.bf16.mxu0 0
        %2119 = vmatpush2.bf16.msra.mxu0 0
        %2120 = vmatprep.subr.bf16.mxu0 0
        %2121 = vmatpush2.bf16.msra.mxu0 0
        %2122 = vmatprep.subr.bf16.mxu0 0
        %2123 = vmatpush2.bf16.msra.mxu0 0
        %2124 = vmatprep.subr.bf16.mxu0 0
        %2125 = vmatpush2.bf16.msra.mxu0 0
        %2126 = vmatprep.subr.bf16.mxu0 0
        %2127 = vmatpush2.bf16.msra.mxu0 0
        %2128 = vmatprep.subr.bf16.mxu0 0
        %2129 = vmatpush2.bf16.msra.mxu0 0
        %2130 = vmatprep.subr.bf16.mxu0 0
        %2131 = vmatpush2.bf16.msra.mxu0 0
        %2132 = vmatprep.subr.bf16.mxu0 0
        %2133 = vmatpush2.bf16.msra.mxu0 0
        %2134 = vmatprep.mubr.bf16.mxu0 0
        %2135 = vmatmul.mubr.bf16.gmra.mxu0 %v333
        %v2136 = vpop.f32.mrf.mxu0
        %v2137 = vadd.f32 0.0, %v2136
        %v2138 = vpop.f32.mrf.mxu0
        %v2139 = vpop.f32.mrf.mxu0
        %v2140 = vadd.f32 0.0, %v2139
        %v2141 = vpop.f32.mrf.mxu0
        %2142 = vmatprep.mubr.bf16.mxu0 0
        %2143 = vmatmul.mubr.bf16.gmra.mxu0 %v336
        %v2144 = vpop.f32.mrf.mxu0
        %v2145 = vadd.f32 0.0, %v2144
        %v2146 = vpop.f32.mrf.mxu0
        %v2147 = vpop.f32.mrf.mxu0
        %v2148 = vadd.f32 0.0, %v2147
        %v2149 = vpop.f32.mrf.mxu0
        %2150 = vmatprep.mubr.bf16.mxu0 0
        %2151 = vmatmul.mubr.bf16.gmra.mxu0 %v339
        %v2152 = vpop.f32.mrf.mxu0
        %v2153 = vadd.f32 0.0, %v2152
        %v2154 = vpop.f32.mrf.mxu0
        %v2155 = vpop.f32.mrf.mxu0
        %v2156 = vadd.f32 0.0, %v2155
        %v2157 = vpop.f32.mrf.mxu0
        %2158 = vmatprep.mubr.bf16.mxu0 0
        %2159 = vmatmul.mubr.bf16.gmra.mxu0 %v2097
        %v2160 = vpop.f32.mrf.mxu0
        %v2161 = vadd.f32 0.0, %v2160
        %v2162 = vpop.f32.mrf.mxu0
        %v2163 = vpop.f32.mrf.mxu0
        %v2164 = vadd.f32 0.0, %v2163
        %v2165 = vpop.f32.mrf.mxu0
        %2166 = vdwg.mxu0
        %v2167 = vadd.f32 %v2070, %v2137
        %v2168 = vadd.f32 %v2071, %v2140
        %v2169 = vadd.f32 %v2072, %v2145
        %v2170 = vadd.f32 %v2073, %v2148
        %v2171 = vadd.f32 %v2074, %v2153
        %v2172 = vadd.f32 %v2075, %v2156
        %v2173 = vadd.f32 %v2076, %v2161
        %v2174 = vadd.f32 %v2077, %v2164
        %v2176 = vrot.slane %v188, 5
        %v2177 = vrot.slane %v2176, 4
        %v2178 = vrot.slane %v189, 5
        %v2179 = vsel %vm520, %v2177, %v2178
        %s2180 = scalar_lea.vmem %s1, 32
        %v2181 = vld [vmem:[%s2180] sm:$0x3]
        %v2182 = vunpack.c.l.b16 %v2179
        %v2183 = vpack.c.b16 %v2182, %v1495
        %v2185 = vsel %vm328, %v2183, 0
        %v2188 = vsel %vm341, %v2181, 0
        %2190 = vmatprep.subr.bf16.mxu0 0
        %2191 = vmatpush1.bf16.msra.mxu0 0
        %2192 = vmatprep.subr.bf16.mxu0 0
        %2193 = vmatpush1.bf16.msra.mxu0 0
        %2194 = vmatprep.subr.bf16.mxu0 0
        %2195 = vmatpush1.bf16.msra.mxu0 0
        %2196 = vmatprep.subr.bf16.mxu0 0
        %2197 = vmatpush1.bf16.msra.mxu0 0
        %2198 = vmatprep.subr.bf16.mxu0 0
        %2199 = vmatpush1.bf16.msra.mxu0 0
        %2200 = vmatprep.subr.bf16.mxu0 0
        %2201 = vmatpush1.bf16.msra.mxu0 0
        %2202 = vmatprep.subr.bf16.mxu0 0
        %2203 = vmatpush1.bf16.msra.mxu0 0
        %2204 = vmatprep.subr.bf16.mxu0 0
        %2205 = vmatpush1.bf16.msra.mxu0 %v2188
        %2206 = vmatprep.subr.bf16.mxu0 0
        %2207 = vmatpush2.bf16.msra.mxu0 0
        %2208 = vmatprep.subr.bf16.mxu0 0
        %2209 = vmatpush2.bf16.msra.mxu0 0
        %2210 = vmatprep.subr.bf16.mxu0 0
        %2211 = vmatpush2.bf16.msra.mxu0 0
        %2212 = vmatprep.subr.bf16.mxu0 0
        %2213 = vmatpush2.bf16.msra.mxu0 0
        %2214 = vmatprep.subr.bf16.mxu0 0
        %2215 = vmatpush2.bf16.msra.mxu0 0
        %2216 = vmatprep.subr.bf16.mxu0 0
        %2217 = vmatpush2.bf16.msra.mxu0 0
        %2218 = vmatprep.subr.bf16.mxu0 0
        %2219 = vmatpush2.bf16.msra.mxu0 0
        %2220 = vmatprep.subr.bf16.mxu0 0
        %2221 = vmatpush2.bf16.msra.mxu0 0
        %2222 = vmatprep.mubr.bf16.mxu0 0
        %2223 = vmatmul.mubr.bf16.gmra.mxu0 %v571
        %v2224 = vpop.f32.mrf.mxu0
        %v2225 = vadd.f32 0.0, %v2224
        %v2226 = vpop.f32.mrf.mxu0
        %v2227 = vpop.f32.mrf.mxu0
        %v2228 = vadd.f32 0.0, %v2227
        %v2229 = vpop.f32.mrf.mxu0
        %2230 = vmatprep.mubr.bf16.mxu0 0
        %2231 = vmatmul.mubr.bf16.gmra.mxu0 %v574
        %v2232 = vpop.f32.mrf.mxu0
        %v2233 = vadd.f32 0.0, %v2232
        %v2234 = vpop.f32.mrf.mxu0
        %v2235 = vpop.f32.mrf.mxu0
        %v2236 = vadd.f32 0.0, %v2235
        %v2237 = vpop.f32.mrf.mxu0
        %2238 = vmatprep.mubr.bf16.mxu0 0
        %2239 = vmatmul.mubr.bf16.gmra.mxu0 %v577
        %v2240 = vpop.f32.mrf.mxu0
        %v2241 = vadd.f32 0.0, %v2240
        %v2242 = vpop.f32.mrf.mxu0
        %v2243 = vpop.f32.mrf.mxu0
        %v2244 = vadd.f32 0.0, %v2243
        %v2245 = vpop.f32.mrf.mxu0
        %2246 = vmatprep.mubr.bf16.mxu0 0
        %2247 = vmatmul.mubr.bf16.gmra.mxu0 %v2185
        %v2248 = vpop.f32.mrf.mxu0
        %v2249 = vadd.f32 0.0, %v2248
        %v2250 = vpop.f32.mrf.mxu0
        %v2251 = vpop.f32.mrf.mxu0
        %v2252 = vadd.f32 0.0, %v2251
        %v2253 = vpop.f32.mrf.mxu0
        %2254 = vdwg.mxu0
        %v2255 = vadd.f32 %v2167, %v2225
        %v2256 = vadd.f32 %v2168, %v2228
        %v2257 = vadd.f32 %v2169, %v2233
        %v2258 = vadd.f32 %v2170, %v2236
        %v2259 = vadd.f32 %v2171, %v2241
        %v2260 = vadd.f32 %v2172, %v2244
        %v2261 = vadd.f32 %v2173, %v2249
        %v2262 = vadd.f32 %v2174, %v2252
        %v2263 = vrot.slane %v2079, 5
        %v2264 = vrot.slane %v2082, 6
        %v2265 = vor.u32 %v2263, %v2264
        %v2266 = vrot.slane %v2265, 4
        %v2267 = vshrl.u32 %v189, 16
        %v2269 = vrot.slane %v2267, 5
        %v2270 = vrot.slane %v2088, 6
        %v2271 = vor.u32 %v2269, %v2270
        %v2272 = vsel %vm657, %v2266, %v2271
        %s2273 = scalar_lea.vmem %s1, 34
        %v2274 = vld [vmem:[%s2273] sm:$0x3]
        %v2275 = vunpack.c.l.b16 %v2272
        %v2276 = vpack.c.b16 %v2275, %v1600
        %v2278 = vsel %vm328, %v2276, 0
        %v2281 = vsel %vm341, %v2274, 0
        %2283 = vmatprep.subr.bf16.mxu0 0
        %2284 = vmatpush1.bf16.msra.mxu0 0
        %2285 = vmatprep.subr.bf16.mxu0 0
        %2286 = vmatpush1.bf16.msra.mxu0 0
        %2287 = vmatprep.subr.bf16.mxu0 0
        %2288 = vmatpush1.bf16.msra.mxu0 0
        %2289 = vmatprep.subr.bf16.mxu0 0
        %2290 = vmatpush1.bf16.msra.mxu0 0
        %2291 = vmatprep.subr.bf16.mxu0 0
        %2292 = vmatpush1.bf16.msra.mxu0 0
        %2293 = vmatprep.subr.bf16.mxu0 0
        %2294 = vmatpush1.bf16.msra.mxu0 0
        %2295 = vmatprep.subr.bf16.mxu0 0
        %2296 = vmatpush1.bf16.msra.mxu0 0
        %2297 = vmatprep.subr.bf16.mxu0 0
        %2298 = vmatpush1.bf16.msra.mxu0 %v2281
        %2299 = vmatprep.subr.bf16.mxu0 0
        %2300 = vmatpush2.bf16.msra.mxu0 0
        %2301 = vmatprep.subr.bf16.mxu0 0
        %2302 = vmatpush2.bf16.msra.mxu0 0
        %2303 = vmatprep.subr.bf16.mxu0 0
        %2304 = vmatpush2.bf16.msra.mxu0 0
        %2305 = vmatprep.subr.bf16.mxu0 0
        %2306 = vmatpush2.bf16.msra.mxu0 0
        %2307 = vmatprep.subr.bf16.mxu0 0
        %2308 = vmatpush2.bf16.msra.mxu0 0
        %2309 = vmatprep.subr.bf16.mxu0 0
        %2310 = vmatpush2.bf16.msra.mxu0 0
        %2311 = vmatprep.subr.bf16.mxu0 0
        %2312 = vmatpush2.bf16.msra.mxu0 0
        %2313 = vmatprep.subr.bf16.mxu0 0
        %2314 = vmatpush2.bf16.msra.mxu0 0
        %2315 = vmatprep.mubr.bf16.mxu0 0
        %2316 = vmatmul.mubr.bf16.gmra.mxu0 %v756
        %v2317 = vpop.f32.mrf.mxu0
        %v2318 = vadd.f32 0.0, %v2317
        %v2319 = vpop.f32.mrf.mxu0
        %v2320 = vpop.f32.mrf.mxu0
        %v2321 = vadd.f32 0.0, %v2320
        %v2322 = vpop.f32.mrf.mxu0
        %2323 = vmatprep.mubr.bf16.mxu0 0
        %2324 = vmatmul.mubr.bf16.gmra.mxu0 %v759
        %v2325 = vpop.f32.mrf.mxu0
        %v2326 = vadd.f32 0.0, %v2325
        %v2327 = vpop.f32.mrf.mxu0
        %v2328 = vpop.f32.mrf.mxu0
        %v2329 = vadd.f32 0.0, %v2328
        %v2330 = vpop.f32.mrf.mxu0
        %2331 = vmatprep.mubr.bf16.mxu0 0
        %2332 = vmatmul.mubr.bf16.gmra.mxu0 %v762
        %v2333 = vpop.f32.mrf.mxu0
        %v2334 = vadd.f32 0.0, %v2333
        %v2335 = vpop.f32.mrf.mxu0
        %v2336 = vpop.f32.mrf.mxu0
        %v2337 = vadd.f32 0.0, %v2336
        %v2338 = vpop.f32.mrf.mxu0
        %2339 = vmatprep.mubr.bf16.mxu0 0
        %2340 = vmatmul.mubr.bf16.gmra.mxu0 %v2278
        %v2341 = vpop.f32.mrf.mxu0
        %v2342 = vadd.f32 0.0, %v2341
        %v2343 = vpop.f32.mrf.mxu0
        %v2344 = vpop.f32.mrf.mxu0
        %v2345 = vadd.f32 0.0, %v2344
        %v2346 = vpop.f32.mrf.mxu0
        %2347 = vdwg.mxu0
        %v2348 = vadd.f32 %v2255, %v2318
        %v2349 = vadd.f32 %v2256, %v2321
        %v2350 = vadd.f32 %v2257, %v2326
        %v2351 = vadd.f32 %v2258, %v2329
        %v2352 = vadd.f32 %v2259, %v2334
        %v2353 = vadd.f32 %v2260, %v2337
        %v2354 = vadd.f32 %v2261, %v2342
        %v2355 = vadd.f32 %v2262, %v2345
        %v2356 = vrot.slane %v188, 6
        %v2357 = vrot.slane %v2356, 4
        %v2358 = vrot.slane %v189, 6
        %v2359 = vsel %vm842, %v2357, %v2358
        %s2360 = scalar_lea.vmem %s1, 36
        %v2361 = vld [vmem:[%s2360] sm:$0x3]
        %v2362 = vunpack.c.l.b16 %v2359
        %v2363 = vpack.c.b16 %v2362, %v1699
        %v2365 = vsel %vm328, %v2363, 0
        %v2368 = vsel %vm341, %v2361, 0
        %2370 = vmatprep.subr.bf16.mxu0 0
        %2371 = vmatpush1.bf16.msra.mxu0 0
        %2372 = vmatprep.subr.bf16.mxu0 0
        %2373 = vmatpush1.bf16.msra.mxu0 0
        %2374 = vmatprep.subr.bf16.mxu0 0
        %2375 = vmatpush1.bf16.msra.mxu0 0
        %2376 = vmatprep.subr.bf16.mxu0 0
        %2377 = vmatpush1.bf16.msra.mxu0 0
        %2378 = vmatprep.subr.bf16.mxu0 0
        %2379 = vmatpush1.bf16.msra.mxu0 0
        %2380 = vmatprep.subr.bf16.mxu0 0
        %2381 = vmatpush1.bf16.msra.mxu0 0
        %2382 = vmatprep.subr.bf16.mxu0 0
        %2383 = vmatpush1.bf16.msra.mxu0 0
        %2384 = vmatprep.subr.bf16.mxu0 0
        %2385 = vmatpush1.bf16.msra.mxu0 %v2368
        %2386 = vmatprep.subr.bf16.mxu0 0
        %2387 = vmatpush2.bf16.msra.mxu0 0
        %2388 = vmatprep.subr.bf16.mxu0 0
        %2389 = vmatpush2.bf16.msra.mxu0 0
        %2390 = vmatprep.subr.bf16.mxu0 0
        %2391 = vmatpush2.bf16.msra.mxu0 0
        %2392 = vmatprep.subr.bf16.mxu0 0
        %2393 = vmatpush2.bf16.msra.mxu0 0
        %2394 = vmatprep.subr.bf16.mxu0 0
        %2395 = vmatpush2.bf16.msra.mxu0 0
        %2396 = vmatprep.subr.bf16.mxu0 0
        %2397 = vmatpush2.bf16.msra.mxu0 0
        %2398 = vmatprep.subr.bf16.mxu0 0
        %2399 = vmatpush2.bf16.msra.mxu0 0
        %2400 = vmatprep.subr.bf16.mxu0 0
        %2401 = vmatpush2.bf16.msra.mxu0 0
        %2402 = vmatprep.mubr.bf16.mxu0 0
        %2403 = vmatmul.mubr.bf16.gmra.mxu0 %v893
        %v2404 = vpop.f32.mrf.mxu0
        %v2405 = vadd.f32 0.0, %v2404
        %v2406 = vpop.f32.mrf.mxu0
        %v2407 = vpop.f32.mrf.mxu0
        %v2408 = vadd.f32 0.0, %v2407
        %v2409 = vpop.f32.mrf.mxu0
        %2410 = vmatprep.mubr.bf16.mxu0 0
        %2411 = vmatmul.mubr.bf16.gmra.mxu0 %v896
        %v2412 = vpop.f32.mrf.mxu0
        %v2413 = vadd.f32 0.0, %v2412
        %v2414 = vpop.f32.mrf.mxu0
        %v2415 = vpop.f32.mrf.mxu0
        %v2416 = vadd.f32 0.0, %v2415
        %v2417 = vpop.f32.mrf.mxu0
        %2418 = vmatprep.mubr.bf16.mxu0 0
        %2419 = vmatmul.mubr.bf16.gmra.mxu0 %v899
        %v2420 = vpop.f32.mrf.mxu0
        %v2421 = vadd.f32 0.0, %v2420
        %v2422 = vpop.f32.mrf.mxu0
        %v2423 = vpop.f32.mrf.mxu0
        %v2424 = vadd.f32 0.0, %v2423
        %v2425 = vpop.f32.mrf.mxu0
        %2426 = vmatprep.mubr.bf16.mxu0 0
        %2427 = vmatmul.mubr.bf16.gmra.mxu0 %v2365
        %v2428 = vpop.f32.mrf.mxu0
        %v2429 = vadd.f32 0.0, %v2428
        %v2430 = vpop.f32.mrf.mxu0
        %v2431 = vpop.f32.mrf.mxu0
        %v2432 = vadd.f32 0.0, %v2431
        %v2433 = vpop.f32.mrf.mxu0
        %2434 = vdwg.mxu0
        %v2435 = vadd.f32 %v2348, %v2405
        %v2436 = vadd.f32 %v2349, %v2408
        %v2437 = vadd.f32 %v2350, %v2413
        %v2438 = vadd.f32 %v2351, %v2416
        %v2439 = vadd.f32 %v2352, %v2421
        %v2440 = vadd.f32 %v2353, %v2424
        %v2441 = vadd.f32 %v2354, %v2429
        %v2442 = vadd.f32 %v2355, %v2432
        %v2443 = vrot.slane %v2079, 6
        %v2444 = vrot.slane %v2082, 7
        %v2445 = vor.u32 %v2443, %v2444
        %v2446 = vrot.slane %v2445, 4
        %v2447 = vrot.slane %v2267, 6
        %v2448 = vrot.slane %v2088, 7
        %v2449 = vor.u32 %v2447, %v2448
        %v2450 = vsel %vm979, %v2446, %v2449
        %s2451 = scalar_lea.vmem %s1, 38
        %v2452 = vld [vmem:[%s2451] sm:$0x3]
        %v2453 = vunpack.c.l.b16 %v2450
        %v2454 = vpack.c.b16 %v2453, %v1802
        %v2456 = vsel %vm328, %v2454, 0
        %v2459 = vsel %vm341, %v2452, 0
        %2461 = vmatprep.subr.bf16.mxu0 0
        %2462 = vmatpush1.bf16.msra.mxu0 0
        %2463 = vmatprep.subr.bf16.mxu0 0
        %2464 = vmatpush1.bf16.msra.mxu0 0
        %2465 = vmatprep.subr.bf16.mxu0 0
        %2466 = vmatpush1.bf16.msra.mxu0 0
        %2467 = vmatprep.subr.bf16.mxu0 0
        %2468 = vmatpush1.bf16.msra.mxu0 0
        %2469 = vmatprep.subr.bf16.mxu0 0
        %2470 = vmatpush1.bf16.msra.mxu0 0
        %2471 = vmatprep.subr.bf16.mxu0 0
        %2472 = vmatpush1.bf16.msra.mxu0 0
        %2473 = vmatprep.subr.bf16.mxu0 0
        %2474 = vmatpush1.bf16.msra.mxu0 0
        %2475 = vmatprep.subr.bf16.mxu0 0
        %2476 = vmatpush1.bf16.msra.mxu0 %v2459
        %2477 = vmatprep.subr.bf16.mxu0 0
        %2478 = vmatpush2.bf16.msra.mxu0 0
        %2479 = vmatprep.subr.bf16.mxu0 0
        %2480 = vmatpush2.bf16.msra.mxu0 0
        %2481 = vmatprep.subr.bf16.mxu0 0
        %2482 = vmatpush2.bf16.msra.mxu0 0
        %2483 = vmatprep.subr.bf16.mxu0 0
        %2484 = vmatpush2.bf16.msra.mxu0 0
        %2485 = vmatprep.subr.bf16.mxu0 0
        %2486 = vmatpush2.bf16.msra.mxu0 0
        %2487 = vmatprep.subr.bf16.mxu0 0
        %2488 = vmatpush2.bf16.msra.mxu0 0
        %2489 = vmatprep.subr.bf16.mxu0 0
        %2490 = vmatpush2.bf16.msra.mxu0 0
        %2491 = vmatprep.subr.bf16.mxu0 0
        %2492 = vmatpush2.bf16.msra.mxu0 0
        %2493 = vmatprep.mubr.bf16.mxu0 0
        %2494 = vmatmul.mubr.bf16.gmra.mxu0 %v1062
        %v2495 = vpop.f32.mrf.mxu0
        %v2496 = vadd.f32 0.0, %v2495
        %v2497 = vpop.f32.mrf.mxu0
        %v2498 = vpop.f32.mrf.mxu0
        %v2499 = vadd.f32 0.0, %v2498
        %v2500 = vpop.f32.mrf.mxu0
        %2501 = vmatprep.mubr.bf16.mxu0 0
        %2502 = vmatmul.mubr.bf16.gmra.mxu0 %v1065
        %v2503 = vpop.f32.mrf.mxu0
        %v2504 = vadd.f32 0.0, %v2503
        %v2505 = vpop.f32.mrf.mxu0
        %v2506 = vpop.f32.mrf.mxu0
        %v2507 = vadd.f32 0.0, %v2506
        %v2508 = vpop.f32.mrf.mxu0
        %2509 = vmatprep.mubr.bf16.mxu0 0
        %2510 = vmatmul.mubr.bf16.gmra.mxu0 %v1068
        %v2511 = vpop.f32.mrf.mxu0
        %v2512 = vadd.f32 0.0, %v2511
        %v2513 = vpop.f32.mrf.mxu0
        %v2514 = vpop.f32.mrf.mxu0
        %v2515 = vadd.f32 0.0, %v2514
        %v2516 = vpop.f32.mrf.mxu0
        %2517 = vmatprep.mubr.bf16.mxu0 0
        %2518 = vmatmul.mubr.bf16.gmra.mxu0 %v2456
        %v2519 = vpop.f32.mrf.mxu0
        %v2520 = vadd.f32 0.0, %v2519
        %v2521 = vpop.f32.mrf.mxu0
        %v2522 = vpop.f32.mrf.mxu0
        %v2523 = vadd.f32 0.0, %v2522
        %v2524 = vpop.f32.mrf.mxu0
        %2525 = vdwg.mxu0
        %v2526 = vadd.f32 %v2435, %v2496
        %v2527 = vadd.f32 %v2436, %v2499
        %v2528 = vadd.f32 %v2437, %v2504
        %v2529 = vadd.f32 %v2438, %v2507
        %v2530 = vadd.f32 %v2439, %v2512
        %v2531 = vadd.f32 %v2440, %v2515
        %v2532 = vadd.f32 %v2441, %v2520
        %v2533 = vadd.f32 %v2442, %v2523
        %v2534 = vrot.slane %v188, 7
        %v2535 = vrot.slane %v2534, 4
        %v2536 = vrot.slane %v189, 7
        %v2537 = vsel %vm1148, %v2535, %v2536
        %s2538 = scalar_lea.vmem %s1, 40
        %v2539 = vld [vmem:[%s2538] sm:$0x3]
        %v2540 = vunpack.c.l.b16 %v2537
        %v2541 = vpack.c.b16 %v2540, %v1901
        %v2543 = vsel %vm328, %v2541, 0
        %v2546 = vsel %vm341, %v2539, 0
        %2548 = vmatprep.subr.bf16.mxu0 0
        %2549 = vmatpush1.bf16.msra.mxu0 0
        %2550 = vmatprep.subr.bf16.mxu0 0
        %2551 = vmatpush1.bf16.msra.mxu0 0
        %2552 = vmatprep.subr.bf16.mxu0 0
        %2553 = vmatpush1.bf16.msra.mxu0 0
        %2554 = vmatprep.subr.bf16.mxu0 0
        %2555 = vmatpush1.bf16.msra.mxu0 0
        %2556 = vmatprep.subr.bf16.mxu0 0
        %2557 = vmatpush1.bf16.msra.mxu0 0
        %2558 = vmatprep.subr.bf16.mxu0 0
        %2559 = vmatpush1.bf16.msra.mxu0 0
        %2560 = vmatprep.subr.bf16.mxu0 0
        %2561 = vmatpush1.bf16.msra.mxu0 0
        %2562 = vmatprep.subr.bf16.mxu0 0
        %2563 = vmatpush1.bf16.msra.mxu0 %v2546
        %2564 = vmatprep.subr.bf16.mxu0 0
        %2565 = vmatpush2.bf16.msra.mxu0 0
        %2566 = vmatprep.subr.bf16.mxu0 0
        %2567 = vmatpush2.bf16.msra.mxu0 0
        %2568 = vmatprep.subr.bf16.mxu0 0
        %2569 = vmatpush2.bf16.msra.mxu0 0
        %2570 = vmatprep.subr.bf16.mxu0 0
        %2571 = vmatpush2.bf16.msra.mxu0 0
        %2572 = vmatprep.subr.bf16.mxu0 0
        %2573 = vmatpush2.bf16.msra.mxu0 0
        %2574 = vmatprep.subr.bf16.mxu0 0
        %2575 = vmatpush2.bf16.msra.mxu0 0
        %2576 = vmatprep.subr.bf16.mxu0 0
        %2577 = vmatpush2.bf16.msra.mxu0 0
        %2578 = vmatprep.subr.bf16.mxu0 0
        %2579 = vmatpush2.bf16.msra.mxu0 0
        %2580 = vmatprep.mubr.bf16.mxu0 0
        %2581 = vmatmul.mubr.bf16.gmra.mxu0 %v1199
        %v2582 = vpop.f32.mrf.mxu0
        %v2583 = vadd.f32 0.0, %v2582
        %v2584 = vpop.f32.mrf.mxu0
        %v2585 = vpop.f32.mrf.mxu0
        %v2586 = vadd.f32 0.0, %v2585
        %v2587 = vpop.f32.mrf.mxu0
        %2588 = vmatprep.mubr.bf16.mxu0 0
        %2589 = vmatmul.mubr.bf16.gmra.mxu0 %v1202
        %v2590 = vpop.f32.mrf.mxu0
        %v2591 = vadd.f32 0.0, %v2590
        %v2592 = vpop.f32.mrf.mxu0
        %v2593 = vpop.f32.mrf.mxu0
        %v2594 = vadd.f32 0.0, %v2593
        %v2595 = vpop.f32.mrf.mxu0
        %2596 = vmatprep.mubr.bf16.mxu0 0
        %2597 = vmatmul.mubr.bf16.gmra.mxu0 %v1205
        %v2598 = vpop.f32.mrf.mxu0
        %v2599 = vadd.f32 0.0, %v2598
        %v2600 = vpop.f32.mrf.mxu0
        %v2601 = vpop.f32.mrf.mxu0
        %v2602 = vadd.f32 0.0, %v2601
        %v2603 = vpop.f32.mrf.mxu0
        %2604 = vmatprep.mubr.bf16.mxu0 0
        %2605 = vmatmul.mubr.bf16.gmra.mxu0 %v2543
        %v2606 = vpop.f32.mrf.mxu0
        %v2607 = vadd.f32 0.0, %v2606
        %v2608 = vpop.f32.mrf.mxu0
        %v2609 = vpop.f32.mrf.mxu0
        %v2610 = vadd.f32 0.0, %v2609
        %v2611 = vpop.f32.mrf.mxu0
        %2612 = vdwg.mxu0
        %v2613 = vadd.f32 %v2526, %v2583
        %v2614 = vadd.f32 %v2527, %v2586
        %v2615 = vadd.f32 %v2528, %v2591
        %v2616 = vadd.f32 %v2529, %v2594
        %v2617 = vadd.f32 %v2530, %v2599
        %v2618 = vadd.f32 %v2531, %v2602
        %v2619 = vadd.f32 %v2532, %v2607
        %v2620 = vadd.f32 %v2533, %v2610
        %s2621 = scalar_lea.vmem %s1, 42
        %v2622 = vld [vmem:[%s2621] sm:$0x3]
        %v2624 = vunpack.c.l.b16 %v190
        %v2625 = vpack.c.b16 %v2624, %v1997
        %v2627 = vsel %vm328, %v2625, 0
        %v2630 = vsel %vm341, %v2622, 0
        %2632 = vmatprep.subr.bf16.mxu0 0
        %2633 = vmatpush1.bf16.msra.mxu0 0
        %2634 = vmatprep.subr.bf16.mxu0 0
        %2635 = vmatpush1.bf16.msra.mxu0 0
        %2636 = vmatprep.subr.bf16.mxu0 0
        %2637 = vmatpush1.bf16.msra.mxu0 0
        %2638 = vmatprep.subr.bf16.mxu0 0
        %2639 = vmatpush1.bf16.msra.mxu0 0
        %2640 = vmatprep.subr.bf16.mxu0 0
        %2641 = vmatpush1.bf16.msra.mxu0 0
        %2642 = vmatprep.subr.bf16.mxu0 0
        %2643 = vmatpush1.bf16.msra.mxu0 0
        %2644 = vmatprep.subr.bf16.mxu0 0
        %2645 = vmatpush1.bf16.msra.mxu0 0
        %2646 = vmatprep.subr.bf16.mxu0 0
        %2647 = vmatpush1.bf16.msra.mxu0 %v2630
        %2648 = vmatprep.subr.bf16.mxu0 0
        %2649 = vmatpush2.bf16.msra.mxu0 0
        %2650 = vmatprep.subr.bf16.mxu0 0
        %2651 = vmatpush2.bf16.msra.mxu0 0
        %2652 = vmatprep.subr.bf16.mxu0 0
        %2653 = vmatpush2.bf16.msra.mxu0 0
        %2654 = vmatprep.subr.bf16.mxu0 0
        %2655 = vmatpush2.bf16.msra.mxu0 0
        %2656 = vmatprep.subr.bf16.mxu0 0
        %2657 = vmatpush2.bf16.msra.mxu0 0
        %2658 = vmatprep.subr.bf16.mxu0 0
        %2659 = vmatpush2.bf16.msra.mxu0 0
        %2660 = vmatprep.subr.bf16.mxu0 0
        %2661 = vmatpush2.bf16.msra.mxu0 0
        %2662 = vmatprep.subr.bf16.mxu0 0
        %2663 = vmatpush2.bf16.msra.mxu0 0
        %2664 = vmatprep.mubr.bf16.mxu0 0
        %2665 = vmatmul.mubr.bf16.gmra.mxu0 %v1295
        %v2666 = vpop.f32.mrf.mxu0
        %v2667 = vadd.f32 0.0, %v2666
        %v2668 = vpop.f32.mrf.mxu0
        %v2669 = vpop.f32.mrf.mxu0
        %v2670 = vadd.f32 0.0, %v2669
        %v2671 = vpop.f32.mrf.mxu0
        %2672 = vmatprep.mubr.bf16.mxu0 0
        %2673 = vmatmul.mubr.bf16.gmra.mxu0 %v1298
        %v2674 = vpop.f32.mrf.mxu0
        %v2675 = vadd.f32 0.0, %v2674
        %v2676 = vpop.f32.mrf.mxu0
        %v2677 = vpop.f32.mrf.mxu0
        %v2678 = vadd.f32 0.0, %v2677
        %v2679 = vpop.f32.mrf.mxu0
        %2680 = vmatprep.mubr.bf16.mxu0 0
        %2681 = vmatmul.mubr.bf16.gmra.mxu0 %v1301
        %v2682 = vpop.f32.mrf.mxu0
        %v2683 = vadd.f32 0.0, %v2682
        %v2684 = vpop.f32.mrf.mxu0
        %v2685 = vpop.f32.mrf.mxu0
        %v2686 = vadd.f32 0.0, %v2685
        %v2687 = vpop.f32.mrf.mxu0
        %2688 = vmatprep.mubr.bf16.mxu0 0
        %2689 = vmatmul.mubr.bf16.gmra.mxu0 %v2627
        %v2690 = vpop.f32.mrf.mxu0
        %v2691 = vadd.f32 0.0, %v2690
        %v2692 = vpop.f32.mrf.mxu0
        %v2693 = vpop.f32.mrf.mxu0
        %v2694 = vadd.f32 0.0, %v2693
        %v2695 = vpop.f32.mrf.mxu0
        %2696 = vdwg.mxu0
        %v2697 = vadd.f32 %v2613, %v2667
        %v2698 = vadd.f32 %v2614, %v2670
        %v2699 = vadd.f32 %v2615, %v2675
        %v2700 = vadd.f32 %v2616, %v2678
        %v2701 = vadd.f32 %v2617, %v2683
        %v2702 = vadd.f32 %v2618, %v2686
        %v2703 = vadd.f32 %v2619, %v2691
        %v2704 = vadd.f32 %v2620, %v2694
        %v2706 = vshrl.u32 %v190, 16
        %v2708 = vrot.slane %v2706, 4
        %v2709 = vshll.u32 %v190, 16
        %v2711 = vrot.slane %v2709, 5
        %v2712 = vor.u32 %v2708, %v2711
        %v2713 = vrot.slane %v2712, 4
        %v2715 = vshll.u32 %v191, 16
        %v2717 = vrot.slane %v2715, 5
        %v2718 = vsel %vm201, %v2713, %v2717
        %s2719 = scalar_lea.vmem %s1, 44
        %v2720 = vld [vmem:[%s2719] sm:$0x3]
        %v2721 = vunpack.c.l.b16 %v2718
        %v2722 = vpack.c.b16 %v2721, %v2094
        %v2724 = vsel %vm328, %v2722, 0
        %v2727 = vsel %vm341, %v2720, 0
        %2729 = vmatprep.subr.bf16.mxu0 0
        %2730 = vmatpush1.bf16.msra.mxu0 0
        %2731 = vmatprep.subr.bf16.mxu0 0
        %2732 = vmatpush1.bf16.msra.mxu0 0
        %2733 = vmatprep.subr.bf16.mxu0 0
        %2734 = vmatpush1.bf16.msra.mxu0 0
        %2735 = vmatprep.subr.bf16.mxu0 0
        %2736 = vmatpush1.bf16.msra.mxu0 0
        %2737 = vmatprep.subr.bf16.mxu0 0
        %2738 = vmatpush1.bf16.msra.mxu0 0
        %2739 = vmatprep.subr.bf16.mxu0 0
        %2740 = vmatpush1.bf16.msra.mxu0 0
        %2741 = vmatprep.subr.bf16.mxu0 0
        %2742 = vmatpush1.bf16.msra.mxu0 0
        %2743 = vmatprep.subr.bf16.mxu0 0
        %2744 = vmatpush1.bf16.msra.mxu0 %v2727
        %2745 = vmatprep.subr.bf16.mxu0 0
        %2746 = vmatpush2.bf16.msra.mxu0 0
        %2747 = vmatprep.subr.bf16.mxu0 0
        %2748 = vmatpush2.bf16.msra.mxu0 0
        %2749 = vmatprep.subr.bf16.mxu0 0
        %2750 = vmatpush2.bf16.msra.mxu0 0
        %2751 = vmatprep.subr.bf16.mxu0 0
        %2752 = vmatpush2.bf16.msra.mxu0 0
        %2753 = vmatprep.subr.bf16.mxu0 0
        %2754 = vmatpush2.bf16.msra.mxu0 0
        %2755 = vmatprep.subr.bf16.mxu0 0
        %2756 = vmatpush2.bf16.msra.mxu0 0
        %2757 = vmatprep.subr.bf16.mxu0 0
        %2758 = vmatpush2.bf16.msra.mxu0 0
        %2759 = vmatprep.subr.bf16.mxu0 0
        %2760 = vmatpush2.bf16.msra.mxu0 0
        %2761 = vmatprep.mubr.bf16.mxu0 0
        %2762 = vmatmul.mubr.bf16.gmra.mxu0 %v1404
        %v2763 = vpop.f32.mrf.mxu0
        %v2764 = vadd.f32 0.0, %v2763
        %v2765 = vpop.f32.mrf.mxu0
        %v2766 = vpop.f32.mrf.mxu0
        %v2767 = vadd.f32 0.0, %v2766
        %v2768 = vpop.f32.mrf.mxu0
        %2769 = vmatprep.mubr.bf16.mxu0 0
        %2770 = vmatmul.mubr.bf16.gmra.mxu0 %v1407
        %v2771 = vpop.f32.mrf.mxu0
        %v2772 = vadd.f32 0.0, %v2771
        %v2773 = vpop.f32.mrf.mxu0
        %v2774 = vpop.f32.mrf.mxu0
        %v2775 = vadd.f32 0.0, %v2774
        %v2776 = vpop.f32.mrf.mxu0
        %2777 = vmatprep.mubr.bf16.mxu0 0
        %2778 = vmatmul.mubr.bf16.gmra.mxu0 %v1410
        %v2779 = vpop.f32.mrf.mxu0
        %v2780 = vadd.f32 0.0, %v2779
        %v2781 = vpop.f32.mrf.mxu0
        %v2782 = vpop.f32.mrf.mxu0
        %v2783 = vadd.f32 0.0, %v2782
        %v2784 = vpop.f32.mrf.mxu0
        %2785 = vmatprep.mubr.bf16.mxu0 0
        %2786 = vmatmul.mubr.bf16.gmra.mxu0 %v2724
        %v2787 = vpop.f32.mrf.mxu0
        %v2788 = vadd.f32 0.0, %v2787
        %v2789 = vpop.f32.mrf.mxu0
        %v2790 = vpop.f32.mrf.mxu0
        %v2791 = vadd.f32 0.0, %v2790
        %v2792 = vpop.f32.mrf.mxu0
        %2793 = vdwg.mxu0
        %v2794 = vadd.f32 %v2697, %v2764
        %v2795 = vadd.f32 %v2698, %v2767
        %v2796 = vadd.f32 %v2699, %v2772
        %v2797 = vadd.f32 %v2700, %v2775
        %v2798 = vadd.f32 %v2701, %v2780
        %v2799 = vadd.f32 %v2702, %v2783
        %v2800 = vadd.f32 %v2703, %v2788
        %v2801 = vadd.f32 %v2704, %v2791
        %v2803 = vrot.slane %v190, 5
        %v2804 = vrot.slane %v2803, 4
        %v2805 = vrot.slane %v191, 5
        %v2806 = vsel %vm520, %v2804, %v2805
        %s2807 = scalar_lea.vmem %s1, 46
        %v2808 = vld [vmem:[%s2807] sm:$0x3]
        %v2809 = vunpack.c.l.b16 %v2806
        %v2810 = vpack.c.b16 %v2809, %v2182
        %v2812 = vsel %vm328, %v2810, 0
        %v2815 = vsel %vm341, %v2808, 0
        %2817 = vmatprep.subr.bf16.mxu0 0
        %2818 = vmatpush1.bf16.msra.mxu0 0
        %2819 = vmatprep.subr.bf16.mxu0 0
        %2820 = vmatpush1.bf16.msra.mxu0 0
        %2821 = vmatprep.subr.bf16.mxu0 0
        %2822 = vmatpush1.bf16.msra.mxu0 0
        %2823 = vmatprep.subr.bf16.mxu0 0
        %2824 = vmatpush1.bf16.msra.mxu0 0
        %2825 = vmatprep.subr.bf16.mxu0 0
        %2826 = vmatpush1.bf16.msra.mxu0 0
        %2827 = vmatprep.subr.bf16.mxu0 0
        %2828 = vmatpush1.bf16.msra.mxu0 0
        %2829 = vmatprep.subr.bf16.mxu0 0
        %2830 = vmatpush1.bf16.msra.mxu0 0
        %2831 = vmatprep.subr.bf16.mxu0 0
        %2832 = vmatpush1.bf16.msra.mxu0 %v2815
        %2833 = vmatprep.subr.bf16.mxu0 0
        %2834 = vmatpush2.bf16.msra.mxu0 0
        %2835 = vmatprep.subr.bf16.mxu0 0
        %2836 = vmatpush2.bf16.msra.mxu0 0
        %2837 = vmatprep.subr.bf16.mxu0 0
        %2838 = vmatpush2.bf16.msra.mxu0 0
        %2839 = vmatprep.subr.bf16.mxu0 0
        %2840 = vmatpush2.bf16.msra.mxu0 0
        %2841 = vmatprep.subr.bf16.mxu0 0
        %2842 = vmatpush2.bf16.msra.mxu0 0
        %2843 = vmatprep.subr.bf16.mxu0 0
        %2844 = vmatpush2.bf16.msra.mxu0 0
        %2845 = vmatprep.subr.bf16.mxu0 0
        %2846 = vmatpush2.bf16.msra.mxu0 0
        %2847 = vmatprep.subr.bf16.mxu0 0
        %2848 = vmatpush2.bf16.msra.mxu0 0
        %2849 = vmatprep.mubr.bf16.mxu0 0
        %2850 = vmatmul.mubr.bf16.gmra.mxu0 %v1504
        %v2851 = vpop.f32.mrf.mxu0
        %v2852 = vadd.f32 0.0, %v2851
        %v2853 = vpop.f32.mrf.mxu0
        %v2854 = vpop.f32.mrf.mxu0
        %v2855 = vadd.f32 0.0, %v2854
        %v2856 = vpop.f32.mrf.mxu0
        %2857 = vmatprep.mubr.bf16.mxu0 0
        %2858 = vmatmul.mubr.bf16.gmra.mxu0 %v1507
        %v2859 = vpop.f32.mrf.mxu0
        %v2860 = vadd.f32 0.0, %v2859
        %v2861 = vpop.f32.mrf.mxu0
        %v2862 = vpop.f32.mrf.mxu0
        %v2863 = vadd.f32 0.0, %v2862
        %v2864 = vpop.f32.mrf.mxu0
        %2865 = vmatprep.mubr.bf16.mxu0 0
        %2866 = vmatmul.mubr.bf16.gmra.mxu0 %v1510
        %v2867 = vpop.f32.mrf.mxu0
        %v2868 = vadd.f32 0.0, %v2867
        %v2869 = vpop.f32.mrf.mxu0
        %v2870 = vpop.f32.mrf.mxu0
        %v2871 = vadd.f32 0.0, %v2870
        %v2872 = vpop.f32.mrf.mxu0
        %2873 = vmatprep.mubr.bf16.mxu0 0
        %2874 = vmatmul.mubr.bf16.gmra.mxu0 %v2812
        %v2875 = vpop.f32.mrf.mxu0
        %v2876 = vadd.f32 0.0, %v2875
        %v2877 = vpop.f32.mrf.mxu0
        %v2878 = vpop.f32.mrf.mxu0
        %v2879 = vadd.f32 0.0, %v2878
        %v2880 = vpop.f32.mrf.mxu0
        %2881 = vdwg.mxu0
        %v2882 = vadd.f32 %v2794, %v2852
        %v2883 = vadd.f32 %v2795, %v2855
        %v2884 = vadd.f32 %v2796, %v2860
        %v2885 = vadd.f32 %v2797, %v2863
        %v2886 = vadd.f32 %v2798, %v2868
        %v2887 = vadd.f32 %v2799, %v2871
        %v2888 = vadd.f32 %v2800, %v2876
        %v2889 = vadd.f32 %v2801, %v2879
        %v2890 = vrot.slane %v2706, 5
        %v2891 = vrot.slane %v2709, 6
        %v2892 = vor.u32 %v2890, %v2891
        %v2893 = vrot.slane %v2892, 4
        %v2894 = vshrl.u32 %v191, 16
        %v2896 = vrot.slane %v2894, 5
        %v2897 = vrot.slane %v2715, 6
        %v2898 = vor.u32 %v2896, %v2897
        %v2899 = vsel %vm657, %v2893, %v2898
        %s2900 = scalar_lea.vmem %s1, 48
        %v2901 = vld [vmem:[%s2900] sm:$0x3]
        %v2902 = vunpack.c.l.b16 %v2899
        %v2903 = vpack.c.b16 %v2902, %v2275
        %v2905 = vsel %vm328, %v2903, 0
        %v2908 = vsel %vm341, %v2901, 0
        %2910 = vmatprep.subr.bf16.mxu0 0
        %2911 = vmatpush1.bf16.msra.mxu0 0
        %2912 = vmatprep.subr.bf16.mxu0 0
        %2913 = vmatpush1.bf16.msra.mxu0 0
        %2914 = vmatprep.subr.bf16.mxu0 0
        %2915 = vmatpush1.bf16.msra.mxu0 0
        %2916 = vmatprep.subr.bf16.mxu0 0
        %2917 = vmatpush1.bf16.msra.mxu0 0
        %2918 = vmatprep.subr.bf16.mxu0 0
        %2919 = vmatpush1.bf16.msra.mxu0 0
        %2920 = vmatprep.subr.bf16.mxu0 0
        %2921 = vmatpush1.bf16.msra.mxu0 0
        %2922 = vmatprep.subr.bf16.mxu0 0
        %2923 = vmatpush1.bf16.msra.mxu0 0
        %2924 = vmatprep.subr.bf16.mxu0 0
        %2925 = vmatpush1.bf16.msra.mxu0 %v2908
        %2926 = vmatprep.subr.bf16.mxu0 0
        %2927 = vmatpush2.bf16.msra.mxu0 0
        %2928 = vmatprep.subr.bf16.mxu0 0
        %2929 = vmatpush2.bf16.msra.mxu0 0
        %2930 = vmatprep.subr.bf16.mxu0 0
        %2931 = vmatpush2.bf16.msra.mxu0 0
        %2932 = vmatprep.subr.bf16.mxu0 0
        %2933 = vmatpush2.bf16.msra.mxu0 0
        %2934 = vmatprep.subr.bf16.mxu0 0
        %2935 = vmatpush2.bf16.msra.mxu0 0
        %2936 = vmatprep.subr.bf16.mxu0 0
        %2937 = vmatpush2.bf16.msra.mxu0 0
        %2938 = vmatprep.subr.bf16.mxu0 0
        %2939 = vmatpush2.bf16.msra.mxu0 0
        %2940 = vmatprep.subr.bf16.mxu0 0
        %2941 = vmatpush2.bf16.msra.mxu0 0
        %2942 = vmatprep.mubr.bf16.mxu0 0
        %2943 = vmatmul.mubr.bf16.gmra.mxu0 %v1609
        %v2944 = vpop.f32.mrf.mxu0
        %v2945 = vadd.f32 0.0, %v2944
        %v2946 = vpop.f32.mrf.mxu0
        %v2947 = vpop.f32.mrf.mxu0
        %v2948 = vadd.f32 0.0, %v2947
        %v2949 = vpop.f32.mrf.mxu0
        %2950 = vmatprep.mubr.bf16.mxu0 0
        %2951 = vmatmul.mubr.bf16.gmra.mxu0 %v1612
        %v2952 = vpop.f32.mrf.mxu0
        %v2953 = vadd.f32 0.0, %v2952
        %v2954 = vpop.f32.mrf.mxu0
        %v2955 = vpop.f32.mrf.mxu0
        %v2956 = vadd.f32 0.0, %v2955
        %v2957 = vpop.f32.mrf.mxu0
        %2958 = vmatprep.mubr.bf16.mxu0 0
        %2959 = vmatmul.mubr.bf16.gmra.mxu0 %v1615
        %v2960 = vpop.f32.mrf.mxu0
        %v2961 = vadd.f32 0.0, %v2960
        %v2962 = vpop.f32.mrf.mxu0
        %v2963 = vpop.f32.mrf.mxu0
        %v2964 = vadd.f32 0.0, %v2963
        %v2965 = vpop.f32.mrf.mxu0
        %2966 = vmatprep.mubr.bf16.mxu0 0
        %2967 = vmatmul.mubr.bf16.gmra.mxu0 %v2905
        %v2968 = vpop.f32.mrf.mxu0
        %v2969 = vadd.f32 0.0, %v2968
        %v2970 = vpop.f32.mrf.mxu0
        %v2971 = vpop.f32.mrf.mxu0
        %v2972 = vadd.f32 0.0, %v2971
        %v2973 = vpop.f32.mrf.mxu0
        %2974 = vdwg.mxu0
        %v2975 = vadd.f32 %v2882, %v2945
        %v2976 = vadd.f32 %v2883, %v2948
        %v2977 = vadd.f32 %v2884, %v2953
        %v2978 = vadd.f32 %v2885, %v2956
        %v2979 = vadd.f32 %v2886, %v2961
        %v2980 = vadd.f32 %v2887, %v2964
        %v2981 = vadd.f32 %v2888, %v2969
        %v2982 = vadd.f32 %v2889, %v2972
        %v2983 = vrot.slane %v190, 6
        %v2984 = vrot.slane %v2983, 4
        %v2985 = vrot.slane %v191, 6
        %v2986 = vsel %vm842, %v2984, %v2985
        %s2987 = scalar_lea.vmem %s1, 50
        %v2988 = vld [vmem:[%s2987] sm:$0x3]
        %v2989 = vunpack.c.l.b16 %v2986
        %v2990 = vpack.c.b16 %v2989, %v2362
        %v2992 = vsel %vm328, %v2990, 0
        %v2995 = vsel %vm341, %v2988, 0
        %2997 = vmatprep.subr.bf16.mxu0 0
        %2998 = vmatpush1.bf16.msra.mxu0 0
        %2999 = vmatprep.subr.bf16.mxu0 0
        %3000 = vmatpush1.bf16.msra.mxu0 0
        %3001 = vmatprep.subr.bf16.mxu0 0
        %3002 = vmatpush1.bf16.msra.mxu0 0
        %3003 = vmatprep.subr.bf16.mxu0 0
        %3004 = vmatpush1.bf16.msra.mxu0 0
        %3005 = vmatprep.subr.bf16.mxu0 0
        %3006 = vmatpush1.bf16.msra.mxu0 0
        %3007 = vmatprep.subr.bf16.mxu0 0
        %3008 = vmatpush1.bf16.msra.mxu0 0
        %3009 = vmatprep.subr.bf16.mxu0 0
        %3010 = vmatpush1.bf16.msra.mxu0 0
        %3011 = vmatprep.subr.bf16.mxu0 0
        %3012 = vmatpush1.bf16.msra.mxu0 %v2995
        %3013 = vmatprep.subr.bf16.mxu0 0
        %3014 = vmatpush2.bf16.msra.mxu0 0
        %3015 = vmatprep.subr.bf16.mxu0 0
        %3016 = vmatpush2.bf16.msra.mxu0 0
        %3017 = vmatprep.subr.bf16.mxu0 0
        %3018 = vmatpush2.bf16.msra.mxu0 0
        %3019 = vmatprep.subr.bf16.mxu0 0
        %3020 = vmatpush2.bf16.msra.mxu0 0
        %3021 = vmatprep.subr.bf16.mxu0 0
        %3022 = vmatpush2.bf16.msra.mxu0 0
        %3023 = vmatprep.subr.bf16.mxu0 0
        %3024 = vmatpush2.bf16.msra.mxu0 0
        %3025 = vmatprep.subr.bf16.mxu0 0
        %3026 = vmatpush2.bf16.msra.mxu0 0
        %3027 = vmatprep.subr.bf16.mxu0 0
        %3028 = vmatpush2.bf16.msra.mxu0 0
        %3029 = vmatprep.mubr.bf16.mxu0 0
        %3030 = vmatmul.mubr.bf16.gmra.mxu0 %v1708
        %v3031 = vpop.f32.mrf.mxu0
        %v3032 = vadd.f32 0.0, %v3031
        %v3033 = vpop.f32.mrf.mxu0
        %v3034 = vpop.f32.mrf.mxu0
        %v3035 = vadd.f32 0.0, %v3034
        %v3036 = vpop.f32.mrf.mxu0
        %3037 = vmatprep.mubr.bf16.mxu0 0
        %3038 = vmatmul.mubr.bf16.gmra.mxu0 %v1711
        %v3039 = vpop.f32.mrf.mxu0
        %v3040 = vadd.f32 0.0, %v3039
        %v3041 = vpop.f32.mrf.mxu0
        %v3042 = vpop.f32.mrf.mxu0
        %v3043 = vadd.f32 0.0, %v3042
        %v3044 = vpop.f32.mrf.mxu0
        %3045 = vmatprep.mubr.bf16.mxu0 0
        %3046 = vmatmul.mubr.bf16.gmra.mxu0 %v1714
        %v3047 = vpop.f32.mrf.mxu0
        %v3048 = vadd.f32 0.0, %v3047
        %v3049 = vpop.f32.mrf.mxu0
        %v3050 = vpop.f32.mrf.mxu0
        %v3051 = vadd.f32 0.0, %v3050
        %v3052 = vpop.f32.mrf.mxu0
        %3053 = vmatprep.mubr.bf16.mxu0 0
        %3054 = vmatmul.mubr.bf16.gmra.mxu0 %v2992
        %v3055 = vpop.f32.mrf.mxu0
        %v3056 = vadd.f32 0.0, %v3055
        %v3057 = vpop.f32.mrf.mxu0
        %v3058 = vpop.f32.mrf.mxu0
        %v3059 = vadd.f32 0.0, %v3058
        %v3060 = vpop.f32.mrf.mxu0
        %3061 = vdwg.mxu0
        %v3062 = vadd.f32 %v2975, %v3032
        %v3063 = vadd.f32 %v2976, %v3035
        %v3064 = vadd.f32 %v2977, %v3040
        %v3065 = vadd.f32 %v2978, %v3043
        %v3066 = vadd.f32 %v2979, %v3048
        %v3067 = vadd.f32 %v2980, %v3051
        %v3068 = vadd.f32 %v2981, %v3056
        %v3069 = vadd.f32 %v2982, %v3059
        %v3070 = vrot.slane %v2706, 6
        %v3071 = vrot.slane %v2709, 7
        %v3072 = vor.u32 %v3070, %v3071
        %v3073 = vrot.slane %v3072, 4
        %v3074 = vrot.slane %v2894, 6
        %v3075 = vrot.slane %v2715, 7
        %v3076 = vor.u32 %v3074, %v3075
        %v3077 = vsel %vm979, %v3073, %v3076
        %s3078 = scalar_lea.vmem %s1, 52
        %v3079 = vld [vmem:[%s3078] sm:$0x3]
        %v3080 = vunpack.c.l.b16 %v3077
        %v3081 = vpack.c.b16 %v3080, %v2453
        %v3083 = vsel %vm328, %v3081, 0
        %v3086 = vsel %vm341, %v3079, 0
        %3088 = vmatprep.subr.bf16.mxu0 0
        %3089 = vmatpush1.bf16.msra.mxu0 0
        %3090 = vmatprep.subr.bf16.mxu0 0
        %3091 = vmatpush1.bf16.msra.mxu0 0
        %3092 = vmatprep.subr.bf16.mxu0 0
        %3093 = vmatpush1.bf16.msra.mxu0 0
        %3094 = vmatprep.subr.bf16.mxu0 0
        %3095 = vmatpush1.bf16.msra.mxu0 0
        %3096 = vmatprep.subr.bf16.mxu0 0
        %3097 = vmatpush1.bf16.msra.mxu0 0
        %3098 = vmatprep.subr.bf16.mxu0 0
        %3099 = vmatpush1.bf16.msra.mxu0 0
        %3100 = vmatprep.subr.bf16.mxu0 0
        %3101 = vmatpush1.bf16.msra.mxu0 0
        %3102 = vmatprep.subr.bf16.mxu0 0
        %3103 = vmatpush1.bf16.msra.mxu0 %v3086
        %3104 = vmatprep.subr.bf16.mxu0 0
        %3105 = vmatpush2.bf16.msra.mxu0 0
        %3106 = vmatprep.subr.bf16.mxu0 0
        %3107 = vmatpush2.bf16.msra.mxu0 0
        %3108 = vmatprep.subr.bf16.mxu0 0
        %3109 = vmatpush2.bf16.msra.mxu0 0
        %3110 = vmatprep.subr.bf16.mxu0 0
        %3111 = vmatpush2.bf16.msra.mxu0 0
        %3112 = vmatprep.subr.bf16.mxu0 0
        %3113 = vmatpush2.bf16.msra.mxu0 0
        %3114 = vmatprep.subr.bf16.mxu0 0
        %3115 = vmatpush2.bf16.msra.mxu0 0
        %3116 = vmatprep.subr.bf16.mxu0 0
        %3117 = vmatpush2.bf16.msra.mxu0 0
        %3118 = vmatprep.subr.bf16.mxu0 0
        %3119 = vmatpush2.bf16.msra.mxu0 0
        %3120 = vmatprep.mubr.bf16.mxu0 0
        %3121 = vmatmul.mubr.bf16.gmra.mxu0 %v1811
        %v3122 = vpop.f32.mrf.mxu0
        %v3123 = vadd.f32 0.0, %v3122
        %v3124 = vpop.f32.mrf.mxu0
        %v3125 = vpop.f32.mrf.mxu0
        %v3126 = vadd.f32 0.0, %v3125
        %v3127 = vpop.f32.mrf.mxu0
        %3128 = vmatprep.mubr.bf16.mxu0 0
        %3129 = vmatmul.mubr.bf16.gmra.mxu0 %v1814
        %v3130 = vpop.f32.mrf.mxu0
        %v3131 = vadd.f32 0.0, %v3130
        %v3132 = vpop.f32.mrf.mxu0
        %v3133 = vpop.f32.mrf.mxu0
        %v3134 = vadd.f32 0.0, %v3133
        %v3135 = vpop.f32.mrf.mxu0
        %3136 = vmatprep.mubr.bf16.mxu0 0
        %3137 = vmatmul.mubr.bf16.gmra.mxu0 %v1817
        %v3138 = vpop.f32.mrf.mxu0
        %v3139 = vadd.f32 0.0, %v3138
        %v3140 = vpop.f32.mrf.mxu0
        %v3141 = vpop.f32.mrf.mxu0
        %v3142 = vadd.f32 0.0, %v3141
        %v3143 = vpop.f32.mrf.mxu0
        %3144 = vmatprep.mubr.bf16.mxu0 0
        %3145 = vmatmul.mubr.bf16.gmra.mxu0 %v3083
        %v3146 = vpop.f32.mrf.mxu0
        %v3147 = vadd.f32 0.0, %v3146
        %v3148 = vpop.f32.mrf.mxu0
        %v3149 = vpop.f32.mrf.mxu0
        %v3150 = vadd.f32 0.0, %v3149
        %v3151 = vpop.f32.mrf.mxu0
        %3152 = vdwg.mxu0
        %v3153 = vadd.f32 %v3062, %v3123
        %v3154 = vadd.f32 %v3063, %v3126
        %v3155 = vadd.f32 %v3064, %v3131
        %v3156 = vadd.f32 %v3065, %v3134
        %v3157 = vadd.f32 %v3066, %v3139
        %v3158 = vadd.f32 %v3067, %v3142
        %v3159 = vadd.f32 %v3068, %v3147
        %v3160 = vadd.f32 %v3069, %v3150
        %v3161 = vrot.slane %v190, 7
        %v3162 = vrot.slane %v3161, 4
        %v3163 = vrot.slane %v191, 7
        %v3164 = vsel %vm1148, %v3162, %v3163
        %s3165 = scalar_lea.vmem %s1, 54
        %v3166 = vld [vmem:[%s3165] sm:$0x3]
        %v3167 = vunpack.c.l.b16 %v3164
        %v3168 = vpack.c.b16 %v3167, %v2540
        %v3170 = vsel %vm328, %v3168, 0
        %v3173 = vsel %vm341, %v3166, 0
        %3175 = vmatprep.subr.bf16.mxu0 0
        %3176 = vmatpush1.bf16.msra.mxu0 0
        %3177 = vmatprep.subr.bf16.mxu0 0
        %3178 = vmatpush1.bf16.msra.mxu0 0
        %3179 = vmatprep.subr.bf16.mxu0 0
        %3180 = vmatpush1.bf16.msra.mxu0 0
        %3181 = vmatprep.subr.bf16.mxu0 0
        %3182 = vmatpush1.bf16.msra.mxu0 0
        %3183 = vmatprep.subr.bf16.mxu0 0
        %3184 = vmatpush1.bf16.msra.mxu0 0
        %3185 = vmatprep.subr.bf16.mxu0 0
        %3186 = vmatpush1.bf16.msra.mxu0 0
        %3187 = vmatprep.subr.bf16.mxu0 0
        %3188 = vmatpush1.bf16.msra.mxu0 0
        %3189 = vmatprep.subr.bf16.mxu0 0
        %3190 = vmatpush1.bf16.msra.mxu0 %v3173
        %3191 = vmatprep.subr.bf16.mxu0 0
        %3192 = vmatpush2.bf16.msra.mxu0 0
        %3193 = vmatprep.subr.bf16.mxu0 0
        %3194 = vmatpush2.bf16.msra.mxu0 0
        %3195 = vmatprep.subr.bf16.mxu0 0
        %3196 = vmatpush2.bf16.msra.mxu0 0
        %3197 = vmatprep.subr.bf16.mxu0 0
        %3198 = vmatpush2.bf16.msra.mxu0 0
        %3199 = vmatprep.subr.bf16.mxu0 0
        %3200 = vmatpush2.bf16.msra.mxu0 0
        %3201 = vmatprep.subr.bf16.mxu0 0
        %3202 = vmatpush2.bf16.msra.mxu0 0
        %3203 = vmatprep.subr.bf16.mxu0 0
        %3204 = vmatpush2.bf16.msra.mxu0 0
        %3205 = vmatprep.subr.bf16.mxu0 0
        %3206 = vmatpush2.bf16.msra.mxu0 0
        %3207 = vmatprep.mubr.bf16.mxu0 0
        %3208 = vmatmul.mubr.bf16.gmra.mxu0 %v1910
        %v3209 = vpop.f32.mrf.mxu0
        %v3210 = vadd.f32 0.0, %v3209
        %v3211 = vpop.f32.mrf.mxu0
        %v3212 = vpop.f32.mrf.mxu0
        %v3213 = vadd.f32 0.0, %v3212
        %v3214 = vpop.f32.mrf.mxu0
        %3215 = vmatprep.mubr.bf16.mxu0 0
        %3216 = vmatmul.mubr.bf16.gmra.mxu0 %v1913
        %v3217 = vpop.f32.mrf.mxu0
        %v3218 = vadd.f32 0.0, %v3217
        %v3219 = vpop.f32.mrf.mxu0
        %v3220 = vpop.f32.mrf.mxu0
        %v3221 = vadd.f32 0.0, %v3220
        %v3222 = vpop.f32.mrf.mxu0
        %3223 = vmatprep.mubr.bf16.mxu0 0
        %3224 = vmatmul.mubr.bf16.gmra.mxu0 %v1916
        %v3225 = vpop.f32.mrf.mxu0
        %v3226 = vadd.f32 0.0, %v3225
        %v3227 = vpop.f32.mrf.mxu0
        %v3228 = vpop.f32.mrf.mxu0
        %v3229 = vadd.f32 0.0, %v3228
        %v3230 = vpop.f32.mrf.mxu0
        %3231 = vmatprep.mubr.bf16.mxu0 0
        %3232 = vmatmul.mubr.bf16.gmra.mxu0 %v3170
        %v3233 = vpop.f32.mrf.mxu0
        %v3234 = vadd.f32 0.0, %v3233
        %v3235 = vpop.f32.mrf.mxu0
        %v3236 = vpop.f32.mrf.mxu0
        %v3237 = vadd.f32 0.0, %v3236
        %v3238 = vpop.f32.mrf.mxu0
        %3239 = vdwg.mxu0
        %v3240 = vadd.f32 %v3153, %v3210
        %v3241 = vadd.f32 %v3154, %v3213
        %v3242 = vadd.f32 %v3155, %v3218
        %v3243 = vadd.f32 %v3156, %v3221
        %v3244 = vadd.f32 %v3157, %v3226
        %v3245 = vadd.f32 %v3158, %v3229
        %v3246 = vadd.f32 %v3159, %v3234
        %v3247 = vadd.f32 %v3160, %v3237
        %s3248 = scalar_lea.vmem %s1, 56
        %v3249 = vld [vmem:[%s3248] sm:$0x3]
        %v3251 = vunpack.c.l.b16 %v192
        %v3252 = vpack.c.b16 %v3251, %v2624
        %v3254 = vsel %vm328, %v3252, 0
        %v3257 = vsel %vm341, %v3249, 0
        %3259 = vmatprep.subr.bf16.mxu0 0
        %3260 = vmatpush1.bf16.msra.mxu0 0
        %3261 = vmatprep.subr.bf16.mxu0 0
        %3262 = vmatpush1.bf16.msra.mxu0 0
        %3263 = vmatprep.subr.bf16.mxu0 0
        %3264 = vmatpush1.bf16.msra.mxu0 0
        %3265 = vmatprep.subr.bf16.mxu0 0
        %3266 = vmatpush1.bf16.msra.mxu0 0
        %3267 = vmatprep.subr.bf16.mxu0 0
        %3268 = vmatpush1.bf16.msra.mxu0 0
        %3269 = vmatprep.subr.bf16.mxu0 0
        %3270 = vmatpush1.bf16.msra.mxu0 0
        %3271 = vmatprep.subr.bf16.mxu0 0
        %3272 = vmatpush1.bf16.msra.mxu0 0
        %3273 = vmatprep.subr.bf16.mxu0 0
        %3274 = vmatpush1.bf16.msra.mxu0 %v3257
        %3275 = vmatprep.subr.bf16.mxu0 0
        %3276 = vmatpush2.bf16.msra.mxu0 0
        %3277 = vmatprep.subr.bf16.mxu0 0
        %3278 = vmatpush2.bf16.msra.mxu0 0
        %3279 = vmatprep.subr.bf16.mxu0 0
        %3280 = vmatpush2.bf16.msra.mxu0 0
        %3281 = vmatprep.subr.bf16.mxu0 0
        %3282 = vmatpush2.bf16.msra.mxu0 0
        %3283 = vmatprep.subr.bf16.mxu0 0
        %3284 = vmatpush2.bf16.msra.mxu0 0
        %3285 = vmatprep.subr.bf16.mxu0 0
        %3286 = vmatpush2.bf16.msra.mxu0 0
        %3287 = vmatprep.subr.bf16.mxu0 0
        %3288 = vmatpush2.bf16.msra.mxu0 0
        %3289 = vmatprep.subr.bf16.mxu0 0
        %3290 = vmatpush2.bf16.msra.mxu0 0
        %3291 = vmatprep.mubr.bf16.mxu0 0
        %3292 = vmatmul.mubr.bf16.gmra.mxu0 %v437
        %v3293 = vpop.f32.mrf.mxu0
        %v3294 = vadd.f32 0.0, %v3293
        %v3295 = vpop.f32.mrf.mxu0
        %v3296 = vpop.f32.mrf.mxu0
        %v3297 = vadd.f32 0.0, %v3296
        %v3298 = vpop.f32.mrf.mxu0
        %3299 = vmatprep.mubr.bf16.mxu0 0
        %3300 = vmatmul.mubr.bf16.gmra.mxu0 %v440
        %v3301 = vpop.f32.mrf.mxu0
        %v3302 = vadd.f32 0.0, %v3301
        %v3303 = vpop.f32.mrf.mxu0
        %v3304 = vpop.f32.mrf.mxu0
        %v3305 = vadd.f32 0.0, %v3304
        %v3306 = vpop.f32.mrf.mxu0
        %3307 = vmatprep.mubr.bf16.mxu0 0
        %3308 = vmatmul.mubr.bf16.gmra.mxu0 %v2000
        %v3309 = vpop.f32.mrf.mxu0
        %v3310 = vadd.f32 0.0, %v3309
        %v3311 = vpop.f32.mrf.mxu0
        %v3312 = vpop.f32.mrf.mxu0
        %v3313 = vadd.f32 0.0, %v3312
        %v3314 = vpop.f32.mrf.mxu0
        %3315 = vmatprep.mubr.bf16.mxu0 0
        %3316 = vmatmul.mubr.bf16.gmra.mxu0 %v3254
        %v3317 = vpop.f32.mrf.mxu0
        %v3318 = vadd.f32 0.0, %v3317
        %v3319 = vpop.f32.mrf.mxu0
        %v3320 = vpop.f32.mrf.mxu0
        %v3321 = vadd.f32 0.0, %v3320
        %v3322 = vpop.f32.mrf.mxu0
        %3323 = vdwg.mxu0
        %v3324 = vadd.f32 %v3240, %v3294
        %v3325 = vadd.f32 %v3241, %v3297
        %v3326 = vadd.f32 %v3242, %v3302
        %v3327 = vadd.f32 %v3243, %v3305
        %v3328 = vadd.f32 %v3244, %v3310
        %v3329 = vadd.f32 %v3245, %v3313
        %v3330 = vadd.f32 %v3246, %v3318
        %v3331 = vadd.f32 %v3247, %v3321
        %v3333 = vshrl.u32 %v192, 16
        %v3335 = vrot.slane %v3333, 4
        %v3336 = vshll.u32 %v192, 16
        %v3338 = vrot.slane %v3336, 5
        %v3339 = vor.u32 %v3335, %v3338
        %v3340 = vrot.slane %v3339, 4
        %v3342 = vshll.u32 %v193, 16
        %v3344 = vrot.slane %v3342, 5
        %v3345 = vsel %vm201, %v3340, %v3344
        %s3346 = scalar_lea.vmem %s1, 58
        %v3347 = vld [vmem:[%s3346] sm:$0x3]
        %v3348 = vunpack.c.l.b16 %v3345
        %v3349 = vpack.c.b16 %v3348, %v2721
        %v3351 = vsel %vm328, %v3349, 0
        %v3354 = vsel %vm341, %v3347, 0
        %3356 = vmatprep.subr.bf16.mxu0 0
        %3357 = vmatpush1.bf16.msra.mxu0 0
        %3358 = vmatprep.subr.bf16.mxu0 0
        %3359 = vmatpush1.bf16.msra.mxu0 0
        %3360 = vmatprep.subr.bf16.mxu0 0
        %3361 = vmatpush1.bf16.msra.mxu0 0
        %3362 = vmatprep.subr.bf16.mxu0 0
        %3363 = vmatpush1.bf16.msra.mxu0 0
        %3364 = vmatprep.subr.bf16.mxu0 0
        %3365 = vmatpush1.bf16.msra.mxu0 0
        %3366 = vmatprep.subr.bf16.mxu0 0
        %3367 = vmatpush1.bf16.msra.mxu0 0
        %3368 = vmatprep.subr.bf16.mxu0 0
        %3369 = vmatpush1.bf16.msra.mxu0 0
        %3370 = vmatprep.subr.bf16.mxu0 0
        %3371 = vmatpush1.bf16.msra.mxu0 %v3354
        %3372 = vmatprep.subr.bf16.mxu0 0
        %3373 = vmatpush2.bf16.msra.mxu0 0
        %3374 = vmatprep.subr.bf16.mxu0 0
        %3375 = vmatpush2.bf16.msra.mxu0 0
        %3376 = vmatprep.subr.bf16.mxu0 0
        %3377 = vmatpush2.bf16.msra.mxu0 0
        %3378 = vmatprep.subr.bf16.mxu0 0
        %3379 = vmatpush2.bf16.msra.mxu0 0
        %3380 = vmatprep.subr.bf16.mxu0 0
        %3381 = vmatpush2.bf16.msra.mxu0 0
        %3382 = vmatprep.subr.bf16.mxu0 0
        %3383 = vmatpush2.bf16.msra.mxu0 0
        %3384 = vmatprep.subr.bf16.mxu0 0
        %3385 = vmatpush2.bf16.msra.mxu0 0
        %3386 = vmatprep.subr.bf16.mxu0 0
        %3387 = vmatpush2.bf16.msra.mxu0 0
        %3388 = vmatprep.mubr.bf16.mxu0 0
        %3389 = vmatmul.mubr.bf16.gmra.mxu0 %v336
        %v3390 = vpop.f32.mrf.mxu0
        %v3391 = vadd.f32 0.0, %v3390
        %v3392 = vpop.f32.mrf.mxu0
        %v3393 = vpop.f32.mrf.mxu0
        %v3394 = vadd.f32 0.0, %v3393
        %v3395 = vpop.f32.mrf.mxu0
        %3396 = vmatprep.mubr.bf16.mxu0 0
        %3397 = vmatmul.mubr.bf16.gmra.mxu0 %v339
        %v3398 = vpop.f32.mrf.mxu0
        %v3399 = vadd.f32 0.0, %v3398
        %v3400 = vpop.f32.mrf.mxu0
        %v3401 = vpop.f32.mrf.mxu0
        %v3402 = vadd.f32 0.0, %v3401
        %v3403 = vpop.f32.mrf.mxu0
        %3404 = vmatprep.mubr.bf16.mxu0 0
        %3405 = vmatmul.mubr.bf16.gmra.mxu0 %v2097
        %v3406 = vpop.f32.mrf.mxu0
        %v3407 = vadd.f32 0.0, %v3406
        %v3408 = vpop.f32.mrf.mxu0
        %v3409 = vpop.f32.mrf.mxu0
        %v3410 = vadd.f32 0.0, %v3409
        %v3411 = vpop.f32.mrf.mxu0
        %3412 = vmatprep.mubr.bf16.mxu0 0
        %3413 = vmatmul.mubr.bf16.gmra.mxu0 %v3351
        %v3414 = vpop.f32.mrf.mxu0
        %v3415 = vadd.f32 0.0, %v3414
        %v3416 = vpop.f32.mrf.mxu0
        %v3417 = vpop.f32.mrf.mxu0
        %v3418 = vadd.f32 0.0, %v3417
        %v3419 = vpop.f32.mrf.mxu0
        %3420 = vdwg.mxu0
        %v3421 = vadd.f32 %v3324, %v3391
        %v3422 = vadd.f32 %v3325, %v3394
        %v3423 = vadd.f32 %v3326, %v3399
        %v3424 = vadd.f32 %v3327, %v3402
        %v3425 = vadd.f32 %v3328, %v3407
        %v3426 = vadd.f32 %v3329, %v3410
        %v3427 = vadd.f32 %v3330, %v3415
        %v3428 = vadd.f32 %v3331, %v3418
        %v3430 = vrot.slane %v192, 5
        %v3431 = vrot.slane %v3430, 4
        %v3432 = vrot.slane %v193, 5
        %v3433 = vsel %vm520, %v3431, %v3432
        %s3434 = scalar_lea.vmem %s1, 60
        %v3435 = vld [vmem:[%s3434] sm:$0x3]
        %v3436 = vunpack.c.l.b16 %v3433
        %v3437 = vpack.c.b16 %v3436, %v2809
        %v3439 = vsel %vm328, %v3437, 0
        %v3442 = vsel %vm341, %v3435, 0
        %3444 = vmatprep.subr.bf16.mxu0 0
        %3445 = vmatpush1.bf16.msra.mxu0 0
        %3446 = vmatprep.subr.bf16.mxu0 0
        %3447 = vmatpush1.bf16.msra.mxu0 0
        %3448 = vmatprep.subr.bf16.mxu0 0
        %3449 = vmatpush1.bf16.msra.mxu0 0
        %3450 = vmatprep.subr.bf16.mxu0 0
        %3451 = vmatpush1.bf16.msra.mxu0 0
        %3452 = vmatprep.subr.bf16.mxu0 0
        %3453 = vmatpush1.bf16.msra.mxu0 0
        %3454 = vmatprep.subr.bf16.mxu0 0
        %3455 = vmatpush1.bf16.msra.mxu0 0
        %3456 = vmatprep.subr.bf16.mxu0 0
        %3457 = vmatpush1.bf16.msra.mxu0 0
        %3458 = vmatprep.subr.bf16.mxu0 0
        %3459 = vmatpush1.bf16.msra.mxu0 %v3442
        %3460 = vmatprep.subr.bf16.mxu0 0
        %3461 = vmatpush2.bf16.msra.mxu0 0
        %3462 = vmatprep.subr.bf16.mxu0 0
        %3463 = vmatpush2.bf16.msra.mxu0 0
        %3464 = vmatprep.subr.bf16.mxu0 0
        %3465 = vmatpush2.bf16.msra.mxu0 0
        %3466 = vmatprep.subr.bf16.mxu0 0
        %3467 = vmatpush2.bf16.msra.mxu0 0
        %3468 = vmatprep.subr.bf16.mxu0 0
        %3469 = vmatpush2.bf16.msra.mxu0 0
        %3470 = vmatprep.subr.bf16.mxu0 0
        %3471 = vmatpush2.bf16.msra.mxu0 0
        %3472 = vmatprep.subr.bf16.mxu0 0
        %3473 = vmatpush2.bf16.msra.mxu0 0
        %3474 = vmatprep.subr.bf16.mxu0 0
        %3475 = vmatpush2.bf16.msra.mxu0 0
        %3476 = vmatprep.mubr.bf16.mxu0 0
        %3477 = vmatmul.mubr.bf16.gmra.mxu0 %v574
        %v3478 = vpop.f32.mrf.mxu0
        %v3479 = vadd.f32 0.0, %v3478
        %v3480 = vpop.f32.mrf.mxu0
        %v3481 = vpop.f32.mrf.mxu0
        %v3482 = vadd.f32 0.0, %v3481
        %v3483 = vpop.f32.mrf.mxu0
        %3484 = vmatprep.mubr.bf16.mxu0 0
        %3485 = vmatmul.mubr.bf16.gmra.mxu0 %v577
        %v3486 = vpop.f32.mrf.mxu0
        %v3487 = vadd.f32 0.0, %v3486
        %v3488 = vpop.f32.mrf.mxu0
        %v3489 = vpop.f32.mrf.mxu0
        %v3490 = vadd.f32 0.0, %v3489
        %v3491 = vpop.f32.mrf.mxu0
        %3492 = vmatprep.mubr.bf16.mxu0 0
        %3493 = vmatmul.mubr.bf16.gmra.mxu0 %v2185
        %v3494 = vpop.f32.mrf.mxu0
        %v3495 = vadd.f32 0.0, %v3494
        %v3496 = vpop.f32.mrf.mxu0
        %v3497 = vpop.f32.mrf.mxu0
        %v3498 = vadd.f32 0.0, %v3497
        %v3499 = vpop.f32.mrf.mxu0
        %3500 = vmatprep.mubr.bf16.mxu0 0
        %3501 = vmatmul.mubr.bf16.gmra.mxu0 %v3439
        %v3502 = vpop.f32.mrf.mxu0
        %v3503 = vadd.f32 0.0, %v3502
        %v3504 = vpop.f32.mrf.mxu0
        %v3505 = vpop.f32.mrf.mxu0
        %v3506 = vadd.f32 0.0, %v3505
        %v3507 = vpop.f32.mrf.mxu0
        %3508 = vdwg.mxu0
        %v3509 = vadd.f32 %v3421, %v3479
        %v3510 = vadd.f32 %v3422, %v3482
        %v3511 = vadd.f32 %v3423, %v3487
        %v3512 = vadd.f32 %v3424, %v3490
        %v3513 = vadd.f32 %v3425, %v3495
        %v3514 = vadd.f32 %v3426, %v3498
        %v3515 = vadd.f32 %v3427, %v3503
        %v3516 = vadd.f32 %v3428, %v3506
        %v3517 = vrot.slane %v3333, 5
        %v3518 = vrot.slane %v3336, 6
        %v3519 = vor.u32 %v3517, %v3518
        %v3520 = vrot.slane %v3519, 4
        %v3521 = vshrl.u32 %v193, 16
        %v3523 = vrot.slane %v3521, 5
        %v3524 = vrot.slane %v3342, 6
        %v3525 = vor.u32 %v3523, %v3524
        %v3526 = vsel %vm657, %v3520, %v3525
        %s3527 = scalar_lea.vmem %s1, 62
        %v3528 = vld [vmem:[%s3527] sm:$0x3]
        %v3529 = vunpack.c.l.b16 %v3526
        %v3530 = vpack.c.b16 %v3529, %v2902
        %v3532 = vsel %vm328, %v3530, 0
        %v3535 = vsel %vm341, %v3528, 0
        %3537 = vmatprep.subr.bf16.mxu0 0
        %3538 = vmatpush1.bf16.msra.mxu0 0
        %3539 = vmatprep.subr.bf16.mxu0 0
        %3540 = vmatpush1.bf16.msra.mxu0 0
        %3541 = vmatprep.subr.bf16.mxu0 0
        %3542 = vmatpush1.bf16.msra.mxu0 0
        %3543 = vmatprep.subr.bf16.mxu0 0
        %3544 = vmatpush1.bf16.msra.mxu0 0
        %3545 = vmatprep.subr.bf16.mxu0 0
        %3546 = vmatpush1.bf16.msra.mxu0 0
        %3547 = vmatprep.subr.bf16.mxu0 0
        %3548 = vmatpush1.bf16.msra.mxu0 0
        %3549 = vmatprep.subr.bf16.mxu0 0
        %3550 = vmatpush1.bf16.msra.mxu0 0
        %3551 = vmatprep.subr.bf16.mxu0 0
        %3552 = vmatpush1.bf16.msra.mxu0 %v3535
        %3553 = vmatprep.subr.bf16.mxu0 0
        %3554 = vmatpush2.bf16.msra.mxu0 0
        %3555 = vmatprep.subr.bf16.mxu0 0
        %3556 = vmatpush2.bf16.msra.mxu0 0
        %3557 = vmatprep.subr.bf16.mxu0 0
        %3558 = vmatpush2.bf16.msra.mxu0 0
        %3559 = vmatprep.subr.bf16.mxu0 0
        %3560 = vmatpush2.bf16.msra.mxu0 0
        %3561 = vmatprep.subr.bf16.mxu0 0
        %3562 = vmatpush2.bf16.msra.mxu0 0
        %3563 = vmatprep.subr.bf16.mxu0 0
        %3564 = vmatpush2.bf16.msra.mxu0 0
        %3565 = vmatprep.subr.bf16.mxu0 0
        %3566 = vmatpush2.bf16.msra.mxu0 0
        %3567 = vmatprep.subr.bf16.mxu0 0
        %3568 = vmatpush2.bf16.msra.mxu0 0
        %3569 = vmatprep.mubr.bf16.mxu0 0
        %3570 = vmatmul.mubr.bf16.gmra.mxu0 %v759
        %v3571 = vpop.f32.mrf.mxu0
        %v3572 = vadd.f32 0.0, %v3571
        %v3573 = vpop.f32.mrf.mxu0
        %v3574 = vpop.f32.mrf.mxu0
        %v3575 = vadd.f32 0.0, %v3574
        %v3576 = vpop.f32.mrf.mxu0
        %3577 = vmatprep.mubr.bf16.mxu0 0
        %3578 = vmatmul.mubr.bf16.gmra.mxu0 %v762
        %v3579 = vpop.f32.mrf.mxu0
        %v3580 = vadd.f32 0.0, %v3579
        %v3581 = vpop.f32.mrf.mxu0
        %v3582 = vpop.f32.mrf.mxu0
        %v3583 = vadd.f32 0.0, %v3582
        %v3584 = vpop.f32.mrf.mxu0
        %3585 = vmatprep.mubr.bf16.mxu0 0
        %3586 = vmatmul.mubr.bf16.gmra.mxu0 %v2278
        %v3587 = vpop.f32.mrf.mxu0
        %v3588 = vadd.f32 0.0, %v3587
        %v3589 = vpop.f32.mrf.mxu0
        %v3590 = vpop.f32.mrf.mxu0
        %v3591 = vadd.f32 0.0, %v3590
        %v3592 = vpop.f32.mrf.mxu0
        %3593 = vmatprep.mubr.bf16.mxu0 0
        %3594 = vmatmul.mubr.bf16.gmra.mxu0 %v3532
        %v3595 = vpop.f32.mrf.mxu0
        %v3596 = vadd.f32 0.0, %v3595
        %v3597 = vpop.f32.mrf.mxu0
        %v3598 = vpop.f32.mrf.mxu0
        %v3599 = vadd.f32 0.0, %v3598
        %v3600 = vpop.f32.mrf.mxu0
        %3601 = vdwg.mxu0
        %v3602 = vadd.f32 %v3509, %v3572
        %v3603 = vadd.f32 %v3510, %v3575
        %v3604 = vadd.f32 %v3511, %v3580
        %v3605 = vadd.f32 %v3512, %v3583
        %v3606 = vadd.f32 %v3513, %v3588
        %v3607 = vadd.f32 %v3514, %v3591
        %v3608 = vadd.f32 %v3515, %v3596
        %v3609 = vadd.f32 %v3516, %v3599
        %v3610 = vrot.slane %v192, 6
        %v3611 = vrot.slane %v3610, 4
        %v3612 = vrot.slane %v193, 6
        %v3613 = vsel %vm842, %v3611, %v3612
        %s3614 = scalar_lea.vmem %s1, 64
        %v3615 = vld [vmem:[%s3614] sm:$0x3]
        %v3616 = vunpack.c.l.b16 %v3613
        %v3617 = vpack.c.b16 %v3616, %v2989
        %v3619 = vsel %vm328, %v3617, 0
        %v3622 = vsel %vm341, %v3615, 0
        %3624 = vmatprep.subr.bf16.mxu0 0
        %3625 = vmatpush1.bf16.msra.mxu0 0
        %3626 = vmatprep.subr.bf16.mxu0 0
        %3627 = vmatpush1.bf16.msra.mxu0 0
        %3628 = vmatprep.subr.bf16.mxu0 0
        %3629 = vmatpush1.bf16.msra.mxu0 0
        %3630 = vmatprep.subr.bf16.mxu0 0
        %3631 = vmatpush1.bf16.msra.mxu0 0
        %3632 = vmatprep.subr.bf16.mxu0 0
        %3633 = vmatpush1.bf16.msra.mxu0 0
        %3634 = vmatprep.subr.bf16.mxu0 0
        %3635 = vmatpush1.bf16.msra.mxu0 0
        %3636 = vmatprep.subr.bf16.mxu0 0
        %3637 = vmatpush1.bf16.msra.mxu0 0
        %3638 = vmatprep.subr.bf16.mxu0 0
        %3639 = vmatpush1.bf16.msra.mxu0 %v3622
        %3640 = vmatprep.subr.bf16.mxu0 0
        %3641 = vmatpush2.bf16.msra.mxu0 0
        %3642 = vmatprep.subr.bf16.mxu0 0
        %3643 = vmatpush2.bf16.msra.mxu0 0
        %3644 = vmatprep.subr.bf16.mxu0 0
        %3645 = vmatpush2.bf16.msra.mxu0 0
        %3646 = vmatprep.subr.bf16.mxu0 0
        %3647 = vmatpush2.bf16.msra.mxu0 0
        %3648 = vmatprep.subr.bf16.mxu0 0
        %3649 = vmatpush2.bf16.msra.mxu0 0
        %3650 = vmatprep.subr.bf16.mxu0 0
        %3651 = vmatpush2.bf16.msra.mxu0 0
        %3652 = vmatprep.subr.bf16.mxu0 0
        %3653 = vmatpush2.bf16.msra.mxu0 0
        %3654 = vmatprep.subr.bf16.mxu0 0
        %3655 = vmatpush2.bf16.msra.mxu0 0
        %3656 = vmatprep.mubr.bf16.mxu0 0
        %3657 = vmatmul.mubr.bf16.gmra.mxu0 %v896
        %v3658 = vpop.f32.mrf.mxu0
        %v3659 = vadd.f32 0.0, %v3658
        %v3660 = vpop.f32.mrf.mxu0
        %v3661 = vpop.f32.mrf.mxu0
        %v3662 = vadd.f32 0.0, %v3661
        %v3663 = vpop.f32.mrf.mxu0
        %3664 = vmatprep.mubr.bf16.mxu0 0
        %3665 = vmatmul.mubr.bf16.gmra.mxu0 %v899
        %v3666 = vpop.f32.mrf.mxu0
        %v3667 = vadd.f32 0.0, %v3666
        %v3668 = vpop.f32.mrf.mxu0
        %v3669 = vpop.f32.mrf.mxu0
        %v3670 = vadd.f32 0.0, %v3669
        %v3671 = vpop.f32.mrf.mxu0
        %3672 = vmatprep.mubr.bf16.mxu0 0
        %3673 = vmatmul.mubr.bf16.gmra.mxu0 %v2365
        %v3674 = vpop.f32.mrf.mxu0
        %v3675 = vadd.f32 0.0, %v3674
        %v3676 = vpop.f32.mrf.mxu0
        %v3677 = vpop.f32.mrf.mxu0
        %v3678 = vadd.f32 0.0, %v3677
        %v3679 = vpop.f32.mrf.mxu0
        %3680 = vmatprep.mubr.bf16.mxu0 0
        %3681 = vmatmul.mubr.bf16.gmra.mxu0 %v3619
        %v3682 = vpop.f32.mrf.mxu0
        %v3683 = vadd.f32 0.0, %v3682
        %v3684 = vpop.f32.mrf.mxu0
        %v3685 = vpop.f32.mrf.mxu0
        %v3686 = vadd.f32 0.0, %v3685
        %v3687 = vpop.f32.mrf.mxu0
        %3688 = vdwg.mxu0
        %v3689 = vadd.f32 %v3602, %v3659
        %v3690 = vadd.f32 %v3603, %v3662
        %v3691 = vadd.f32 %v3604, %v3667
        %v3692 = vadd.f32 %v3605, %v3670
        %v3693 = vadd.f32 %v3606, %v3675
        %v3694 = vadd.f32 %v3607, %v3678
        %v3695 = vadd.f32 %v3608, %v3683
        %v3696 = vadd.f32 %v3609, %v3686
        %v3697 = vrot.slane %v3333, 6
        %v3698 = vrot.slane %v3336, 7
        %v3699 = vor.u32 %v3697, %v3698
        %v3700 = vrot.slane %v3699, 4
        %v3701 = vrot.slane %v3521, 6
        %v3702 = vrot.slane %v3342, 7
        %v3703 = vor.u32 %v3701, %v3702
        %v3704 = vsel %vm979, %v3700, %v3703
        %s3705 = scalar_lea.vmem %s1, 66
        %v3706 = vld [vmem:[%s3705] sm:$0x3]
        %v3707 = vunpack.c.l.b16 %v3704
        %v3708 = vpack.c.b16 %v3707, %v3080
        %v3710 = vsel %vm328, %v3708, 0
        %v3713 = vsel %vm341, %v3706, 0
        %3715 = vmatprep.subr.bf16.mxu0 0
        %3716 = vmatpush1.bf16.msra.mxu0 0
        %3717 = vmatprep.subr.bf16.mxu0 0
        %3718 = vmatpush1.bf16.msra.mxu0 0
        %3719 = vmatprep.subr.bf16.mxu0 0
        %3720 = vmatpush1.bf16.msra.mxu0 0
        %3721 = vmatprep.subr.bf16.mxu0 0
        %3722 = vmatpush1.bf16.msra.mxu0 0
        %3723 = vmatprep.subr.bf16.mxu0 0
        %3724 = vmatpush1.bf16.msra.mxu0 0
        %3725 = vmatprep.subr.bf16.mxu0 0
        %3726 = vmatpush1.bf16.msra.mxu0 0
        %3727 = vmatprep.subr.bf16.mxu0 0
        %3728 = vmatpush1.bf16.msra.mxu0 0
        %3729 = vmatprep.subr.bf16.mxu0 0
        %3730 = vmatpush1.bf16.msra.mxu0 %v3713
        %3731 = vmatprep.subr.bf16.mxu0 0
        %3732 = vmatpush2.bf16.msra.mxu0 0
        %3733 = vmatprep.subr.bf16.mxu0 0
        %3734 = vmatpush2.bf16.msra.mxu0 0
        %3735 = vmatprep.subr.bf16.mxu0 0
        %3736 = vmatpush2.bf16.msra.mxu0 0
        %3737 = vmatprep.subr.bf16.mxu0 0
        %3738 = vmatpush2.bf16.msra.mxu0 0
        %3739 = vmatprep.subr.bf16.mxu0 0
        %3740 = vmatpush2.bf16.msra.mxu0 0
        %3741 = vmatprep.subr.bf16.mxu0 0
        %3742 = vmatpush2.bf16.msra.mxu0 0
        %3743 = vmatprep.subr.bf16.mxu0 0
        %3744 = vmatpush2.bf16.msra.mxu0 0
        %3745 = vmatprep.subr.bf16.mxu0 0
        %3746 = vmatpush2.bf16.msra.mxu0 0
        %3747 = vmatprep.mubr.bf16.mxu0 0
        %3748 = vmatmul.mubr.bf16.gmra.mxu0 %v1065
        %v3749 = vpop.f32.mrf.mxu0
        %v3750 = vadd.f32 0.0, %v3749
        %v3751 = vpop.f32.mrf.mxu0
        %v3752 = vpop.f32.mrf.mxu0
        %v3753 = vadd.f32 0.0, %v3752
        %v3754 = vpop.f32.mrf.mxu0
        %3755 = vmatprep.mubr.bf16.mxu0 0
        %3756 = vmatmul.mubr.bf16.gmra.mxu0 %v1068
        %v3757 = vpop.f32.mrf.mxu0
        %v3758 = vadd.f32 0.0, %v3757
        %v3759 = vpop.f32.mrf.mxu0
        %v3760 = vpop.f32.mrf.mxu0
        %v3761 = vadd.f32 0.0, %v3760
        %v3762 = vpop.f32.mrf.mxu0
        %3763 = vmatprep.mubr.bf16.mxu0 0
        %3764 = vmatmul.mubr.bf16.gmra.mxu0 %v2456
        %v3765 = vpop.f32.mrf.mxu0
        %v3766 = vadd.f32 0.0, %v3765
        %v3767 = vpop.f32.mrf.mxu0
        %v3768 = vpop.f32.mrf.mxu0
        %v3769 = vadd.f32 0.0, %v3768
        %v3770 = vpop.f32.mrf.mxu0
        %3771 = vmatprep.mubr.bf16.mxu0 0
        %3772 = vmatmul.mubr.bf16.gmra.mxu0 %v3710
        %v3773 = vpop.f32.mrf.mxu0
        %v3774 = vadd.f32 0.0, %v3773
        %v3775 = vpop.f32.mrf.mxu0
        %v3776 = vpop.f32.mrf.mxu0
        %v3777 = vadd.f32 0.0, %v3776
        %v3778 = vpop.f32.mrf.mxu0
        %3779 = vdwg.mxu0
        %v3780 = vadd.f32 %v3689, %v3750
        %v3781 = vadd.f32 %v3690, %v3753
        %v3782 = vadd.f32 %v3691, %v3758
        %v3783 = vadd.f32 %v3692, %v3761
        %v3784 = vadd.f32 %v3693, %v3766
        %v3785 = vadd.f32 %v3694, %v3769
        %v3786 = vadd.f32 %v3695, %v3774
        %v3787 = vadd.f32 %v3696, %v3777
        %v3788 = vrot.slane %v192, 7
        %v3789 = vrot.slane %v3788, 4
        %v3790 = vrot.slane %v193, 7
        %v3791 = vsel %vm1148, %v3789, %v3790
        %s3792 = scalar_lea.vmem %s1, 68
        %v3793 = vld [vmem:[%s3792] sm:$0x3]
        %v3794 = vunpack.c.l.b16 %v3791
        %v3795 = vpack.c.b16 %v3794, %v3167
        %v3797 = vsel %vm328, %v3795, 0
        %v3800 = vsel %vm341, %v3793, 0
        %3802 = vmatprep.subr.bf16.mxu0 0
        %3803 = vmatpush1.bf16.msra.mxu0 0
        %3804 = vmatprep.subr.bf16.mxu0 0
        %3805 = vmatpush1.bf16.msra.mxu0 0
        %3806 = vmatprep.subr.bf16.mxu0 0
        %3807 = vmatpush1.bf16.msra.mxu0 0
        %3808 = vmatprep.subr.bf16.mxu0 0
        %3809 = vmatpush1.bf16.msra.mxu0 0
        %3810 = vmatprep.subr.bf16.mxu0 0
        %3811 = vmatpush1.bf16.msra.mxu0 0
        %3812 = vmatprep.subr.bf16.mxu0 0
        %3813 = vmatpush1.bf16.msra.mxu0 0
        %3814 = vmatprep.subr.bf16.mxu0 0
        %3815 = vmatpush1.bf16.msra.mxu0 0
        %3816 = vmatprep.subr.bf16.mxu0 0
        %3817 = vmatpush1.bf16.msra.mxu0 %v3800
        %3818 = vmatprep.subr.bf16.mxu0 0
        %3819 = vmatpush2.bf16.msra.mxu0 0
        %3820 = vmatprep.subr.bf16.mxu0 0
        %3821 = vmatpush2.bf16.msra.mxu0 0
        %3822 = vmatprep.subr.bf16.mxu0 0
        %3823 = vmatpush2.bf16.msra.mxu0 0
        %3824 = vmatprep.subr.bf16.mxu0 0
        %3825 = vmatpush2.bf16.msra.mxu0 0
        %3826 = vmatprep.subr.bf16.mxu0 0
        %3827 = vmatpush2.bf16.msra.mxu0 0
        %3828 = vmatprep.subr.bf16.mxu0 0
        %3829 = vmatpush2.bf16.msra.mxu0 0
        %3830 = vmatprep.subr.bf16.mxu0 0
        %3831 = vmatpush2.bf16.msra.mxu0 0
        %3832 = vmatprep.subr.bf16.mxu0 0
        %3833 = vmatpush2.bf16.msra.mxu0 0
        %3834 = vmatprep.mubr.bf16.mxu0 0
        %3835 = vmatmul.mubr.bf16.gmra.mxu0 %v1202
        %v3836 = vpop.f32.mrf.mxu0
        %v3837 = vadd.f32 0.0, %v3836
        %v3838 = vpop.f32.mrf.mxu0
        %v3839 = vpop.f32.mrf.mxu0
        %v3840 = vadd.f32 0.0, %v3839
        %v3841 = vpop.f32.mrf.mxu0
        %3842 = vmatprep.mubr.bf16.mxu0 0
        %3843 = vmatmul.mubr.bf16.gmra.mxu0 %v1205
        %v3844 = vpop.f32.mrf.mxu0
        %v3845 = vadd.f32 0.0, %v3844
        %v3846 = vpop.f32.mrf.mxu0
        %v3847 = vpop.f32.mrf.mxu0
        %v3848 = vadd.f32 0.0, %v3847
        %v3849 = vpop.f32.mrf.mxu0
        %3850 = vmatprep.mubr.bf16.mxu0 0
        %3851 = vmatmul.mubr.bf16.gmra.mxu0 %v2543
        %v3852 = vpop.f32.mrf.mxu0
        %v3853 = vadd.f32 0.0, %v3852
        %v3854 = vpop.f32.mrf.mxu0
        %v3855 = vpop.f32.mrf.mxu0
        %v3856 = vadd.f32 0.0, %v3855
        %v3857 = vpop.f32.mrf.mxu0
        %3858 = vmatprep.mubr.bf16.mxu0 0
        %3859 = vmatmul.mubr.bf16.gmra.mxu0 %v3797
        %v3860 = vpop.f32.mrf.mxu0
        %v3861 = vadd.f32 0.0, %v3860
        %v3862 = vpop.f32.mrf.mxu0
        %v3863 = vpop.f32.mrf.mxu0
        %v3864 = vadd.f32 0.0, %v3863
        %v3865 = vpop.f32.mrf.mxu0
        %3866 = vdwg.mxu0
        %v3867 = vadd.f32 %v3780, %v3837
        %v3868 = vadd.f32 %v3781, %v3840
        %v3869 = vadd.f32 %v3782, %v3845
        %v3870 = vadd.f32 %v3783, %v3848
        %v3871 = vadd.f32 %v3784, %v3853
        %v3872 = vadd.f32 %v3785, %v3856
        %v3873 = vadd.f32 %v3786, %v3861
        %v3874 = vadd.f32 %v3787, %v3864
        %s3875 = scalar_lea.vmem %s1, 70
        %v3876 = vld [vmem:[%s3875] sm:$0x3]
        %v3878 = vunpack.c.l.b16 %v194
        %v3879 = vpack.c.b16 %v3878, %v3251
        %v3881 = vsel %vm328, %v3879, 0
        %v3884 = vsel %vm341, %v3876, 0
        %3886 = vmatprep.subr.bf16.mxu0 0
        %3887 = vmatpush1.bf16.msra.mxu0 0
        %3888 = vmatprep.subr.bf16.mxu0 0
        %3889 = vmatpush1.bf16.msra.mxu0 0
        %3890 = vmatprep.subr.bf16.mxu0 0
        %3891 = vmatpush1.bf16.msra.mxu0 0
        %3892 = vmatprep.subr.bf16.mxu0 0
        %3893 = vmatpush1.bf16.msra.mxu0 0
        %3894 = vmatprep.subr.bf16.mxu0 0
        %3895 = vmatpush1.bf16.msra.mxu0 0
        %3896 = vmatprep.subr.bf16.mxu0 0
        %3897 = vmatpush1.bf16.msra.mxu0 0
        %3898 = vmatprep.subr.bf16.mxu0 0
        %3899 = vmatpush1.bf16.msra.mxu0 0
        %3900 = vmatprep.subr.bf16.mxu0 0
        %3901 = vmatpush1.bf16.msra.mxu0 %v3884
        %3902 = vmatprep.subr.bf16.mxu0 0
        %3903 = vmatpush2.bf16.msra.mxu0 0
        %3904 = vmatprep.subr.bf16.mxu0 0
        %3905 = vmatpush2.bf16.msra.mxu0 0
        %3906 = vmatprep.subr.bf16.mxu0 0
        %3907 = vmatpush2.bf16.msra.mxu0 0
        %3908 = vmatprep.subr.bf16.mxu0 0
        %3909 = vmatpush2.bf16.msra.mxu0 0
        %3910 = vmatprep.subr.bf16.mxu0 0
        %3911 = vmatpush2.bf16.msra.mxu0 0
        %3912 = vmatprep.subr.bf16.mxu0 0
        %3913 = vmatpush2.bf16.msra.mxu0 0
        %3914 = vmatprep.subr.bf16.mxu0 0
        %3915 = vmatpush2.bf16.msra.mxu0 0
        %3916 = vmatprep.subr.bf16.mxu0 0
        %3917 = vmatpush2.bf16.msra.mxu0 0
        %3918 = vmatprep.mubr.bf16.mxu0 0
        %3919 = vmatmul.mubr.bf16.gmra.mxu0 %v1298
        %v3920 = vpop.f32.mrf.mxu0
        %v3921 = vadd.f32 0.0, %v3920
        %v3922 = vpop.f32.mrf.mxu0
        %v3923 = vpop.f32.mrf.mxu0
        %v3924 = vadd.f32 0.0, %v3923
        %v3925 = vpop.f32.mrf.mxu0
        %3926 = vmatprep.mubr.bf16.mxu0 0
        %3927 = vmatmul.mubr.bf16.gmra.mxu0 %v1301
        %v3928 = vpop.f32.mrf.mxu0
        %v3929 = vadd.f32 0.0, %v3928
        %v3930 = vpop.f32.mrf.mxu0
        %v3931 = vpop.f32.mrf.mxu0
        %v3932 = vadd.f32 0.0, %v3931
        %v3933 = vpop.f32.mrf.mxu0
        %3934 = vmatprep.mubr.bf16.mxu0 0
        %3935 = vmatmul.mubr.bf16.gmra.mxu0 %v2627
        %v3936 = vpop.f32.mrf.mxu0
        %v3937 = vadd.f32 0.0, %v3936
        %v3938 = vpop.f32.mrf.mxu0
        %v3939 = vpop.f32.mrf.mxu0
        %v3940 = vadd.f32 0.0, %v3939
        %v3941 = vpop.f32.mrf.mxu0
        %3942 = vmatprep.mubr.bf16.mxu0 0
        %3943 = vmatmul.mubr.bf16.gmra.mxu0 %v3881
        %v3944 = vpop.f32.mrf.mxu0
        %v3945 = vadd.f32 0.0, %v3944
        %v3946 = vpop.f32.mrf.mxu0
        %v3947 = vpop.f32.mrf.mxu0
        %v3948 = vadd.f32 0.0, %v3947
        %v3949 = vpop.f32.mrf.mxu0
        %3950 = vdwg.mxu0
        %v3951 = vadd.f32 %v3867, %v3921
        %v3952 = vadd.f32 %v3868, %v3924
        %v3953 = vadd.f32 %v3869, %v3929
        %v3954 = vadd.f32 %v3870, %v3932
        %v3955 = vadd.f32 %v3871, %v3937
        %v3956 = vadd.f32 %v3872, %v3940
        %v3957 = vadd.f32 %v3873, %v3945
        %v3958 = vadd.f32 %v3874, %v3948
        %v3960 = vshrl.u32 %v194, 16
        %v3962 = vrot.slane %v3960, 4
        %v3963 = vshll.u32 %v194, 16
        %v3965 = vrot.slane %v3963, 5
        %v3966 = vor.u32 %v3962, %v3965
        %v3967 = vrot.slane %v3966, 4
        %v3969 = vshll.u32 %v195, 16
        %v3971 = vrot.slane %v3969, 5
        %v3972 = vsel %vm201, %v3967, %v3971
        %s3973 = scalar_lea.vmem %s1, 72
        %v3974 = vld [vmem:[%s3973] sm:$0x3]
        %v3975 = vunpack.c.l.b16 %v3972
        %v3976 = vpack.c.b16 %v3975, %v3348
        %v3978 = vsel %vm328, %v3976, 0
        %v3981 = vsel %vm341, %v3974, 0
        %3983 = vmatprep.subr.bf16.mxu0 0
        %3984 = vmatpush1.bf16.msra.mxu0 0
        %3985 = vmatprep.subr.bf16.mxu0 0
        %3986 = vmatpush1.bf16.msra.mxu0 0
        %3987 = vmatprep.subr.bf16.mxu0 0
        %3988 = vmatpush1.bf16.msra.mxu0 0
        %3989 = vmatprep.subr.bf16.mxu0 0
        %3990 = vmatpush1.bf16.msra.mxu0 0
        %3991 = vmatprep.subr.bf16.mxu0 0
        %3992 = vmatpush1.bf16.msra.mxu0 0
        %3993 = vmatprep.subr.bf16.mxu0 0
        %3994 = vmatpush1.bf16.msra.mxu0 0
        %3995 = vmatprep.subr.bf16.mxu0 0
        %3996 = vmatpush1.bf16.msra.mxu0 0
        %3997 = vmatprep.subr.bf16.mxu0 0
        %3998 = vmatpush1.bf16.msra.mxu0 %v3981
        %3999 = vmatprep.subr.bf16.mxu0 0
        %4000 = vmatpush2.bf16.msra.mxu0 0
        %4001 = vmatprep.subr.bf16.mxu0 0
        %4002 = vmatpush2.bf16.msra.mxu0 0
        %4003 = vmatprep.subr.bf16.mxu0 0
        %4004 = vmatpush2.bf16.msra.mxu0 0
        %4005 = vmatprep.subr.bf16.mxu0 0
        %4006 = vmatpush2.bf16.msra.mxu0 0
        %4007 = vmatprep.subr.bf16.mxu0 0
        %4008 = vmatpush2.bf16.msra.mxu0 0
        %4009 = vmatprep.subr.bf16.mxu0 0
        %4010 = vmatpush2.bf16.msra.mxu0 0
        %4011 = vmatprep.subr.bf16.mxu0 0
        %4012 = vmatpush2.bf16.msra.mxu0 0
        %4013 = vmatprep.subr.bf16.mxu0 0
        %4014 = vmatpush2.bf16.msra.mxu0 0
        %4015 = vmatprep.mubr.bf16.mxu0 0
        %4016 = vmatmul.mubr.bf16.gmra.mxu0 %v1407
        %v4017 = vpop.f32.mrf.mxu0
        %v4018 = vadd.f32 0.0, %v4017
        %v4019 = vpop.f32.mrf.mxu0
        %v4020 = vpop.f32.mrf.mxu0
        %v4021 = vadd.f32 0.0, %v4020
        %v4022 = vpop.f32.mrf.mxu0
        %4023 = vmatprep.mubr.bf16.mxu0 0
        %4024 = vmatmul.mubr.bf16.gmra.mxu0 %v1410
        %v4025 = vpop.f32.mrf.mxu0
        %v4026 = vadd.f32 0.0, %v4025
        %v4027 = vpop.f32.mrf.mxu0
        %v4028 = vpop.f32.mrf.mxu0
        %v4029 = vadd.f32 0.0, %v4028
        %v4030 = vpop.f32.mrf.mxu0
        %4031 = vmatprep.mubr.bf16.mxu0 0
        %4032 = vmatmul.mubr.bf16.gmra.mxu0 %v2724
        %v4033 = vpop.f32.mrf.mxu0
        %v4034 = vadd.f32 0.0, %v4033
        %v4035 = vpop.f32.mrf.mxu0
        %v4036 = vpop.f32.mrf.mxu0
        %v4037 = vadd.f32 0.0, %v4036
        %v4038 = vpop.f32.mrf.mxu0
        %4039 = vmatprep.mubr.bf16.mxu0 0
        %4040 = vmatmul.mubr.bf16.gmra.mxu0 %v3978
        %v4041 = vpop.f32.mrf.mxu0
        %v4042 = vadd.f32 0.0, %v4041
        %v4043 = vpop.f32.mrf.mxu0
        %v4044 = vpop.f32.mrf.mxu0
        %v4045 = vadd.f32 0.0, %v4044
        %v4046 = vpop.f32.mrf.mxu0
        %4047 = vdwg.mxu0
        %v4048 = vadd.f32 %v3951, %v4018
        %v4049 = vadd.f32 %v3952, %v4021
        %v4050 = vadd.f32 %v3953, %v4026
        %v4051 = vadd.f32 %v3954, %v4029
        %v4052 = vadd.f32 %v3955, %v4034
        %v4053 = vadd.f32 %v3956, %v4037
        %v4054 = vadd.f32 %v3957, %v4042
        %v4055 = vadd.f32 %v3958, %v4045
        %v4057 = vrot.slane %v194, 5
        %v4058 = vrot.slane %v4057, 4
        %v4059 = vrot.slane %v195, 5
        %v4060 = vsel %vm520, %v4058, %v4059
        %s4061 = scalar_lea.vmem %s1, 74
        %v4062 = vld [vmem:[%s4061] sm:$0x3]
        %v4063 = vunpack.c.l.b16 %v4060
        %v4064 = vpack.c.b16 %v4063, %v3436
        %v4066 = vsel %vm328, %v4064, 0
        %v4069 = vsel %vm341, %v4062, 0
        %4071 = vmatprep.subr.bf16.mxu0 0
        %4072 = vmatpush1.bf16.msra.mxu0 0
        %4073 = vmatprep.subr.bf16.mxu0 0
        %4074 = vmatpush1.bf16.msra.mxu0 0
        %4075 = vmatprep.subr.bf16.mxu0 0
        %4076 = vmatpush1.bf16.msra.mxu0 0
        %4077 = vmatprep.subr.bf16.mxu0 0
        %4078 = vmatpush1.bf16.msra.mxu0 0
        %4079 = vmatprep.subr.bf16.mxu0 0
        %4080 = vmatpush1.bf16.msra.mxu0 0
        %4081 = vmatprep.subr.bf16.mxu0 0
        %4082 = vmatpush1.bf16.msra.mxu0 0
        %4083 = vmatprep.subr.bf16.mxu0 0
        %4084 = vmatpush1.bf16.msra.mxu0 0
        %4085 = vmatprep.subr.bf16.mxu0 0
        %4086 = vmatpush1.bf16.msra.mxu0 %v4069
        %4087 = vmatprep.subr.bf16.mxu0 0
        %4088 = vmatpush2.bf16.msra.mxu0 0
        %4089 = vmatprep.subr.bf16.mxu0 0
        %4090 = vmatpush2.bf16.msra.mxu0 0
        %4091 = vmatprep.subr.bf16.mxu0 0
        %4092 = vmatpush2.bf16.msra.mxu0 0
        %4093 = vmatprep.subr.bf16.mxu0 0
        %4094 = vmatpush2.bf16.msra.mxu0 0
        %4095 = vmatprep.subr.bf16.mxu0 0
        %4096 = vmatpush2.bf16.msra.mxu0 0
        %4097 = vmatprep.subr.bf16.mxu0 0
        %4098 = vmatpush2.bf16.msra.mxu0 0
        %4099 = vmatprep.subr.bf16.mxu0 0
        %4100 = vmatpush2.bf16.msra.mxu0 0
        %4101 = vmatprep.subr.bf16.mxu0 0
        %4102 = vmatpush2.bf16.msra.mxu0 0
        %4103 = vmatprep.mubr.bf16.mxu0 0
        %4104 = vmatmul.mubr.bf16.gmra.mxu0 %v1507
        %v4105 = vpop.f32.mrf.mxu0
        %v4106 = vadd.f32 0.0, %v4105
        %v4107 = vpop.f32.mrf.mxu0
        %v4108 = vpop.f32.mrf.mxu0
        %v4109 = vadd.f32 0.0, %v4108
        %v4110 = vpop.f32.mrf.mxu0
        %4111 = vmatprep.mubr.bf16.mxu0 0
        %4112 = vmatmul.mubr.bf16.gmra.mxu0 %v1510
        %v4113 = vpop.f32.mrf.mxu0
        %v4114 = vadd.f32 0.0, %v4113
        %v4115 = vpop.f32.mrf.mxu0
        %v4116 = vpop.f32.mrf.mxu0
        %v4117 = vadd.f32 0.0, %v4116
        %v4118 = vpop.f32.mrf.mxu0
        %4119 = vmatprep.mubr.bf16.mxu0 0
        %4120 = vmatmul.mubr.bf16.gmra.mxu0 %v2812
        %v4121 = vpop.f32.mrf.mxu0
        %v4122 = vadd.f32 0.0, %v4121
        %v4123 = vpop.f32.mrf.mxu0
        %v4124 = vpop.f32.mrf.mxu0
        %v4125 = vadd.f32 0.0, %v4124
        %v4126 = vpop.f32.mrf.mxu0
        %4127 = vmatprep.mubr.bf16.mxu0 0
        %4128 = vmatmul.mubr.bf16.gmra.mxu0 %v4066
        %v4129 = vpop.f32.mrf.mxu0
        %v4130 = vadd.f32 0.0, %v4129
        %v4131 = vpop.f32.mrf.mxu0
        %v4132 = vpop.f32.mrf.mxu0
        %v4133 = vadd.f32 0.0, %v4132
        %v4134 = vpop.f32.mrf.mxu0
        %4135 = vdwg.mxu0
        %v4136 = vadd.f32 %v4048, %v4106
        %v4137 = vadd.f32 %v4049, %v4109
        %v4138 = vadd.f32 %v4050, %v4114
        %v4139 = vadd.f32 %v4051, %v4117
        %v4140 = vadd.f32 %v4052, %v4122
        %v4141 = vadd.f32 %v4053, %v4125
        %v4142 = vadd.f32 %v4054, %v4130
        %v4143 = vadd.f32 %v4055, %v4133
        %v4144 = vrot.slane %v3960, 5
        %v4145 = vrot.slane %v3963, 6
        %v4146 = vor.u32 %v4144, %v4145
        %v4147 = vrot.slane %v4146, 4
        %v4148 = vshrl.u32 %v195, 16
        %v4150 = vrot.slane %v4148, 5
        %v4151 = vrot.slane %v3969, 6
        %v4152 = vor.u32 %v4150, %v4151
        %v4153 = vsel %vm657, %v4147, %v4152
        %s4154 = scalar_lea.vmem %s1, 76
        %v4155 = vld [vmem:[%s4154] sm:$0x3]
        %v4156 = vunpack.c.l.b16 %v4153
        %v4157 = vpack.c.b16 %v4156, %v3529
        %v4159 = vsel %vm328, %v4157, 0
        %v4162 = vsel %vm341, %v4155, 0
        %4164 = vmatprep.subr.bf16.mxu0 0
        %4165 = vmatpush1.bf16.msra.mxu0 0
        %4166 = vmatprep.subr.bf16.mxu0 0
        %4167 = vmatpush1.bf16.msra.mxu0 0
        %4168 = vmatprep.subr.bf16.mxu0 0
        %4169 = vmatpush1.bf16.msra.mxu0 0
        %4170 = vmatprep.subr.bf16.mxu0 0
        %4171 = vmatpush1.bf16.msra.mxu0 0
        %4172 = vmatprep.subr.bf16.mxu0 0
        %4173 = vmatpush1.bf16.msra.mxu0 0
        %4174 = vmatprep.subr.bf16.mxu0 0
        %4175 = vmatpush1.bf16.msra.mxu0 0
        %4176 = vmatprep.subr.bf16.mxu0 0
        %4177 = vmatpush1.bf16.msra.mxu0 0
        %4178 = vmatprep.subr.bf16.mxu0 0
        %4179 = vmatpush1.bf16.msra.mxu0 %v4162
        %4180 = vmatprep.subr.bf16.mxu0 0
        %4181 = vmatpush2.bf16.msra.mxu0 0
        %4182 = vmatprep.subr.bf16.mxu0 0
        %4183 = vmatpush2.bf16.msra.mxu0 0
        %4184 = vmatprep.subr.bf16.mxu0 0
        %4185 = vmatpush2.bf16.msra.mxu0 0
        %4186 = vmatprep.subr.bf16.mxu0 0
        %4187 = vmatpush2.bf16.msra.mxu0 0
        %4188 = vmatprep.subr.bf16.mxu0 0
        %4189 = vmatpush2.bf16.msra.mxu0 0
        %4190 = vmatprep.subr.bf16.mxu0 0
        %4191 = vmatpush2.bf16.msra.mxu0 0
        %4192 = vmatprep.subr.bf16.mxu0 0
        %4193 = vmatpush2.bf16.msra.mxu0 0
        %4194 = vmatprep.subr.bf16.mxu0 0
        %4195 = vmatpush2.bf16.msra.mxu0 0
        %4196 = vmatprep.mubr.bf16.mxu0 0
        %4197 = vmatmul.mubr.bf16.gmra.mxu0 %v1612
        %v4198 = vpop.f32.mrf.mxu0
        %v4199 = vadd.f32 0.0, %v4198
        %v4200 = vpop.f32.mrf.mxu0
        %v4201 = vpop.f32.mrf.mxu0
        %v4202 = vadd.f32 0.0, %v4201
        %v4203 = vpop.f32.mrf.mxu0
        %4204 = vmatprep.mubr.bf16.mxu0 0
        %4205 = vmatmul.mubr.bf16.gmra.mxu0 %v1615
        %v4206 = vpop.f32.mrf.mxu0
        %v4207 = vadd.f32 0.0, %v4206
        %v4208 = vpop.f32.mrf.mxu0
        %v4209 = vpop.f32.mrf.mxu0
        %v4210 = vadd.f32 0.0, %v4209
        %v4211 = vpop.f32.mrf.mxu0
        %4212 = vmatprep.mubr.bf16.mxu0 0
        %4213 = vmatmul.mubr.bf16.gmra.mxu0 %v2905
        %v4214 = vpop.f32.mrf.mxu0
        %v4215 = vadd.f32 0.0, %v4214
        %v4216 = vpop.f32.mrf.mxu0
        %v4217 = vpop.f32.mrf.mxu0
        %v4218 = vadd.f32 0.0, %v4217
        %v4219 = vpop.f32.mrf.mxu0
        %4220 = vmatprep.mubr.bf16.mxu0 0
        %4221 = vmatmul.mubr.bf16.gmra.mxu0 %v4159
        %v4222 = vpop.f32.mrf.mxu0
        %v4223 = vadd.f32 0.0, %v4222
        %v4224 = vpop.f32.mrf.mxu0
        %v4225 = vpop.f32.mrf.mxu0
        %v4226 = vadd.f32 0.0, %v4225
        %v4227 = vpop.f32.mrf.mxu0
        %4228 = vdwg.mxu0
        %v4229 = vadd.f32 %v4136, %v4199
        %v4230 = vadd.f32 %v4137, %v4202
        %v4231 = vadd.f32 %v4138, %v4207
        %v4232 = vadd.f32 %v4139, %v4210
        %v4233 = vadd.f32 %v4140, %v4215
        %v4234 = vadd.f32 %v4141, %v4218
        %v4235 = vadd.f32 %v4142, %v4223
        %v4236 = vadd.f32 %v4143, %v4226
        %v4237 = vrot.slane %v194, 6
        %v4238 = vrot.slane %v4237, 4
        %v4239 = vrot.slane %v195, 6
        %v4240 = vsel %vm842, %v4238, %v4239
        %s4241 = scalar_lea.vmem %s1, 78
        %v4242 = vld [vmem:[%s4241] sm:$0x3]
        %v4243 = vunpack.c.l.b16 %v4240
        %v4244 = vpack.c.b16 %v4243, %v3616
        %v4246 = vsel %vm328, %v4244, 0
        %v4249 = vsel %vm341, %v4242, 0
        %4251 = vmatprep.subr.bf16.mxu0 0
        %4252 = vmatpush1.bf16.msra.mxu0 0
        %4253 = vmatprep.subr.bf16.mxu0 0
        %4254 = vmatpush1.bf16.msra.mxu0 0
        %4255 = vmatprep.subr.bf16.mxu0 0
        %4256 = vmatpush1.bf16.msra.mxu0 0
        %4257 = vmatprep.subr.bf16.mxu0 0
        %4258 = vmatpush1.bf16.msra.mxu0 0
        %4259 = vmatprep.subr.bf16.mxu0 0
        %4260 = vmatpush1.bf16.msra.mxu0 0
        %4261 = vmatprep.subr.bf16.mxu0 0
        %4262 = vmatpush1.bf16.msra.mxu0 0
        %4263 = vmatprep.subr.bf16.mxu0 0
        %4264 = vmatpush1.bf16.msra.mxu0 0
        %4265 = vmatprep.subr.bf16.mxu0 0
        %4266 = vmatpush1.bf16.msra.mxu0 %v4249
        %4267 = vmatprep.subr.bf16.mxu0 0
        %4268 = vmatpush2.bf16.msra.mxu0 0
        %4269 = vmatprep.subr.bf16.mxu0 0
        %4270 = vmatpush2.bf16.msra.mxu0 0
        %4271 = vmatprep.subr.bf16.mxu0 0
        %4272 = vmatpush2.bf16.msra.mxu0 0
        %4273 = vmatprep.subr.bf16.mxu0 0
        %4274 = vmatpush2.bf16.msra.mxu0 0
        %4275 = vmatprep.subr.bf16.mxu0 0
        %4276 = vmatpush2.bf16.msra.mxu0 0
        %4277 = vmatprep.subr.bf16.mxu0 0
        %4278 = vmatpush2.bf16.msra.mxu0 0
        %4279 = vmatprep.subr.bf16.mxu0 0
        %4280 = vmatpush2.bf16.msra.mxu0 0
        %4281 = vmatprep.subr.bf16.mxu0 0
        %4282 = vmatpush2.bf16.msra.mxu0 0
        %4283 = vmatprep.mubr.bf16.mxu0 0
        %4284 = vmatmul.mubr.bf16.gmra.mxu0 %v1711
        %v4285 = vpop.f32.mrf.mxu0
        %v4286 = vadd.f32 0.0, %v4285
        %v4287 = vpop.f32.mrf.mxu0
        %v4288 = vpop.f32.mrf.mxu0
        %v4289 = vadd.f32 0.0, %v4288
        %v4290 = vpop.f32.mrf.mxu0
        %4291 = vmatprep.mubr.bf16.mxu0 0
        %4292 = vmatmul.mubr.bf16.gmra.mxu0 %v1714
        %v4293 = vpop.f32.mrf.mxu0
        %v4294 = vadd.f32 0.0, %v4293
        %v4295 = vpop.f32.mrf.mxu0
        %v4296 = vpop.f32.mrf.mxu0
        %v4297 = vadd.f32 0.0, %v4296
        %v4298 = vpop.f32.mrf.mxu0
        %4299 = vmatprep.mubr.bf16.mxu0 0
        %4300 = vmatmul.mubr.bf16.gmra.mxu0 %v2992
        %v4301 = vpop.f32.mrf.mxu0
        %v4302 = vadd.f32 0.0, %v4301
        %v4303 = vpop.f32.mrf.mxu0
        %v4304 = vpop.f32.mrf.mxu0
        %v4305 = vadd.f32 0.0, %v4304
        %v4306 = vpop.f32.mrf.mxu0
        %4307 = vmatprep.mubr.bf16.mxu0 0
        %4308 = vmatmul.mubr.bf16.gmra.mxu0 %v4246
        %v4309 = vpop.f32.mrf.mxu0
        %v4310 = vadd.f32 0.0, %v4309
        %v4311 = vpop.f32.mrf.mxu0
        %v4312 = vpop.f32.mrf.mxu0
        %v4313 = vadd.f32 0.0, %v4312
        %v4314 = vpop.f32.mrf.mxu0
        %4315 = vdwg.mxu0
        %v4316 = vadd.f32 %v4229, %v4286
        %v4317 = vadd.f32 %v4230, %v4289
        %v4318 = vadd.f32 %v4231, %v4294
        %v4319 = vadd.f32 %v4232, %v4297
        %v4320 = vadd.f32 %v4233, %v4302
        %v4321 = vadd.f32 %v4234, %v4305
        %v4322 = vadd.f32 %v4235, %v4310
        %v4323 = vadd.f32 %v4236, %v4313
        %v4324 = vrot.slane %v3960, 6
        %v4325 = vrot.slane %v3963, 7
        %v4326 = vor.u32 %v4324, %v4325
        %v4327 = vrot.slane %v4326, 4
        %v4328 = vrot.slane %v4148, 6
        %v4329 = vrot.slane %v3969, 7
        %v4330 = vor.u32 %v4328, %v4329
        %v4331 = vsel %vm979, %v4327, %v4330
        %s4332 = scalar_lea.vmem %s1, 80
        %v4333 = vld [vmem:[%s4332] sm:$0x3]
        %v4334 = vunpack.c.l.b16 %v4331
        %v4335 = vpack.c.b16 %v4334, %v3707
        %v4337 = vsel %vm328, %v4335, 0
        %v4340 = vsel %vm341, %v4333, 0
        %4342 = vmatprep.subr.bf16.mxu0 0
        %4343 = vmatpush1.bf16.msra.mxu0 0
        %4344 = vmatprep.subr.bf16.mxu0 0
        %4345 = vmatpush1.bf16.msra.mxu0 0
        %4346 = vmatprep.subr.bf16.mxu0 0
        %4347 = vmatpush1.bf16.msra.mxu0 0
        %4348 = vmatprep.subr.bf16.mxu0 0
        %4349 = vmatpush1.bf16.msra.mxu0 0
        %4350 = vmatprep.subr.bf16.mxu0 0
        %4351 = vmatpush1.bf16.msra.mxu0 0
        %4352 = vmatprep.subr.bf16.mxu0 0
        %4353 = vmatpush1.bf16.msra.mxu0 0
        %4354 = vmatprep.subr.bf16.mxu0 0
        %4355 = vmatpush1.bf16.msra.mxu0 0
        %4356 = vmatprep.subr.bf16.mxu0 0
        %4357 = vmatpush1.bf16.msra.mxu0 %v4340
        %4358 = vmatprep.subr.bf16.mxu0 0
        %4359 = vmatpush2.bf16.msra.mxu0 0
        %4360 = vmatprep.subr.bf16.mxu0 0
        %4361 = vmatpush2.bf16.msra.mxu0 0
        %4362 = vmatprep.subr.bf16.mxu0 0
        %4363 = vmatpush2.bf16.msra.mxu0 0
        %4364 = vmatprep.subr.bf16.mxu0 0
        %4365 = vmatpush2.bf16.msra.mxu0 0
        %4366 = vmatprep.subr.bf16.mxu0 0
        %4367 = vmatpush2.bf16.msra.mxu0 0
        %4368 = vmatprep.subr.bf16.mxu0 0
        %4369 = vmatpush2.bf16.msra.mxu0 0
        %4370 = vmatprep.subr.bf16.mxu0 0
        %4371 = vmatpush2.bf16.msra.mxu0 0
        %4372 = vmatprep.subr.bf16.mxu0 0
        %4373 = vmatpush2.bf16.msra.mxu0 0
        %4374 = vmatprep.mubr.bf16.mxu0 0
        %4375 = vmatmul.mubr.bf16.gmra.mxu0 %v1814
        %v4376 = vpop.f32.mrf.mxu0
        %v4377 = vadd.f32 0.0, %v4376
        %v4378 = vpop.f32.mrf.mxu0
        %v4379 = vpop.f32.mrf.mxu0
        %v4380 = vadd.f32 0.0, %v4379
        %v4381 = vpop.f32.mrf.mxu0
        %4382 = vmatprep.mubr.bf16.mxu0 0
        %4383 = vmatmul.mubr.bf16.gmra.mxu0 %v1817
        %v4384 = vpop.f32.mrf.mxu0
        %v4385 = vadd.f32 0.0, %v4384
        %v4386 = vpop.f32.mrf.mxu0
        %v4387 = vpop.f32.mrf.mxu0
        %v4388 = vadd.f32 0.0, %v4387
        %v4389 = vpop.f32.mrf.mxu0
        %4390 = vmatprep.mubr.bf16.mxu0 0
        %4391 = vmatmul.mubr.bf16.gmra.mxu0 %v3083
        %v4392 = vpop.f32.mrf.mxu0
        %v4393 = vadd.f32 0.0, %v4392
        %v4394 = vpop.f32.mrf.mxu0
        %v4395 = vpop.f32.mrf.mxu0
        %v4396 = vadd.f32 0.0, %v4395
        %v4397 = vpop.f32.mrf.mxu0
        %4398 = vmatprep.mubr.bf16.mxu0 0
        %4399 = vmatmul.mubr.bf16.gmra.mxu0 %v4337
        %v4400 = vpop.f32.mrf.mxu0
        %v4401 = vadd.f32 0.0, %v4400
        %v4402 = vpop.f32.mrf.mxu0
        %v4403 = vpop.f32.mrf.mxu0
        %v4404 = vadd.f32 0.0, %v4403
        %v4405 = vpop.f32.mrf.mxu0
        %4406 = vdwg.mxu0
        %v4407 = vadd.f32 %v4316, %v4377
        %v4408 = vadd.f32 %v4317, %v4380
        %v4409 = vadd.f32 %v4318, %v4385
        %v4410 = vadd.f32 %v4319, %v4388
        %v4411 = vadd.f32 %v4320, %v4393
        %v4412 = vadd.f32 %v4321, %v4396
        %v4413 = vadd.f32 %v4322, %v4401
        %v4414 = vadd.f32 %v4323, %v4404
        %v4415 = vrot.slane %v194, 7
        %v4416 = vrot.slane %v4415, 4
        %v4417 = vrot.slane %v195, 7
        %v4418 = vsel %vm1148, %v4416, %v4417
        %s4419 = scalar_lea.vmem %s1, 82
        %v4420 = vld [vmem:[%s4419] sm:$0x3]
        %v4421 = vunpack.c.l.b16 %v4418
        %v4422 = vpack.c.b16 %v4421, %v3794
        %v4424 = vsel %vm328, %v4422, 0
        %v4427 = vsel %vm341, %v4420, 0
        %4429 = vmatprep.subr.bf16.mxu0 0
        %4430 = vmatpush1.bf16.msra.mxu0 0
        %4431 = vmatprep.subr.bf16.mxu0 0
        %4432 = vmatpush1.bf16.msra.mxu0 0
        %4433 = vmatprep.subr.bf16.mxu0 0
        %4434 = vmatpush1.bf16.msra.mxu0 0
        %4435 = vmatprep.subr.bf16.mxu0 0
        %4436 = vmatpush1.bf16.msra.mxu0 0
        %4437 = vmatprep.subr.bf16.mxu0 0
        %4438 = vmatpush1.bf16.msra.mxu0 0
        %4439 = vmatprep.subr.bf16.mxu0 0
        %4440 = vmatpush1.bf16.msra.mxu0 0
        %4441 = vmatprep.subr.bf16.mxu0 0
        %4442 = vmatpush1.bf16.msra.mxu0 0
        %4443 = vmatprep.subr.bf16.mxu0 0
        %4444 = vmatpush1.bf16.msra.mxu0 %v4427
        %4445 = vmatprep.subr.bf16.mxu0 0
        %4446 = vmatpush2.bf16.msra.mxu0 0
        %4447 = vmatprep.subr.bf16.mxu0 0
        %4448 = vmatpush2.bf16.msra.mxu0 0
        %4449 = vmatprep.subr.bf16.mxu0 0
        %4450 = vmatpush2.bf16.msra.mxu0 0
        %4451 = vmatprep.subr.bf16.mxu0 0
        %4452 = vmatpush2.bf16.msra.mxu0 0
        %4453 = vmatprep.subr.bf16.mxu0 0
        %4454 = vmatpush2.bf16.msra.mxu0 0
        %4455 = vmatprep.subr.bf16.mxu0 0
        %4456 = vmatpush2.bf16.msra.mxu0 0
        %4457 = vmatprep.subr.bf16.mxu0 0
        %4458 = vmatpush2.bf16.msra.mxu0 0
        %4459 = vmatprep.subr.bf16.mxu0 0
        %4460 = vmatpush2.bf16.msra.mxu0 0
        %4461 = vmatprep.mubr.bf16.mxu0 0
        %4462 = vmatmul.mubr.bf16.gmra.mxu0 %v1913
        %v4463 = vpop.f32.mrf.mxu0
        %v4464 = vadd.f32 0.0, %v4463
        %v4465 = vpop.f32.mrf.mxu0
        %v4466 = vpop.f32.mrf.mxu0
        %v4467 = vadd.f32 0.0, %v4466
        %v4468 = vpop.f32.mrf.mxu0
        %4469 = vmatprep.mubr.bf16.mxu0 0
        %4470 = vmatmul.mubr.bf16.gmra.mxu0 %v1916
        %v4471 = vpop.f32.mrf.mxu0
        %v4472 = vadd.f32 0.0, %v4471
        %v4473 = vpop.f32.mrf.mxu0
        %v4474 = vpop.f32.mrf.mxu0
        %v4475 = vadd.f32 0.0, %v4474
        %v4476 = vpop.f32.mrf.mxu0
        %4477 = vmatprep.mubr.bf16.mxu0 0
        %4478 = vmatmul.mubr.bf16.gmra.mxu0 %v3170
        %v4479 = vpop.f32.mrf.mxu0
        %v4480 = vadd.f32 0.0, %v4479
        %v4481 = vpop.f32.mrf.mxu0
        %v4482 = vpop.f32.mrf.mxu0
        %v4483 = vadd.f32 0.0, %v4482
        %v4484 = vpop.f32.mrf.mxu0
        %4485 = vmatprep.mubr.bf16.mxu0 0
        %4486 = vmatmul.mubr.bf16.gmra.mxu0 %v4424
        %v4487 = vpop.f32.mrf.mxu0
        %v4488 = vadd.f32 0.0, %v4487
        %v4489 = vpop.f32.mrf.mxu0
        %v4490 = vpop.f32.mrf.mxu0
        %v4491 = vadd.f32 0.0, %v4490
        %v4492 = vpop.f32.mrf.mxu0
        %4493 = vdwg.mxu0
        %v4494 = vadd.f32 %v4407, %v4464
        %v4495 = vadd.f32 %v4408, %v4467
        %v4496 = vadd.f32 %v4409, %v4472
        %v4497 = vadd.f32 %v4410, %v4475
        %v4498 = vadd.f32 %v4411, %v4480
        %v4499 = vadd.f32 %v4412, %v4483
        %v4500 = vadd.f32 %v4413, %v4488
        %v4501 = vadd.f32 %v4414, %v4491
        %s4502 = scalar_lea.vmem %s1, 84
        %v4503 = vld [vmem:[%s4502] sm:$0x3]
        %v4505 = vunpack.c.l.b16 %v196
        %v4506 = vpack.c.b16 %v4505, %v3878
        %v4508 = vsel %vm328, %v4506, 0
        %v4511 = vsel %vm341, %v4503, 0
        %4513 = vmatprep.subr.bf16.mxu0 0
        %4514 = vmatpush1.bf16.msra.mxu0 0
        %4515 = vmatprep.subr.bf16.mxu0 0
        %4516 = vmatpush1.bf16.msra.mxu0 0
        %4517 = vmatprep.subr.bf16.mxu0 0
        %4518 = vmatpush1.bf16.msra.mxu0 0
        %4519 = vmatprep.subr.bf16.mxu0 0
        %4520 = vmatpush1.bf16.msra.mxu0 0
        %4521 = vmatprep.subr.bf16.mxu0 0
        %4522 = vmatpush1.bf16.msra.mxu0 0
        %4523 = vmatprep.subr.bf16.mxu0 0
        %4524 = vmatpush1.bf16.msra.mxu0 0
        %4525 = vmatprep.subr.bf16.mxu0 0
        %4526 = vmatpush1.bf16.msra.mxu0 0
        %4527 = vmatprep.subr.bf16.mxu0 0
        %4528 = vmatpush1.bf16.msra.mxu0 %v4511
        %4529 = vmatprep.subr.bf16.mxu0 0
        %4530 = vmatpush2.bf16.msra.mxu0 0
        %4531 = vmatprep.subr.bf16.mxu0 0
        %4532 = vmatpush2.bf16.msra.mxu0 0
        %4533 = vmatprep.subr.bf16.mxu0 0
        %4534 = vmatpush2.bf16.msra.mxu0 0
        %4535 = vmatprep.subr.bf16.mxu0 0
        %4536 = vmatpush2.bf16.msra.mxu0 0
        %4537 = vmatprep.subr.bf16.mxu0 0
        %4538 = vmatpush2.bf16.msra.mxu0 0
        %4539 = vmatprep.subr.bf16.mxu0 0
        %4540 = vmatpush2.bf16.msra.mxu0 0
        %4541 = vmatprep.subr.bf16.mxu0 0
        %4542 = vmatpush2.bf16.msra.mxu0 0
        %4543 = vmatprep.subr.bf16.mxu0 0
        %4544 = vmatpush2.bf16.msra.mxu0 0
        %4545 = vmatprep.mubr.bf16.mxu0 0
        %4546 = vmatmul.mubr.bf16.gmra.mxu0 %v440
        %v4547 = vpop.f32.mrf.mxu0
        %v4548 = vadd.f32 0.0, %v4547
        %v4549 = vpop.f32.mrf.mxu0
        %v4550 = vpop.f32.mrf.mxu0
        %v4551 = vadd.f32 0.0, %v4550
        %v4552 = vpop.f32.mrf.mxu0
        %4553 = vmatprep.mubr.bf16.mxu0 0
        %4554 = vmatmul.mubr.bf16.gmra.mxu0 %v2000
        %v4555 = vpop.f32.mrf.mxu0
        %v4556 = vadd.f32 0.0, %v4555
        %v4557 = vpop.f32.mrf.mxu0
        %v4558 = vpop.f32.mrf.mxu0
        %v4559 = vadd.f32 0.0, %v4558
        %v4560 = vpop.f32.mrf.mxu0
        %4561 = vmatprep.mubr.bf16.mxu0 0
        %4562 = vmatmul.mubr.bf16.gmra.mxu0 %v3254
        %v4563 = vpop.f32.mrf.mxu0
        %v4564 = vadd.f32 0.0, %v4563
        %v4565 = vpop.f32.mrf.mxu0
        %v4566 = vpop.f32.mrf.mxu0
        %v4567 = vadd.f32 0.0, %v4566
        %v4568 = vpop.f32.mrf.mxu0
        %4569 = vmatprep.mubr.bf16.mxu0 0
        %4570 = vmatmul.mubr.bf16.gmra.mxu0 %v4508
        %v4571 = vpop.f32.mrf.mxu0
        %v4572 = vadd.f32 0.0, %v4571
        %v4573 = vpop.f32.mrf.mxu0
        %v4574 = vpop.f32.mrf.mxu0
        %v4575 = vadd.f32 0.0, %v4574
        %v4576 = vpop.f32.mrf.mxu0
        %4577 = vdwg.mxu0
        %v4578 = vadd.f32 %v4494, %v4548
        %v4579 = vadd.f32 %v4495, %v4551
        %v4580 = vadd.f32 %v4496, %v4556
        %v4581 = vadd.f32 %v4497, %v4559
        %v4582 = vadd.f32 %v4498, %v4564
        %v4583 = vadd.f32 %v4499, %v4567
        %v4584 = vadd.f32 %v4500, %v4572
        %v4585 = vadd.f32 %v4501, %v4575
        %v4587 = vshrl.u32 %v196, 16
        %v4589 = vrot.slane %v4587, 4
        %v4590 = vshll.u32 %v196, 16
        %v4592 = vrot.slane %v4590, 5
        %v4593 = vor.u32 %v4589, %v4592
        %v4594 = vrot.slane %v4593, 4
        %v4596 = vshll.u32 %v197, 16
        %v4598 = vrot.slane %v4596, 5
        %v4599 = vsel %vm201, %v4594, %v4598
        %s4600 = scalar_lea.vmem %s1, 86
        %v4601 = vld [vmem:[%s4600] sm:$0x3]
        %v4602 = vunpack.c.l.b16 %v4599
        %v4603 = vpack.c.b16 %v4602, %v3975
        %v4605 = vsel %vm328, %v4603, 0
        %v4608 = vsel %vm341, %v4601, 0
        %4610 = vmatprep.subr.bf16.mxu0 0
        %4611 = vmatpush1.bf16.msra.mxu0 0
        %4612 = vmatprep.subr.bf16.mxu0 0
        %4613 = vmatpush1.bf16.msra.mxu0 0
        %4614 = vmatprep.subr.bf16.mxu0 0
        %4615 = vmatpush1.bf16.msra.mxu0 0
        %4616 = vmatprep.subr.bf16.mxu0 0
        %4617 = vmatpush1.bf16.msra.mxu0 0
        %4618 = vmatprep.subr.bf16.mxu0 0
        %4619 = vmatpush1.bf16.msra.mxu0 0
        %4620 = vmatprep.subr.bf16.mxu0 0
        %4621 = vmatpush1.bf16.msra.mxu0 0
        %4622 = vmatprep.subr.bf16.mxu0 0
        %4623 = vmatpush1.bf16.msra.mxu0 0
        %4624 = vmatprep.subr.bf16.mxu0 0
        %4625 = vmatpush1.bf16.msra.mxu0 %v4608
        %4626 = vmatprep.subr.bf16.mxu0 0
        %4627 = vmatpush2.bf16.msra.mxu0 0
        %4628 = vmatprep.subr.bf16.mxu0 0
        %4629 = vmatpush2.bf16.msra.mxu0 0
        %4630 = vmatprep.subr.bf16.mxu0 0
        %4631 = vmatpush2.bf16.msra.mxu0 0
        %4632 = vmatprep.subr.bf16.mxu0 0
        %4633 = vmatpush2.bf16.msra.mxu0 0
        %4634 = vmatprep.subr.bf16.mxu0 0
        %4635 = vmatpush2.bf16.msra.mxu0 0
        %4636 = vmatprep.subr.bf16.mxu0 0
        %4637 = vmatpush2.bf16.msra.mxu0 0
        %4638 = vmatprep.subr.bf16.mxu0 0
        %4639 = vmatpush2.bf16.msra.mxu0 0
        %4640 = vmatprep.subr.bf16.mxu0 0
        %4641 = vmatpush2.bf16.msra.mxu0 0
        %4642 = vmatprep.mubr.bf16.mxu0 0
        %4643 = vmatmul.mubr.bf16.gmra.mxu0 %v339
        %v4644 = vpop.f32.mrf.mxu0
        %v4645 = vadd.f32 0.0, %v4644
        %v4646 = vpop.f32.mrf.mxu0
        %v4647 = vpop.f32.mrf.mxu0
        %v4648 = vadd.f32 0.0, %v4647
        %v4649 = vpop.f32.mrf.mxu0
        %4650 = vmatprep.mubr.bf16.mxu0 0
        %4651 = vmatmul.mubr.bf16.gmra.mxu0 %v2097
        %v4652 = vpop.f32.mrf.mxu0
        %v4653 = vadd.f32 0.0, %v4652
        %v4654 = vpop.f32.mrf.mxu0
        %v4655 = vpop.f32.mrf.mxu0
        %v4656 = vadd.f32 0.0, %v4655
        %v4657 = vpop.f32.mrf.mxu0
        %4658 = vmatprep.mubr.bf16.mxu0 0
        %4659 = vmatmul.mubr.bf16.gmra.mxu0 %v3351
        %v4660 = vpop.f32.mrf.mxu0
        %v4661 = vadd.f32 0.0, %v4660
        %v4662 = vpop.f32.mrf.mxu0
        %v4663 = vpop.f32.mrf.mxu0
        %v4664 = vadd.f32 0.0, %v4663
        %v4665 = vpop.f32.mrf.mxu0
        %4666 = vmatprep.mubr.bf16.mxu0 0
        %4667 = vmatmul.mubr.bf16.gmra.mxu0 %v4605
        %v4668 = vpop.f32.mrf.mxu0
        %v4669 = vadd.f32 0.0, %v4668
        %v4670 = vpop.f32.mrf.mxu0
        %v4671 = vpop.f32.mrf.mxu0
        %v4672 = vadd.f32 0.0, %v4671
        %v4673 = vpop.f32.mrf.mxu0
        %4674 = vdwg.mxu0
        %v4675 = vadd.f32 %v4578, %v4645
        %v4676 = vadd.f32 %v4579, %v4648
        %v4677 = vadd.f32 %v4580, %v4653
        %v4678 = vadd.f32 %v4581, %v4656
        %v4679 = vadd.f32 %v4582, %v4661
        %v4680 = vadd.f32 %v4583, %v4664
        %v4681 = vadd.f32 %v4584, %v4669
        %v4682 = vadd.f32 %v4585, %v4672
        %v4684 = vrot.slane %v196, 5
        %v4685 = vrot.slane %v4684, 4
        %v4686 = vrot.slane %v197, 5
        %v4687 = vsel %vm520, %v4685, %v4686
        %s4688 = scalar_lea.vmem %s1, 88
        %v4689 = vld [vmem:[%s4688] sm:$0x3]
        %v4690 = vunpack.c.l.b16 %v4687
        %v4691 = vpack.c.b16 %v4690, %v4063
        %v4693 = vsel %vm328, %v4691, 0
        %v4696 = vsel %vm341, %v4689, 0
        %4698 = vmatprep.subr.bf16.mxu0 0
        %4699 = vmatpush1.bf16.msra.mxu0 0
        %4700 = vmatprep.subr.bf16.mxu0 0
        %4701 = vmatpush1.bf16.msra.mxu0 0
        %4702 = vmatprep.subr.bf16.mxu0 0
        %4703 = vmatpush1.bf16.msra.mxu0 0
        %4704 = vmatprep.subr.bf16.mxu0 0
        %4705 = vmatpush1.bf16.msra.mxu0 0
        %4706 = vmatprep.subr.bf16.mxu0 0
        %4707 = vmatpush1.bf16.msra.mxu0 0
        %4708 = vmatprep.subr.bf16.mxu0 0
        %4709 = vmatpush1.bf16.msra.mxu0 0
        %4710 = vmatprep.subr.bf16.mxu0 0
        %4711 = vmatpush1.bf16.msra.mxu0 0
        %4712 = vmatprep.subr.bf16.mxu0 0
        %4713 = vmatpush1.bf16.msra.mxu0 %v4696
        %4714 = vmatprep.subr.bf16.mxu0 0
        %4715 = vmatpush2.bf16.msra.mxu0 0
        %4716 = vmatprep.subr.bf16.mxu0 0
        %4717 = vmatpush2.bf16.msra.mxu0 0
        %4718 = vmatprep.subr.bf16.mxu0 0
        %4719 = vmatpush2.bf16.msra.mxu0 0
        %4720 = vmatprep.subr.bf16.mxu0 0
        %4721 = vmatpush2.bf16.msra.mxu0 0
        %4722 = vmatprep.subr.bf16.mxu0 0
        %4723 = vmatpush2.bf16.msra.mxu0 0
        %4724 = vmatprep.subr.bf16.mxu0 0
        %4725 = vmatpush2.bf16.msra.mxu0 0
        %4726 = vmatprep.subr.bf16.mxu0 0
        %4727 = vmatpush2.bf16.msra.mxu0 0
        %4728 = vmatprep.subr.bf16.mxu0 0
        %4729 = vmatpush2.bf16.msra.mxu0 0
        %4730 = vmatprep.mubr.bf16.mxu0 0
        %4731 = vmatmul.mubr.bf16.gmra.mxu0 %v577
        %v4732 = vpop.f32.mrf.mxu0
        %v4733 = vadd.f32 0.0, %v4732
        %v4734 = vpop.f32.mrf.mxu0
        %v4735 = vpop.f32.mrf.mxu0
        %v4736 = vadd.f32 0.0, %v4735
        %v4737 = vpop.f32.mrf.mxu0
        %4738 = vmatprep.mubr.bf16.mxu0 0
        %4739 = vmatmul.mubr.bf16.gmra.mxu0 %v2185
        %v4740 = vpop.f32.mrf.mxu0
        %v4741 = vadd.f32 0.0, %v4740
        %v4742 = vpop.f32.mrf.mxu0
        %v4743 = vpop.f32.mrf.mxu0
        %v4744 = vadd.f32 0.0, %v4743
        %v4745 = vpop.f32.mrf.mxu0
        %4746 = vmatprep.mubr.bf16.mxu0 0
        %4747 = vmatmul.mubr.bf16.gmra.mxu0 %v3439
        %v4748 = vpop.f32.mrf.mxu0
        %v4749 = vadd.f32 0.0, %v4748
        %v4750 = vpop.f32.mrf.mxu0
        %v4751 = vpop.f32.mrf.mxu0
        %v4752 = vadd.f32 0.0, %v4751
        %v4753 = vpop.f32.mrf.mxu0
        %4754 = vmatprep.mubr.bf16.mxu0 0
        %4755 = vmatmul.mubr.bf16.gmra.mxu0 %v4693
        %v4756 = vpop.f32.mrf.mxu0
        %v4757 = vadd.f32 0.0, %v4756
        %v4758 = vpop.f32.mrf.mxu0
        %v4759 = vpop.f32.mrf.mxu0
        %v4760 = vadd.f32 0.0, %v4759
        %v4761 = vpop.f32.mrf.mxu0
        %4762 = vdwg.mxu0
        %v4763 = vadd.f32 %v4675, %v4733
        %v4764 = vadd.f32 %v4676, %v4736
        %v4765 = vadd.f32 %v4677, %v4741
        %v4766 = vadd.f32 %v4678, %v4744
        %v4767 = vadd.f32 %v4679, %v4749
        %v4768 = vadd.f32 %v4680, %v4752
        %v4769 = vadd.f32 %v4681, %v4757
        %v4770 = vadd.f32 %v4682, %v4760
        %v4771 = vrot.slane %v4587, 5
        %v4772 = vrot.slane %v4590, 6
        %v4773 = vor.u32 %v4771, %v4772
        %v4774 = vrot.slane %v4773, 4
        %v4775 = vshrl.u32 %v197, 16
        %v4777 = vrot.slane %v4775, 5
        %v4778 = vrot.slane %v4596, 6
        %v4779 = vor.u32 %v4777, %v4778
        %v4780 = vsel %vm657, %v4774, %v4779
        %s4781 = scalar_lea.vmem %s1, 90
        %v4782 = vld [vmem:[%s4781] sm:$0x3]
        %v4783 = vunpack.c.l.b16 %v4780
        %v4784 = vpack.c.b16 %v4783, %v4156
        %v4786 = vsel %vm328, %v4784, 0
        %v4789 = vsel %vm341, %v4782, 0
        %4791 = vmatprep.subr.bf16.mxu0 0
        %4792 = vmatpush1.bf16.msra.mxu0 0
        %4793 = vmatprep.subr.bf16.mxu0 0
        %4794 = vmatpush1.bf16.msra.mxu0 0
        %4795 = vmatprep.subr.bf16.mxu0 0
        %4796 = vmatpush1.bf16.msra.mxu0 0
        %4797 = vmatprep.subr.bf16.mxu0 0
        %4798 = vmatpush1.bf16.msra.mxu0 0
        %4799 = vmatprep.subr.bf16.mxu0 0
        %4800 = vmatpush1.bf16.msra.mxu0 0
        %4801 = vmatprep.subr.bf16.mxu0 0
        %4802 = vmatpush1.bf16.msra.mxu0 0
        %4803 = vmatprep.subr.bf16.mxu0 0
        %4804 = vmatpush1.bf16.msra.mxu0 0
        %4805 = vmatprep.subr.bf16.mxu0 0
        %4806 = vmatpush1.bf16.msra.mxu0 %v4789
        %4807 = vmatprep.subr.bf16.mxu0 0
        %4808 = vmatpush2.bf16.msra.mxu0 0
        %4809 = vmatprep.subr.bf16.mxu0 0
        %4810 = vmatpush2.bf16.msra.mxu0 0
        %4811 = vmatprep.subr.bf16.mxu0 0
        %4812 = vmatpush2.bf16.msra.mxu0 0
        %4813 = vmatprep.subr.bf16.mxu0 0
        %4814 = vmatpush2.bf16.msra.mxu0 0
        %4815 = vmatprep.subr.bf16.mxu0 0
        %4816 = vmatpush2.bf16.msra.mxu0 0
        %4817 = vmatprep.subr.bf16.mxu0 0
        %4818 = vmatpush2.bf16.msra.mxu0 0
        %4819 = vmatprep.subr.bf16.mxu0 0
        %4820 = vmatpush2.bf16.msra.mxu0 0
        %4821 = vmatprep.subr.bf16.mxu0 0
        %4822 = vmatpush2.bf16.msra.mxu0 0
        %4823 = vmatprep.mubr.bf16.mxu0 0
        %4824 = vmatmul.mubr.bf16.gmra.mxu0 %v762
        %v4825 = vpop.f32.mrf.mxu0
        %v4826 = vadd.f32 0.0, %v4825
        %v4827 = vpop.f32.mrf.mxu0
        %v4828 = vpop.f32.mrf.mxu0
        %v4829 = vadd.f32 0.0, %v4828
        %v4830 = vpop.f32.mrf.mxu0
        %4831 = vmatprep.mubr.bf16.mxu0 0
        %4832 = vmatmul.mubr.bf16.gmra.mxu0 %v2278
        %v4833 = vpop.f32.mrf.mxu0
        %v4834 = vadd.f32 0.0, %v4833
        %v4835 = vpop.f32.mrf.mxu0
        %v4836 = vpop.f32.mrf.mxu0
        %v4837 = vadd.f32 0.0, %v4836
        %v4838 = vpop.f32.mrf.mxu0
        %4839 = vmatprep.mubr.bf16.mxu0 0
        %4840 = vmatmul.mubr.bf16.gmra.mxu0 %v3532
        %v4841 = vpop.f32.mrf.mxu0
        %v4842 = vadd.f32 0.0, %v4841
        %v4843 = vpop.f32.mrf.mxu0
        %v4844 = vpop.f32.mrf.mxu0
        %v4845 = vadd.f32 0.0, %v4844
        %v4846 = vpop.f32.mrf.mxu0
        %4847 = vmatprep.mubr.bf16.mxu0 0
        %4848 = vmatmul.mubr.bf16.gmra.mxu0 %v4786
        %v4849 = vpop.f32.mrf.mxu0
        %v4850 = vadd.f32 0.0, %v4849
        %v4851 = vpop.f32.mrf.mxu0
        %v4852 = vpop.f32.mrf.mxu0
        %v4853 = vadd.f32 0.0, %v4852
        %v4854 = vpop.f32.mrf.mxu0
        %4855 = vdwg.mxu0
        %v4856 = vadd.f32 %v4763, %v4826
        %v4857 = vadd.f32 %v4764, %v4829
        %v4858 = vadd.f32 %v4765, %v4834
        %v4859 = vadd.f32 %v4766, %v4837
        %v4860 = vadd.f32 %v4767, %v4842
        %v4861 = vadd.f32 %v4768, %v4845
        %v4862 = vadd.f32 %v4769, %v4850
        %v4863 = vadd.f32 %v4770, %v4853
        %v4864 = vrot.slane %v196, 6
        %v4865 = vrot.slane %v4864, 4
        %v4866 = vrot.slane %v197, 6
        %v4867 = vsel %vm842, %v4865, %v4866
        %s4868 = scalar_lea.vmem %s1, 92
        %v4869 = vld [vmem:[%s4868] sm:$0x3]
        %v4870 = vunpack.c.l.b16 %v4867
        %v4871 = vpack.c.b16 %v4870, %v4243
        %v4873 = vsel %vm328, %v4871, 0
        %v4876 = vsel %vm341, %v4869, 0
        %4878 = vmatprep.subr.bf16.mxu0 0
        %4879 = vmatpush1.bf16.msra.mxu0 0
        %4880 = vmatprep.subr.bf16.mxu0 0
        %4881 = vmatpush1.bf16.msra.mxu0 0
        %4882 = vmatprep.subr.bf16.mxu0 0
        %4883 = vmatpush1.bf16.msra.mxu0 0
        %4884 = vmatprep.subr.bf16.mxu0 0
        %4885 = vmatpush1.bf16.msra.mxu0 0
        %4886 = vmatprep.subr.bf16.mxu0 0
        %4887 = vmatpush1.bf16.msra.mxu0 0
        %4888 = vmatprep.subr.bf16.mxu0 0
        %4889 = vmatpush1.bf16.msra.mxu0 0
        %4890 = vmatprep.subr.bf16.mxu0 0
        %4891 = vmatpush1.bf16.msra.mxu0 0
        %4892 = vmatprep.subr.bf16.mxu0 0
        %4893 = vmatpush1.bf16.msra.mxu0 %v4876
        %4894 = vmatprep.subr.bf16.mxu0 0
        %4895 = vmatpush2.bf16.msra.mxu0 0
        %4896 = vmatprep.subr.bf16.mxu0 0
        %4897 = vmatpush2.bf16.msra.mxu0 0
        %4898 = vmatprep.subr.bf16.mxu0 0
        %4899 = vmatpush2.bf16.msra.mxu0 0
        %4900 = vmatprep.subr.bf16.mxu0 0
        %4901 = vmatpush2.bf16.msra.mxu0 0
        %4902 = vmatprep.subr.bf16.mxu0 0
        %4903 = vmatpush2.bf16.msra.mxu0 0
        %4904 = vmatprep.subr.bf16.mxu0 0
        %4905 = vmatpush2.bf16.msra.mxu0 0
        %4906 = vmatprep.subr.bf16.mxu0 0
        %4907 = vmatpush2.bf16.msra.mxu0 0
        %4908 = vmatprep.subr.bf16.mxu0 0
        %4909 = vmatpush2.bf16.msra.mxu0 0
        %4910 = vmatprep.mubr.bf16.mxu0 0
        %4911 = vmatmul.mubr.bf16.gmra.mxu0 %v899
        %v4912 = vpop.f32.mrf.mxu0
        %v4913 = vadd.f32 0.0, %v4912
        %v4914 = vpop.f32.mrf.mxu0
        %v4915 = vpop.f32.mrf.mxu0
        %v4916 = vadd.f32 0.0, %v4915
        %v4917 = vpop.f32.mrf.mxu0
        %4918 = vmatprep.mubr.bf16.mxu0 0
        %4919 = vmatmul.mubr.bf16.gmra.mxu0 %v2365
        %v4920 = vpop.f32.mrf.mxu0
        %v4921 = vadd.f32 0.0, %v4920
        %v4922 = vpop.f32.mrf.mxu0
        %v4923 = vpop.f32.mrf.mxu0
        %v4924 = vadd.f32 0.0, %v4923
        %v4925 = vpop.f32.mrf.mxu0
        %4926 = vmatprep.mubr.bf16.mxu0 0
        %4927 = vmatmul.mubr.bf16.gmra.mxu0 %v3619
        %v4928 = vpop.f32.mrf.mxu0
        %v4929 = vadd.f32 0.0, %v4928
        %v4930 = vpop.f32.mrf.mxu0
        %v4931 = vpop.f32.mrf.mxu0
        %v4932 = vadd.f32 0.0, %v4931
        %v4933 = vpop.f32.mrf.mxu0
        %4934 = vmatprep.mubr.bf16.mxu0 0
        %4935 = vmatmul.mubr.bf16.gmra.mxu0 %v4873
        %v4936 = vpop.f32.mrf.mxu0
        %v4937 = vadd.f32 0.0, %v4936
        %v4938 = vpop.f32.mrf.mxu0
        %v4939 = vpop.f32.mrf.mxu0
        %v4940 = vadd.f32 0.0, %v4939
        %v4941 = vpop.f32.mrf.mxu0
        %4942 = vdwg.mxu0
        %v4943 = vadd.f32 %v4856, %v4913
        %v4944 = vadd.f32 %v4857, %v4916
        %v4945 = vadd.f32 %v4858, %v4921
        %v4946 = vadd.f32 %v4859, %v4924
        %v4947 = vadd.f32 %v4860, %v4929
        %v4948 = vadd.f32 %v4861, %v4932
        %v4949 = vadd.f32 %v4862, %v4937
        %v4950 = vadd.f32 %v4863, %v4940
        %v4951 = vrot.slane %v4587, 6
        %v4952 = vrot.slane %v4590, 7
        %v4953 = vor.u32 %v4951, %v4952
        %v4954 = vrot.slane %v4953, 4
        %v4955 = vrot.slane %v4775, 6
        %v4956 = vrot.slane %v4596, 7
        %v4957 = vor.u32 %v4955, %v4956
        %v4958 = vsel %vm979, %v4954, %v4957
        %s4959 = scalar_lea.vmem %s1, 94
        %v4960 = vld [vmem:[%s4959] sm:$0x3]
        %v4961 = vunpack.c.l.b16 %v4958
        %v4962 = vpack.c.b16 %v4961, %v4334
        %v4964 = vsel %vm328, %v4962, 0
        %v4967 = vsel %vm341, %v4960, 0
        %4969 = vmatprep.subr.bf16.mxu0 0
        %4970 = vmatpush1.bf16.msra.mxu0 0
        %4971 = vmatprep.subr.bf16.mxu0 0
        %4972 = vmatpush1.bf16.msra.mxu0 0
        %4973 = vmatprep.subr.bf16.mxu0 0
        %4974 = vmatpush1.bf16.msra.mxu0 0
        %4975 = vmatprep.subr.bf16.mxu0 0
        %4976 = vmatpush1.bf16.msra.mxu0 0
        %4977 = vmatprep.subr.bf16.mxu0 0
        %4978 = vmatpush1.bf16.msra.mxu0 0
        %4979 = vmatprep.subr.bf16.mxu0 0
        %4980 = vmatpush1.bf16.msra.mxu0 0
        %4981 = vmatprep.subr.bf16.mxu0 0
        %4982 = vmatpush1.bf16.msra.mxu0 0
        %4983 = vmatprep.subr.bf16.mxu0 0
        %4984 = vmatpush1.bf16.msra.mxu0 %v4967
        %4985 = vmatprep.subr.bf16.mxu0 0
        %4986 = vmatpush2.bf16.msra.mxu0 0
        %4987 = vmatprep.subr.bf16.mxu0 0
        %4988 = vmatpush2.bf16.msra.mxu0 0
        %4989 = vmatprep.subr.bf16.mxu0 0
        %4990 = vmatpush2.bf16.msra.mxu0 0
        %4991 = vmatprep.subr.bf16.mxu0 0
        %4992 = vmatpush2.bf16.msra.mxu0 0
        %4993 = vmatprep.subr.bf16.mxu0 0
        %4994 = vmatpush2.bf16.msra.mxu0 0
        %4995 = vmatprep.subr.bf16.mxu0 0
        %4996 = vmatpush2.bf16.msra.mxu0 0
        %4997 = vmatprep.subr.bf16.mxu0 0
        %4998 = vmatpush2.bf16.msra.mxu0 0
        %4999 = vmatprep.subr.bf16.mxu0 0
        %5000 = vmatpush2.bf16.msra.mxu0 0
        %5001 = vmatprep.mubr.bf16.mxu0 0
        %5002 = vmatmul.mubr.bf16.gmra.mxu0 %v1068
        %v5003 = vpop.f32.mrf.mxu0
        %v5004 = vadd.f32 0.0, %v5003
        %v5005 = vpop.f32.mrf.mxu0
        %v5006 = vpop.f32.mrf.mxu0
        %v5007 = vadd.f32 0.0, %v5006
        %v5008 = vpop.f32.mrf.mxu0
        %5009 = vmatprep.mubr.bf16.mxu0 0
        %5010 = vmatmul.mubr.bf16.gmra.mxu0 %v2456
        %v5011 = vpop.f32.mrf.mxu0
        %v5012 = vadd.f32 0.0, %v5011
        %v5013 = vpop.f32.mrf.mxu0
        %v5014 = vpop.f32.mrf.mxu0
        %v5015 = vadd.f32 0.0, %v5014
        %v5016 = vpop.f32.mrf.mxu0
        %5017 = vmatprep.mubr.bf16.mxu0 0
        %5018 = vmatmul.mubr.bf16.gmra.mxu0 %v3710
        %v5019 = vpop.f32.mrf.mxu0
        %v5020 = vadd.f32 0.0, %v5019
        %v5021 = vpop.f32.mrf.mxu0
        %v5022 = vpop.f32.mrf.mxu0
        %v5023 = vadd.f32 0.0, %v5022
        %v5024 = vpop.f32.mrf.mxu0
        %5025 = vmatprep.mubr.bf16.mxu0 0
        %5026 = vmatmul.mubr.bf16.gmra.mxu0 %v4964
        %v5027 = vpop.f32.mrf.mxu0
        %v5028 = vadd.f32 0.0, %v5027
        %v5029 = vpop.f32.mrf.mxu0
        %v5030 = vpop.f32.mrf.mxu0
        %v5031 = vadd.f32 0.0, %v5030
        %v5032 = vpop.f32.mrf.mxu0
        %5033 = vdwg.mxu0
        %v5034 = vadd.f32 %v4943, %v5004
        %v5035 = vadd.f32 %v4944, %v5007
        %v5036 = vadd.f32 %v4945, %v5012
        %v5037 = vadd.f32 %v4946, %v5015
        %v5038 = vadd.f32 %v4947, %v5020
        %v5039 = vadd.f32 %v4948, %v5023
        %v5040 = vadd.f32 %v4949, %v5028
        %v5041 = vadd.f32 %v4950, %v5031
        %v5042 = vrot.slane %v196, 7
        %v5043 = vrot.slane %v5042, 4
        %v5044 = vrot.slane %v197, 7
        %v5045 = vsel %vm1148, %v5043, %v5044
        %s5046 = scalar_lea.vmem %s1, 96
        %v5047 = vld [vmem:[%s5046] sm:$0x3]
        %v5048 = vunpack.c.l.b16 %v5045
        %v5049 = vpack.c.b16 %v5048, %v4421
        %v5051 = vsel %vm328, %v5049, 0
        %v5054 = vsel %vm341, %v5047, 0
        %5056 = vmatprep.subr.bf16.mxu0 0
        %5057 = vmatpush1.bf16.msra.mxu0 0
        %5058 = vmatprep.subr.bf16.mxu0 0
        %5059 = vmatpush1.bf16.msra.mxu0 0
        %5060 = vmatprep.subr.bf16.mxu0 0
        %5061 = vmatpush1.bf16.msra.mxu0 0
        %5062 = vmatprep.subr.bf16.mxu0 0
        %5063 = vmatpush1.bf16.msra.mxu0 0
        %5064 = vmatprep.subr.bf16.mxu0 0
        %5065 = vmatpush1.bf16.msra.mxu0 0
        %5066 = vmatprep.subr.bf16.mxu0 0
        %5067 = vmatpush1.bf16.msra.mxu0 0
        %5068 = vmatprep.subr.bf16.mxu0 0
        %5069 = vmatpush1.bf16.msra.mxu0 0
        %5070 = vmatprep.subr.bf16.mxu0 0
        %5071 = vmatpush1.bf16.msra.mxu0 %v5054
        %5072 = vmatprep.subr.bf16.mxu0 0
        %5073 = vmatpush2.bf16.msra.mxu0 0
        %5074 = vmatprep.subr.bf16.mxu0 0
        %5075 = vmatpush2.bf16.msra.mxu0 0
        %5076 = vmatprep.subr.bf16.mxu0 0
        %5077 = vmatpush2.bf16.msra.mxu0 0
        %5078 = vmatprep.subr.bf16.mxu0 0
        %5079 = vmatpush2.bf16.msra.mxu0 0
        %5080 = vmatprep.subr.bf16.mxu0 0
        %5081 = vmatpush2.bf16.msra.mxu0 0
        %5082 = vmatprep.subr.bf16.mxu0 0
        %5083 = vmatpush2.bf16.msra.mxu0 0
        %5084 = vmatprep.subr.bf16.mxu0 0
        %5085 = vmatpush2.bf16.msra.mxu0 0
        %5086 = vmatprep.subr.bf16.mxu0 0
        %5087 = vmatpush2.bf16.msra.mxu0 0
        %5088 = vmatprep.mubr.bf16.mxu0 0
        %5089 = vmatmul.mubr.bf16.gmra.mxu0 %v1205
        %v5090 = vpop.f32.mrf.mxu0
        %v5091 = vadd.f32 0.0, %v5090
        %v5092 = vpop.f32.mrf.mxu0
        %v5093 = vpop.f32.mrf.mxu0
        %v5094 = vadd.f32 0.0, %v5093
        %v5095 = vpop.f32.mrf.mxu0
        %5096 = vmatprep.mubr.bf16.mxu0 0
        %5097 = vmatmul.mubr.bf16.gmra.mxu0 %v2543
        %v5098 = vpop.f32.mrf.mxu0
        %v5099 = vadd.f32 0.0, %v5098
        %v5100 = vpop.f32.mrf.mxu0
        %v5101 = vpop.f32.mrf.mxu0
        %v5102 = vadd.f32 0.0, %v5101
        %v5103 = vpop.f32.mrf.mxu0
        %5104 = vmatprep.mubr.bf16.mxu0 0
        %5105 = vmatmul.mubr.bf16.gmra.mxu0 %v3797
        %v5106 = vpop.f32.mrf.mxu0
        %v5107 = vadd.f32 0.0, %v5106
        %v5108 = vpop.f32.mrf.mxu0
        %v5109 = vpop.f32.mrf.mxu0
        %v5110 = vadd.f32 0.0, %v5109
        %v5111 = vpop.f32.mrf.mxu0
        %5112 = vmatprep.mubr.bf16.mxu0 0
        %5113 = vmatmul.mubr.bf16.gmra.mxu0 %v5051
        %v5114 = vpop.f32.mrf.mxu0
        %v5115 = vadd.f32 0.0, %v5114
        %v5116 = vpop.f32.mrf.mxu0
        %v5117 = vpop.f32.mrf.mxu0
        %v5118 = vadd.f32 0.0, %v5117
        %v5119 = vpop.f32.mrf.mxu0
        %5120 = vdwg.mxu0
        %v5121 = vadd.f32 %v5034, %v5091
        %v5122 = vadd.f32 %v5035, %v5094
        %v5123 = vadd.f32 %v5036, %v5099
        %v5124 = vadd.f32 %v5037, %v5102
        %v5125 = vadd.f32 %v5038, %v5107
        %v5126 = vadd.f32 %v5039, %v5110
        %v5127 = vadd.f32 %v5040, %v5115
        %v5128 = vadd.f32 %v5041, %v5118
        %v5129 = vld [vmem:[%s2] sm:$0x1]
        %v5131 = vlaneseq
        %v5132 = vshrl.u32 %v5131, 7
        %v5133 = vsub.s32 0, %v5132
        %v5134 = vrot.slane %v5129, %v5133
        %v5136 = vadd.f32 %v5121, %v5134
        %v5137 = vadd.f32 %v5122, %v5134
        %v5138 = vadd.f32 %v5123, %v5134
        %v5139 = vadd.f32 %v5124, %v5134
        %v5140 = vadd.f32 %v5125, %v5134
        %v5141 = vadd.f32 %v5126, %v5134
        %v5142 = vadd.f32 %v5127, %v5134
        %v5143 = vadd.f32 %v5128, %v5134
        %v5144 = vmax.f32 %v5136, 0.0
        %v5145 = vmax.f32 %v5137, 0.0
        %v5146 = vmax.f32 %v5138, 0.0
        %v5147 = vmax.f32 %v5139, 0.0
        %v5148 = vmax.f32 %v5140, 0.0
        %v5149 = vmax.f32 %v5141, 0.0
        %v5150 = vmax.f32 %v5142, 0.0
        %v5151 = vmax.f32 %v5143, 0.0
        %v5152 = vpack.c.bf16 %v5144, %v5144
        %v5153 = vpack.c.bf16 %v5145, %v5145
        %v5154 = vpack.c.bf16 %v5146, %v5146
        %v5155 = vpack.c.bf16 %v5147, %v5147
        %v5156 = vpack.c.bf16 %v5148, %v5148
        %v5157 = vpack.c.bf16 %v5149, %v5149
        %v5158 = vpack.c.bf16 %v5150, %v5150
        %v5159 = vpack.c.bf16 %v5151, %v5151
        %5160 = vst [vmem:[%s163] sm:$0xf] %v5152
        %5161 = vst [vmem:[%s163 + $0x4] sm:$0xf] %v5153
        %5162 = vst [vmem:[%s163 + $0x8] sm:$0xf] %v5154
        %5163 = vst [vmem:[%s163 + $0xc] sm:$0xf] %v5155
        %5164 = vst [vmem:[%s163 + $0x10] sm:$0xf] %v5156
        %5165 = vst [vmem:[%s163 + $0x14] sm:$0xf] %v5157
        %5166 = vst [vmem:[%s163 + $0x18] sm:$0xf] %v5158
        %5167 = vst [vmem:[%s163 + $0x1c] sm:$0xf] %v5159
        %s5168 = sand.u32 %s93, 1
        %s5169 = scalar_lea.sflag [#allocation3], %s5168
        %s5170 = sand.u32 %s93, 1
        %s5171 = smul.addr %s5170, 32
        %s5172 = scalar_lea.vmem [#allocation2], %s5171
        // Predicated region
        $region33: #{tpu_custom_call.1} parent=31 // pred_check
          %p5173 = pneg %p103
        $region34: #{tpu_custom_call.1} parent=31 // pred_check_branch
          %5175 = sbr.rel (%p5173) target = $region36
        $region35: #{tpu_custom_call.1} parent=31 // pred_region
          %s5177 = ssub.s32 512, 512
          %5178 = vsyncadd %s5169, %s5177
          %s5179 = smul.addr %s17, 8
          %s5180 = smul.addr %s5179, 64
          %s5181 = scalar_lea.hbm %s3, %s5180
          %s5182 = sshll.u32 %s5172, 4
          %s5183 = int_to_ptr.vmem [resolvable:$true] %s5182
          %5188 = dma.vmem_to_hbm [thread:$0]  %s5183, 512, %s5181, %s5169, 64, 64, 4
        $region36: #{tpu_custom_call.1} parent=31 // pred_fallthru
          _
      $region32: #{tpu_custom_call.1} parent=5 // pred_fallthru
        _
      %p5189 = scmp.le.s32.totalorder 2, %s12
      // Predicated region
      $region37: #{tpu_custom_call.1} parent=5 // pred_check
        %p5190 = pneg %p5189
      $region38: #{tpu_custom_call.1} parent=5 // pred_check_branch
        %5192 = sbr.rel (%p5190) target = $region40
      $region39: #{tpu_custom_call.1} parent=5 // pred_region
        %s5193 = ssub.s32 %s12, 2
        // Predicated region
        $region41: #{tpu_custom_call.1} parent=39 // pred_check
          %p5194 = pneg %p109
        $region42: #{tpu_custom_call.1} parent=39 // pred_check_branch
          %5196 = sbr.rel (%p5194) target = $region44
        $region43: #{tpu_custom_call.1} parent=39 // pred_region
          %s5197 = sand.u32 %s94, 1
          %s5198 = scalar_lea.sflag [#allocation3], %s5197
          %s5199 = sand.u32 %s94, 1
          %s5200 = smul.addr %s5199, 32
          %s5201 = scalar_lea.vmem [#allocation2], %s5200
          %5202 = dma.done %s5198, 512
        $region44: #{tpu_custom_call.1} parent=39 // pred_fallthru
          _
      $region40: #{tpu_custom_call.1} parent=5 // pred_fallthru
        _
    $region6: #{tpu_custom_call.1} parent=1 // loop_footer
      %s16 = sadd.s32 1, %s12
    $region7: #{tpu_custom_call.1} parent=1 // loop_footer_branch
      %11 = sbr.rel target = $region3
    $region8: #{tpu_custom_call.1} parent=1 // loop_exit
      _
    %5203 = vsyncpa [#allocation3], 1
    %s5204 = scalar_lea.sflag [#allocation3], 1
    %5205 = vsyncpa %s5204, 1

</llo_original>
